<compile_context>
chip_gen: v7x
topology: tpu7x:2x2x1
jax: 0.10.0
libtpu: 0.0.40
codegen_flags: <defaults>
</compile_context>

<pallas_src>
import functools

import numpy as np
import jax
import jax.numpy as jnp
from jax import lax
from jax.experimental import pallas as pl
from jax.experimental.pallas import tpu as pltpu


# ----------------------------------------------------------------------------
# Positional encoding (same math as the reference, computed in numpy).
# ----------------------------------------------------------------------------
def positional_encoding(position, d_model):
    pos = np.arange(position)[:, None].astype(np.float64)
    i = np.arange(d_model)[None, :].astype(np.float64)
    angle_rates = 1.0 / np.power(10000, (2 * (i // 2)) / np.float32(d_model))
    angle_rads = pos * angle_rates
    angle_rads[:, 0::2] = np.sin(angle_rads[:, 0::2])
    angle_rads[:, 1::2] = np.cos(angle_rads[:, 1::2])
    return jnp.asarray(angle_rads[None, ...], dtype=jnp.float32)  # (1, P, D)


# ----------------------------------------------------------------------------
# Fused decoder-stack kernel: one grid step = (batch element, layer)
# ----------------------------------------------------------------------------
def _decoder_stack_kernel(
        # inputs
        x_ref, enc_ref, la_ref, pm_ref,
        wqkv1_ref, bqkv1_ref, wo1_ref, bo1_ref, g1_ref, be1_ref,
        wq2_ref, bq2_ref, wkv2_ref, bkv2_ref, wo2_ref, bo2_ref, g2_ref, be2_ref,
        wf1_ref, bf1_ref, wf2_ref, bf2_ref, g3_ref, be3_ref,
        # outputs
        out_ref, attn1_ref, attn2_ref,
        *, num_heads, d_model, eps):
    depth = d_model // num_heads
    scale = 1.0 / float(np.sqrt(depth))
    l = pl.program_id(1)

    def mm(a, b):
        # bf16 operands on the MXU, f32 accumulation.
        return jnp.dot(a.astype(jnp.bfloat16), b.astype(jnp.bfloat16),
                       preferred_element_type=jnp.float32)

    def attention(q, k, v, mask2d, wo, bo, aw_ref):
        # q: (Sq, D), k/v: (Sk, D), mask2d broadcastable to (Sq, Sk).
        acc = jnp.zeros((q.shape[0], d_model), jnp.float32)
        neg = mask2d * (-1000000000.0)            # hoisted out of the head loop
        for h in range(num_heads):                 # static unroll, H small
            lo = h * depth
            qh = q[:, lo:lo + depth]
            kh = k[:, lo:lo + depth]
            vh = v[:, lo:lo + depth]
            # logits in f32 (small K=depth; keeps softmax inputs exact)
            logits = lax.dot_general(qh, kh, (((1,), (1,)), ((), ())),
                                     preferred_element_type=jnp.float32) * scale
            logits = logits + neg
            m = jnp.max(logits, axis=-1, keepdims=True)
            e = jnp.exp(logits - m)
            w = e * pl.reciprocal(jnp.sum(e, axis=-1, keepdims=True), approx=True)
            aw_ref[0, h] = w
            ctx = mm(w, vh)                                   # (Sq, depth)
            # accumulate through Wo row-slice: no head concat needed
            acc = acc + mm(ctx, wo[lo:lo + depth, :])         # (Sq, D)
        return acc + bo

    def add_ln(a, b, g, be):
        z = a + b
        mean = jnp.mean(z, axis=-1, keepdims=True)
        c = z - mean
        var = jnp.mean(c * c, axis=-1, keepdims=True)
        return c * lax.rsqrt(var + eps) * g + be

    # Carry the hidden state in the resident output block (same block index
    # across the layer axis): initialize it from the embedded input at l == 0.
    @pl.when(l == 0)
    def _():
        out_ref[0] = x_ref[0]

    x = out_ref[0]        # (Sq, D)  -- layer input (previous layer's output)
    enc = enc_ref[0]      # (Sk, D)
    la = la_ref[0, 0]     # (Sq, Sq)  -- shared across batch & heads
    pm = pm_ref[0, 0]     # (1, Sk)   -- per-batch, shared across heads/queries

    # --- block 1: masked self-attention (fused QKV) + residual LayerNorm ---
    qkv = mm(x, wqkv1_ref[0]) + bqkv1_ref[0]                  # (Sq, 3D)
    attn1 = attention(qkv[:, :d_model],
                      qkv[:, d_model:2 * d_model],
                      qkv[:, 2 * d_model:],
                      la, wo1_ref[0], bo1_ref[0], attn1_ref)
    out1 = add_ln(x, attn1, g1_ref[0], be1_ref[0])

    # --- block 2: cross-attention over encoder output (fused KV) ---
    q2 = mm(out1, wq2_ref[0]) + bq2_ref[0]                    # (Sq, D)
    kv2 = mm(enc, wkv2_ref[0]) + bkv2_ref[0]                  # (Sk, 2D)
    attn2 = attention(q2, kv2[:, :d_model], kv2[:, d_model:], pm,
                      wo2_ref[0], bo2_ref[0], attn2_ref)
    out2 = add_ln(out1, attn2, g2_ref[0], be2_ref[0])

    # --- block 3: feed-forward + residual LayerNorm ---
    hdn = jnp.maximum(mm(out2, wf1_ref[0]) + bf1_ref[0], 0.0)
    f = mm(hdn, wf2_ref[0]) + bf2_ref[0]
    out_ref[0] = add_ln(out2, f, g3_ref[0], be3_ref[0])


# ----------------------------------------------------------------------------
# Parameter initialization (deterministic), stacked along a leading layer axis
# ----------------------------------------------------------------------------
def _init_linear(key, d_in, d_out):
    kw, kb = jax.random.split(key)
    w = jax.random.normal(kw, (d_in, d_out), jnp.float32) * 0.02
    b = jax.random.normal(kb, (1, d_out), jnp.float32) * 0.02
    return w, b


_STACK_NAMES = ("wqkv1", "bqkv1", "wo1", "bo1", "g1", "be1",
                "wq2", "bq2", "wkv2", "bkv2", "wo2", "bo2", "g2", "be2",
                "wf1", "bf1", "wf2", "bf2", "g3", "be3")


def init_decoder_params(key, num_layers, d_model, dff, target_vocab_size,
                        maximum_position_encoding):
    keys = jax.random.split(key, num_layers + 1)
    emb = jax.random.normal(keys[0], (target_vocab_size, d_model),
                            jnp.float32) * 0.02
    ones = jnp.ones((1, d_model), jnp.float32)
    zeros = jnp.zeros((1, d_model), jnp.float32)
    per_layer = {n: [] for n in _STACK_NAMES}
    for i in range(num_layers):
        lk = jax.random.split(keys[i + 1], 7)
        wqkv1, bqkv1 = _init_linear(lk[0], d_model, 3 * d_model)
        wo1, bo1 = _init_linear(lk[1], d_model, d_model)
        wq2, bq2 = _init_linear(lk[2], d_model, d_model)
        wkv2, bkv2 = _init_linear(lk[3], d_model, 2 * d_model)
        wo2, bo2 = _init_linear(lk[4], d_model, d_model)
        wf1, bf1 = _init_linear(lk[5], d_model, dff)
        wf2, bf2 = _init_linear(lk[6], dff, d_model)
        vals = dict(wqkv1=wqkv1, bqkv1=bqkv1, wo1=wo1, bo1=bo1, g1=ones, be1=zeros,
                    wq2=wq2, bq2=bq2, wkv2=wkv2, bkv2=bkv2, wo2=wo2, bo2=bo2,
                    g2=ones, be2=zeros,
                    wf1=wf1, bf1=bf1, wf2=wf2, bf2=bf2, g3=ones, be3=zeros)
        for n in _STACK_NAMES:
            per_layer[n].append(vals[n])
    stack = {n: jnp.stack(per_layer[n], axis=0) for n in _STACK_NAMES}
    return {
        "embedding": emb,
        "pos_encoding": positional_encoding(maximum_position_encoding, d_model),
        "stack": stack,
    }


# ----------------------------------------------------------------------------
# Decoder forward: glue in JAX, single fused pallas_call for the whole stack
# ----------------------------------------------------------------------------
def decoder_forward(tokens, enc_output, look_ahead_mask, padding_mask, params,
                    *, num_layers, num_heads, d_model):
    B, Sq = tokens.shape
    Sk = enc_output.shape[1]
    H, D, L = num_heads, d_model, num_layers
    s = params["stack"]

    x = jnp.take(params["embedding"], tokens, axis=0)          # (B, Sq, D)
    x = x * jnp.sqrt(jnp.float32(d_model))
    x = x + params["pos_encoding"][:, :Sq, :]
    # TODO(synk): dropout layers are identity (inference semantics), no RNG applied.

    la_mask = look_ahead_mask.reshape(1, 1, Sq, Sq).astype(jnp.float32)
    pad_mask = padding_mask.astype(jnp.float32)                # (B, 1, 1, Sk)

    kernel = functools.partial(_decoder_stack_kernel,
                               num_heads=H, d_model=D, eps=1e-6)

    def layer_spec(arr):
        n = arr.ndim
        return pl.BlockSpec((1,) + arr.shape[1:],
                            lambda b, l, n=n: (l,) + (0,) * (n - 1))

    in_specs = [
        pl.BlockSpec((1, Sq, D), lambda b, l: (b, 0, 0)),          # x (embedded)
        pl.BlockSpec((1, Sk, D), lambda b, l: (b, 0, 0)),          # enc output
        pl.BlockSpec((1, 1, Sq, Sq), lambda b, l: (0, 0, 0, 0)),   # look-ahead mask
        pl.BlockSpec((1, 1, 1, Sk), lambda b, l: (b, 0, 0, 0)),    # padding mask
    ] + [layer_spec(s[n]) for n in _STACK_NAMES]

    out_specs = (
        pl.BlockSpec((1, Sq, D), lambda b, l: (b, 0, 0)),          # carried state
        pl.BlockSpec((1, H, Sq, Sq), lambda b, l: (l * B + b, 0, 0, 0)),
        pl.BlockSpec((1, H, Sq, Sk), lambda b, l: (l * B + b, 0, 0, 0)),
    )
    out_shape = (
        jax.ShapeDtypeStruct((B, Sq, D), jnp.float32),
        jax.ShapeDtypeStruct((L * B, H, Sq, Sq), jnp.float32),
        jax.ShapeDtypeStruct((L * B, H, Sq, Sk), jnp.float32),
    )

    out, aw1_all, aw2_all = pl.pallas_call(
        kernel,
        grid=(B, L),
        in_specs=in_specs,
        out_specs=out_specs,
        out_shape=out_shape,
        compiler_params=pltpu.CompilerParams(
            dimension_semantics=("parallel", "arbitrary")),
    )(x, enc_output, la_mask, pad_mask, *[s[n] for n in _STACK_NAMES])

    aw1_all = aw1_all.reshape(L, B, H, Sq, Sq)
    aw2_all = aw2_all.reshape(L, B, H, Sq, Sk)
    attention_weights = {}
    for i in range(num_layers):
        attention_weights[f"decoder_layer{i + 1}_block1"] = aw1_all[i]
        attention_weights[f"decoder_layer{i + 1}_block2"] = aw2_all[i]
    return out, attention_weights


# ----------------------------------------------------------------------------
# Pure-JAX reference (mirrors PyTorch math) for a sanity check
# ----------------------------------------------------------------------------
def _ref_sdpa_proj(q, k, v, mask, wo, bo, num_heads):
    B, Sq, D = q.shape
    Sk = k.shape[1]
    depth = D // num_heads
    split = lambda t, S: t.reshape(B, S, num_heads, depth).transpose(0, 2, 1, 3)
    qh, kh, vh = split(q, Sq), split(k, Sk), split(v, Sk)
    logits = jnp.einsum("bhqd,bhkd->bhqk", qh, kh) / jnp.sqrt(jnp.float32(depth))
    logits = logits + mask * (-1000000000.0)
    w = jax.nn.softmax(logits, axis=-1)
    ctx = jnp.einsum("bhqk,bhkd->bhqd", w, vh)
    ctx = ctx.transpose(0, 2, 1, 3).reshape(B, Sq, D)
    return ctx @ wo + bo, w


def _ref_add_ln(x, y, gamma, beta, eps=1e-6):
    z = x + y
    mean = jnp.mean(z, axis=-1, keepdims=True)
    var = jnp.mean((z - mean) ** 2, axis=-1, keepdims=True)
    return (z - mean) / jnp.sqrt(var + eps) * gamma + beta


def _ref_decoder(tokens, enc_output, look_ahead_mask, padding_mask, params,
                 *, num_layers, num_heads, d_model):
    B, Sq = tokens.shape
    D = d_model
    x = jnp.take(params["embedding"], tokens, axis=0)
    x = x * jnp.sqrt(jnp.float32(d_model))
    x = x + params["pos_encoding"][:, :Sq, :]
    la = look_ahead_mask.reshape(1, 1, Sq, Sq).astype(jnp.float32)
    pm = padding_mask.astype(jnp.float32)
    s = params["stack"]
    aws = {}
    for i in range(num_layers):
        qkv = x @ s["wqkv1"][i] + s["bqkv1"][i]
        a1, w1 = _ref_sdpa_proj(qkv[..., :D], qkv[..., D:2 * D], qkv[..., 2 * D:],
                                la, s["wo1"][i], s["bo1"][i], num_heads)
        o1 = _ref_add_ln(x, a1, s["g1"][i], s["be1"][i])
        q2 = o1 @ s["wq2"][i] + s["bq2"][i]
        kv2 = enc_output @ s["wkv2"][i] + s["bkv2"][i]
        a2, w2 = _ref_sdpa_proj(q2, kv2[..., :D], kv2[..., D:], pm,
                                s["wo2"][i], s["bo2"][i], num_heads)
        o2 = _ref_add_ln(o1, a2, s["g2"][i], s["be2"][i])
        f = jnp.maximum(o2 @ s["wf1"][i] + s["bf1"][i], 0.0) @ s["wf2"][i] + s["bf2"][i]
        x = _ref_add_ln(o2, f, s["g3"][i], s["be3"][i])
        aws[f"decoder_layer{i + 1}_block1"] = w1
        aws[f"decoder_layer{i + 1}_block2"] = w2
    return x, aws


# ----------------------------------------------------------------------------
# Main
# ----------------------------------------------------------------------------
if __name__ == "__main__":
    num_layers = 2
    d_model = 32
    num_heads = 4
    dff = 64
    target_vocab_size = 50
    maximum_position_encoding = 16

    B, Sq, Sk = 2, 8, 8

    key = jax.random.PRNGKey(0)
    k_par, k_tok, k_enc = jax.random.split(key, 3)

    params = init_decoder_params(k_par, num_layers, d_model, dff,
                                 target_vocab_size, maximum_position_encoding)

    tokens = jax.random.randint(k_tok, (B, Sq), 0, target_vocab_size, dtype=jnp.int32)
    enc_output = jax.random.normal(k_enc, (B, Sk, d_model), jnp.float32)

    # Look-ahead mask (Sq, Sq): 1 above the diagonal. Padding mask (B,1,1,Sk).
    look_ahead_mask = 1.0 - jnp.tril(jnp.ones((Sq, Sq), jnp.float32))
    padding_mask = jnp.zeros((B, 1, 1, Sk), jnp.float32)
    padding_mask = padding_mask.at[0, 0, 0, -2:].set(1.0)  # pad last 2 keys of batch 0

    fwd = jax.jit(functools.partial(decoder_forward,
                                    num_layers=num_layers,
                                    num_heads=num_heads,
                                    d_model=d_model))
    out, attn_weights = fwd(tokens, enc_output, look_ahead_mask, padding_mask, params)
    out = jax.block_until_ready(out)

    ref_out, ref_aw = _ref_decoder(
        tokens, enc_output, look_ahead_mask, padding_mask, params,
        num_layers=num_layers, num_heads=num_heads, d_model=d_model)

    np.testing.assert_allclose(np.asarray(out), np.asarray(ref_out),
                               rtol=5e-2, atol=5e-2)
    for name in ("decoder_layer1_block1", "decoder_layer1_block2",
                 "decoder_layer2_block1", "decoder_layer2_block2"):
        np.testing.assert_allclose(np.asarray(attn_weights[name]),
                                   np.asarray(ref_aw[name]),
                                   rtol=5e-2, atol=5e-2)

    print("KERNEL_OK")
</pallas_src>

<mosaic_0001>
module attributes {stable_mosaic.version = 11 : i64} {
  func.func @_decoder_stack_kernel(%arg0: i32, %arg1: i32, %arg2: memref<1x8x32xf32, #tpu.memory_space<vmem>>, %arg3: memref<1x8x32xf32, #tpu.memory_space<vmem>>, %arg4: memref<1x1x8x8xf32, #tpu.memory_space<vmem>>, %arg5: memref<1x1x1x8xf32, #tpu.memory_space<vmem>>, %arg6: memref<1x32x96xf32, #tpu.memory_space<vmem>>, %arg7: memref<1x1x96xf32, #tpu.memory_space<vmem>>, %arg8: memref<1x32x32xf32, #tpu.memory_space<vmem>>, %arg9: memref<1x1x32xf32, #tpu.memory_space<vmem>>, %arg10: memref<1x1x32xf32, #tpu.memory_space<vmem>>, %arg11: memref<1x1x32xf32, #tpu.memory_space<vmem>>, %arg12: memref<1x32x32xf32, #tpu.memory_space<vmem>>, %arg13: memref<1x1x32xf32, #tpu.memory_space<vmem>>, %arg14: memref<1x32x64xf32, #tpu.memory_space<vmem>>, %arg15: memref<1x1x64xf32, #tpu.memory_space<vmem>>, %arg16: memref<1x32x32xf32, #tpu.memory_space<vmem>>, %arg17: memref<1x1x32xf32, #tpu.memory_space<vmem>>, %arg18: memref<1x1x32xf32, #tpu.memory_space<vmem>>, %arg19: memref<1x1x32xf32, #tpu.memory_space<vmem>>, %arg20: memref<1x32x64xf32, #tpu.memory_space<vmem>>, %arg21: memref<1x1x64xf32, #tpu.memory_space<vmem>>, %arg22: memref<1x64x32xf32, #tpu.memory_space<vmem>>, %arg23: memref<1x1x32xf32, #tpu.memory_space<vmem>>, %arg24: memref<1x1x32xf32, #tpu.memory_space<vmem>>, %arg25: memref<1x1x32xf32, #tpu.memory_space<vmem>>, %arg26: memref<1x8x32xf32, #tpu.memory_space<vmem>>, %arg27: memref<1x4x8x8xf32, #tpu.memory_space<vmem>>, %arg28: memref<1x4x8x8xf32, #tpu.memory_space<vmem>>) attributes {dimension_semantics = [#tpu.dimension_semantics<parallel>, #tpu.dimension_semantics<arbitrary>], iteration_bounds = array<i64: 2, 2>, scalar_prefetch = 0 : i64, scratch_operands = 0 : i64, tpu.core_type = #tpu.core_type<tc>, window_params = [{transform_indices = @transform_0, window_bounds = array<i64: 1, 8, 32>}, {transform_indices = @transform_1, window_bounds = array<i64: 1, 8, 32>}, {pipeline_mode = #tpu.pipeline_mode<synchronous>, transform_indices = @transform_2, window_bounds = array<i64: 1, 1, 8, 8>}, {transform_indices = @transform_3, window_bounds = array<i64: 1, 1, 1, 8>}, {transform_indices = @transform_4, window_bounds = array<i64: 1, 32, 96>}, {transform_indices = @transform_5, window_bounds = array<i64: 1, 1, 96>}, {transform_indices = @transform_6, window_bounds = array<i64: 1, 32, 32>}, {transform_indices = @transform_7, window_bounds = array<i64: 1, 1, 32>}, {transform_indices = @transform_8, window_bounds = array<i64: 1, 1, 32>}, {transform_indices = @transform_9, window_bounds = array<i64: 1, 1, 32>}, {transform_indices = @transform_10, window_bounds = array<i64: 1, 32, 32>}, {transform_indices = @transform_11, window_bounds = array<i64: 1, 1, 32>}, {transform_indices = @transform_12, window_bounds = array<i64: 1, 32, 64>}, {transform_indices = @transform_13, window_bounds = array<i64: 1, 1, 64>}, {transform_indices = @transform_14, window_bounds = array<i64: 1, 32, 32>}, {transform_indices = @transform_15, window_bounds = array<i64: 1, 1, 32>}, {transform_indices = @transform_16, window_bounds = array<i64: 1, 1, 32>}, {transform_indices = @transform_17, window_bounds = array<i64: 1, 1, 32>}, {transform_indices = @transform_18, window_bounds = array<i64: 1, 32, 64>}, {transform_indices = @transform_19, window_bounds = array<i64: 1, 1, 64>}, {transform_indices = @transform_20, window_bounds = array<i64: 1, 64, 32>}, {transform_indices = @transform_21, window_bounds = array<i64: 1, 1, 32>}, {transform_indices = @transform_22, window_bounds = array<i64: 1, 1, 32>}, {transform_indices = @transform_23, window_bounds = array<i64: 1, 1, 32>}, {transform_indices = @transform_24, window_bounds = array<i64: 1, 8, 32>}, {transform_indices = @transform_25, window_bounds = array<i64: 1, 4, 8, 8>}, {transform_indices = @transform_26, window_bounds = array<i64: 1, 4, 8, 8>}]} {
    %c0_i32 = arith.constant 0 : i32
    %0 = arith.cmpi eq, %arg1, %c0_i32 : i32
    %1 = arith.extui %0 : i1 to i32
    %c0_i32_0 = arith.constant 0 : i32
    %2 = arith.cmpi ne, %1, %c0_i32_0 : i32
    scf.if %2 {
      %c0_178 = arith.constant 0 : index
      %c0_179 = arith.constant 0 : index
      %c0_180 = arith.constant 0 : index
      %387 = vector.load %arg2[%c0_178, %c0_179, %c0_180] : memref<1x8x32xf32, #tpu.memory_space<vmem>>, vector<1x8x32xf32>
      %388 = vector.shape_cast %387 : vector<1x8x32xf32> to vector<8x32xf32>
      %c0_181 = arith.constant 0 : index
      %c0_182 = arith.constant 0 : index
      %c0_183 = arith.constant 0 : index
      %389 = vector.load %arg26[%c0_181, %c0_182, %c0_183] : memref<1x8x32xf32, #tpu.memory_space<vmem>>, vector<1x8x32xf32>
      %390 = vector.shape_cast %389 : vector<1x8x32xf32> to vector<8x32xf32>
      %391 = vector.shape_cast %388 : vector<8x32xf32> to vector<1x8x32xf32>
      tpu.vector_store %arg26[%c0_181, %c0_182, %c0_183], %391 {strides = array<i32>} : memref<1x8x32xf32, #tpu.memory_space<vmem>>, vector<1x8x32xf32>,
    } else {
    }
    %c0 = arith.constant 0 : index
    %c0_1 = arith.constant 0 : index
    %c0_2 = arith.constant 0 : index
    %3 = vector.load %arg26[%c0, %c0_1, %c0_2] : memref<1x8x32xf32, #tpu.memory_space<vmem>>, vector<1x8x32xf32>
    %4 = vector.shape_cast %3 : vector<1x8x32xf32> to vector<8x32xf32>
    %c0_3 = arith.constant 0 : index
    %c0_4 = arith.constant 0 : index
    %c0_5 = arith.constant 0 : index
    %5 = vector.load %arg3[%c0_3, %c0_4, %c0_5] : memref<1x8x32xf32, #tpu.memory_space<vmem>>, vector<1x8x32xf32>
    %6 = vector.shape_cast %5 : vector<1x8x32xf32> to vector<8x32xf32>
    %c0_6 = arith.constant 0 : index
    %c0_7 = arith.constant 0 : index
    %c0_8 = arith.constant 0 : index
    %c0_9 = arith.constant 0 : index
    %7 = vector.load %arg4[%c0_6, %c0_7, %c0_8, %c0_9] : memref<1x1x8x8xf32, #tpu.memory_space<vmem>>, vector<1x1x8x8xf32>
    %8 = vector.shape_cast %7 : vector<1x1x8x8xf32> to vector<8x8xf32>
    %c0_10 = arith.constant 0 : index
    %c0_11 = arith.constant 0 : index
    %c0_12 = arith.constant 0 : index
    %c0_13 = arith.constant 0 : index
    %9 = vector.load %arg5[%c0_10, %c0_11, %c0_12, %c0_13] : memref<1x1x1x8xf32, #tpu.memory_space<vmem>>, vector<1x1x1x8xf32>
    %10 = vector.shape_cast %9 : vector<1x1x1x8xf32> to vector<1x8xf32>
    %c0_14 = arith.constant 0 : index
    %c0_15 = arith.constant 0 : index
    %c0_16 = arith.constant 0 : index
    %11 = vector.load %arg6[%c0_14, %c0_15, %c0_16] : memref<1x32x96xf32, #tpu.memory_space<vmem>>, vector<1x32x96xf32>
    %12 = vector.shape_cast %11 : vector<1x32x96xf32> to vector<32x96xf32>
    %13 = arith.truncf %4 : vector<8x32xf32> to vector<8x32xbf16>
    %14 = arith.truncf %12 : vector<32x96xf32> to vector<32x96xbf16>
    %cst = arith.constant dense<0.000000e+00> : vector<8x96xf32>
    %15 = tpu.matmul %13, %14, %cst {dimension_numbers = #tpu.dot_dimension_numbers<[1], [0], [0], [1], [0, 0, 1, 1], [], []>} : vector<8x32xbf16>, vector<32x96xbf16>, vector<8x96xf32> -> vector<8x96xf32>
    %c0_17 = arith.constant 0 : index
    %c0_18 = arith.constant 0 : index
    %c0_19 = arith.constant 0 : index
    %16 = vector.load %arg7[%c0_17, %c0_18, %c0_19] : memref<1x1x96xf32, #tpu.memory_space<vmem>>, vector<1x1x96xf32>
    %17 = vector.shape_cast %16 : vector<1x1x96xf32> to vector<1x96xf32>
    %18 = vector.broadcast %17 : vector<1x96xf32> to vector<8x96xf32>
    %19 = arith.addf %15, %18 : vector<8x96xf32>
    %20 = vector.extract_strided_slice %19 {offsets = [0, 0], sizes = [8, 32], strides = [1, 1]} : vector<8x96xf32> to vector<8x32xf32>
    %21 = vector.extract_strided_slice %19 {offsets = [0, 32], sizes = [8, 32], strides = [1, 1]} : vector<8x96xf32> to vector<8x32xf32>
    %22 = vector.extract_strided_slice %19 {offsets = [0, 64], sizes = [8, 32], strides = [1, 1]} : vector<8x96xf32> to vector<8x32xf32>
    %c0_20 = arith.constant 0 : index
    %c0_21 = arith.constant 0 : index
    %c0_22 = arith.constant 0 : index
    %23 = vector.load %arg8[%c0_20, %c0_21, %c0_22] : memref<1x32x32xf32, #tpu.memory_space<vmem>>, vector<1x32x32xf32>
    %24 = vector.shape_cast %23 : vector<1x32x32xf32> to vector<32x32xf32>
    %c0_23 = arith.constant 0 : index
    %c0_24 = arith.constant 0 : index
    %c0_25 = arith.constant 0 : index
    %25 = vector.load %arg9[%c0_23, %c0_24, %c0_25] : memref<1x1x32xf32, #tpu.memory_space<vmem>>, vector<1x1x32xf32>
    %26 = vector.shape_cast %25 : vector<1x1x32xf32> to vector<1x32xf32>
    %cst_26 = arith.constant 0.000000e+00 : f32
    %27 = vector.broadcast %cst_26 : f32 to vector<8x32xf32>
    %cst_27 = arith.constant -1.000000e+09 : f32
    %28 = vector.broadcast %cst_27 : f32 to vector<8x8xf32>
    %29 = arith.mulf %8, %28 : vector<8x8xf32>
    %30 = vector.extract_strided_slice %20 {offsets = [0, 0], sizes = [8, 8], strides = [1, 1]} : vector<8x32xf32> to vector<8x8xf32>
    %31 = vector.extract_strided_slice %21 {offsets = [0, 0], sizes = [8, 8], strides = [1, 1]} : vector<8x32xf32> to vector<8x8xf32>
    %32 = vector.extract_strided_slice %22 {offsets = [0, 0], sizes = [8, 8], strides = [1, 1]} : vector<8x32xf32> to vector<8x8xf32>
    %cst_28 = arith.constant dense<0.000000e+00> : vector<8x8xf32>
    %33 = tpu.matmul %30, %31, %cst_28 {dimension_numbers = #tpu.dot_dimension_numbers<[1], [1], [0], [0], [0, 0, 1, 0], [], []>} : vector<8x8xf32>, vector<8x8xf32>, vector<8x8xf32> -> vector<8x8xf32>
    %cst_29 = arith.constant 0.353553385 : f32
    %34 = vector.broadcast %cst_29 : f32 to vector<8x8xf32>
    %35 = arith.mulf %33, %34 : vector<8x8xf32>
    %36 = arith.addf %35, %29 : vector<8x8xf32>
    %cst_30 = arith.constant dense<0xFF800000> : vector<8xf32>
    %37 = vector.multi_reduction <maximumf>, %36, %cst_30 [1] : vector<8x8xf32> to vector<8xf32>
    %38 = vector.shape_cast %37 : vector<8xf32> to vector<8x1xf32>
    %39 = vector.broadcast %38 : vector<8x1xf32> to vector<8x8xf32>
    %40 = arith.subf %36, %39 : vector<8x8xf32>
    %41 = math.exp %40 : vector<8x8xf32>
    %cst_31 = arith.constant dense<0.000000e+00> : vector<8xf32>
    %42 = vector.multi_reduction <add>, %41, %cst_31 [1] : vector<8x8xf32> to vector<8xf32>
    %43 = vector.shape_cast %42 : vector<8xf32> to vector<8x1xf32>
    %44 = tpu.reciprocal %43 {approx = true} : vector<8x1xf32> -> vector<8x1xf32>
    %45 = vector.broadcast %44 : vector<8x1xf32> to vector<8x8xf32>
    %46 = arith.mulf %41, %45 : vector<8x8xf32>
    %c0_32 = arith.constant 0 : index
    %c0_33 = arith.constant 0 : index
    %c0_34 = arith.constant 0 : index
    %c0_35 = arith.constant 0 : index
    %47 = vector.load %arg27[%c0_32, %c0_33, %c0_34, %c0_35] : memref<1x4x8x8xf32, #tpu.memory_space<vmem>>, vector<1x1x8x8xf32>
    %48 = vector.shape_cast %47 : vector<1x1x8x8xf32> to vector<8x8xf32>
    %49 = vector.shape_cast %46 : vector<8x8xf32> to vector<1x1x8x8xf32>
    tpu.vector_store %arg27[%c0_32, %c0_33, %c0_34, %c0_35], %49 {strides = array<i32>} : memref<1x4x8x8xf32, #tpu.memory_space<vmem>>, vector<1x1x8x8xf32>,
    %50 = arith.truncf %46 : vector<8x8xf32> to vector<8x8xbf16>
    %51 = arith.truncf %32 : vector<8x8xf32> to vector<8x8xbf16>
    %cst_36 = arith.constant dense<0.000000e+00> : vector<8x8xf32>
    %52 = tpu.matmul %50, %51, %cst_36 {dimension_numbers = #tpu.dot_dimension_numbers<[1], [0], [0], [1], [0, 0, 1, 1], [], []>} : vector<8x8xbf16>, vector<8x8xbf16>, vector<8x8xf32> -> vector<8x8xf32>
    %53 = vector.extract_strided_slice %24 {offsets = [0, 0], sizes = [8, 32], strides = [1, 1]} : vector<32x32xf32> to vector<8x32xf32>
    %54 = arith.truncf %52 : vector<8x8xf32> to vector<8x8xbf16>
    %55 = arith.truncf %53 : vector<8x32xf32> to vector<8x32xbf16>
    %cst_37 = arith.constant dense<0.000000e+00> : vector<8x32xf32>
    %56 = tpu.matmul %54, %55, %cst_37 {dimension_numbers = #tpu.dot_dimension_numbers<[1], [0], [0], [1], [0, 0, 1, 1], [], []>} : vector<8x8xbf16>, vector<8x32xbf16>, vector<8x32xf32> -> vector<8x32xf32>
    %57 = arith.addf %27, %56 : vector<8x32xf32>
    %58 = vector.extract_strided_slice %20 {offsets = [0, 8], sizes = [8, 8], strides = [1, 1]} : vector<8x32xf32> to vector<8x8xf32>
    %59 = vector.extract_strided_slice %21 {offsets = [0, 8], sizes = [8, 8], strides = [1, 1]} : vector<8x32xf32> to vector<8x8xf32>
    %60 = vector.extract_strided_slice %22 {offsets = [0, 8], sizes = [8, 8], strides = [1, 1]} : vector<8x32xf32> to vector<8x8xf32>
    %cst_38 = arith.constant dense<0.000000e+00> : vector<8x8xf32>
    %61 = tpu.matmul %58, %59, %cst_38 {dimension_numbers = #tpu.dot_dimension_numbers<[1], [1], [0], [0], [0, 0, 1, 0], [], []>} : vector<8x8xf32>, vector<8x8xf32>, vector<8x8xf32> -> vector<8x8xf32>
    %cst_39 = arith.constant 0.353553385 : f32
    %62 = vector.broadcast %cst_39 : f32 to vector<8x8xf32>
    %63 = arith.mulf %61, %62 : vector<8x8xf32>
    %64 = arith.addf %63, %29 : vector<8x8xf32>
    %cst_40 = arith.constant dense<0xFF800000> : vector<8xf32>
    %65 = vector.multi_reduction <maximumf>, %64, %cst_40 [1] : vector<8x8xf32> to vector<8xf32>
    %66 = vector.shape_cast %65 : vector<8xf32> to vector<8x1xf32>
    %67 = vector.broadcast %66 : vector<8x1xf32> to vector<8x8xf32>
    %68 = arith.subf %64, %67 : vector<8x8xf32>
    %69 = math.exp %68 : vector<8x8xf32>
    %cst_41 = arith.constant dense<0.000000e+00> : vector<8xf32>
    %70 = vector.multi_reduction <add>, %69, %cst_41 [1] : vector<8x8xf32> to vector<8xf32>
    %71 = vector.shape_cast %70 : vector<8xf32> to vector<8x1xf32>
    %72 = tpu.reciprocal %71 {approx = true} : vector<8x1xf32> -> vector<8x1xf32>
    %73 = vector.broadcast %72 : vector<8x1xf32> to vector<8x8xf32>
    %74 = arith.mulf %69, %73 : vector<8x8xf32>
    %c0_42 = arith.constant 0 : index
    %c1 = arith.constant 1 : index
    %c0_43 = arith.constant 0 : index
    %c0_44 = arith.constant 0 : index
    %75 = vector.load %arg27[%c0_42, %c1, %c0_43, %c0_44] : memref<1x4x8x8xf32, #tpu.memory_space<vmem>>, vector<1x1x8x8xf32>
    %76 = vector.shape_cast %75 : vector<1x1x8x8xf32> to vector<8x8xf32>
    %77 = vector.shape_cast %74 : vector<8x8xf32> to vector<1x1x8x8xf32>
    tpu.vector_store %arg27[%c0_42, %c1, %c0_43, %c0_44], %77 {strides = array<i32>} : memref<1x4x8x8xf32, #tpu.memory_space<vmem>>, vector<1x1x8x8xf32>,
    %78 = arith.truncf %74 : vector<8x8xf32> to vector<8x8xbf16>
    %79 = arith.truncf %60 : vector<8x8xf32> to vector<8x8xbf16>
    %cst_45 = arith.constant dense<0.000000e+00> : vector<8x8xf32>
    %80 = tpu.matmul %78, %79, %cst_45 {dimension_numbers = #tpu.dot_dimension_numbers<[1], [0], [0], [1], [0, 0, 1, 1], [], []>} : vector<8x8xbf16>, vector<8x8xbf16>, vector<8x8xf32> -> vector<8x8xf32>
    %81 = vector.extract_strided_slice %24 {offsets = [8, 0], sizes = [8, 32], strides = [1, 1]} : vector<32x32xf32> to vector<8x32xf32>
    %82 = arith.truncf %80 : vector<8x8xf32> to vector<8x8xbf16>
    %83 = arith.truncf %81 : vector<8x32xf32> to vector<8x32xbf16>
    %cst_46 = arith.constant dense<0.000000e+00> : vector<8x32xf32>
    %84 = tpu.matmul %82, %83, %cst_46 {dimension_numbers = #tpu.dot_dimension_numbers<[1], [0], [0], [1], [0, 0, 1, 1], [], []>} : vector<8x8xbf16>, vector<8x32xbf16>, vector<8x32xf32> -> vector<8x32xf32>
    %85 = arith.addf %57, %84 : vector<8x32xf32>
    %86 = vector.extract_strided_slice %20 {offsets = [0, 16], sizes = [8, 8], strides = [1, 1]} : vector<8x32xf32> to vector<8x8xf32>
    %87 = vector.extract_strided_slice %21 {offsets = [0, 16], sizes = [8, 8], strides = [1, 1]} : vector<8x32xf32> to vector<8x8xf32>
    %88 = vector.extract_strided_slice %22 {offsets = [0, 16], sizes = [8, 8], strides = [1, 1]} : vector<8x32xf32> to vector<8x8xf32>
    %cst_47 = arith.constant dense<0.000000e+00> : vector<8x8xf32>
    %89 = tpu.matmul %86, %87, %cst_47 {dimension_numbers = #tpu.dot_dimension_numbers<[1], [1], [0], [0], [0, 0, 1, 0], [], []>} : vector<8x8xf32>, vector<8x8xf32>, vector<8x8xf32> -> vector<8x8xf32>
    %cst_48 = arith.constant 0.353553385 : f32
    %90 = vector.broadcast %cst_48 : f32 to vector<8x8xf32>
    %91 = arith.mulf %89, %90 : vector<8x8xf32>
    %92 = arith.addf %91, %29 : vector<8x8xf32>
    %cst_49 = arith.constant dense<0xFF800000> : vector<8xf32>
    %93 = vector.multi_reduction <maximumf>, %92, %cst_49 [1] : vector<8x8xf32> to vector<8xf32>
    %94 = vector.shape_cast %93 : vector<8xf32> to vector<8x1xf32>
    %95 = vector.broadcast %94 : vector<8x1xf32> to vector<8x8xf32>
    %96 = arith.subf %92, %95 : vector<8x8xf32>
    %97 = math.exp %96 : vector<8x8xf32>
    %cst_50 = arith.constant dense<0.000000e+00> : vector<8xf32>
    %98 = vector.multi_reduction <add>, %97, %cst_50 [1] : vector<8x8xf32> to vector<8xf32>
    %99 = vector.shape_cast %98 : vector<8xf32> to vector<8x1xf32>
    %100 = tpu.reciprocal %99 {approx = true} : vector<8x1xf32> -> vector<8x1xf32>
    %101 = vector.broadcast %100 : vector<8x1xf32> to vector<8x8xf32>
    %102 = arith.mulf %97, %101 : vector<8x8xf32>
    %c0_51 = arith.constant 0 : index
    %c2 = arith.constant 2 : index
    %c0_52 = arith.constant 0 : index
    %c0_53 = arith.constant 0 : index
    %103 = vector.load %arg27[%c0_51, %c2, %c0_52, %c0_53] : memref<1x4x8x8xf32, #tpu.memory_space<vmem>>, vector<1x1x8x8xf32>
    %104 = vector.shape_cast %103 : vector<1x1x8x8xf32> to vector<8x8xf32>
    %105 = vector.shape_cast %102 : vector<8x8xf32> to vector<1x1x8x8xf32>
    tpu.vector_store %arg27[%c0_51, %c2, %c0_52, %c0_53], %105 {strides = array<i32>} : memref<1x4x8x8xf32, #tpu.memory_space<vmem>>, vector<1x1x8x8xf32>,
    %106 = arith.truncf %102 : vector<8x8xf32> to vector<8x8xbf16>
    %107 = arith.truncf %88 : vector<8x8xf32> to vector<8x8xbf16>
    %cst_54 = arith.constant dense<0.000000e+00> : vector<8x8xf32>
    %108 = tpu.matmul %106, %107, %cst_54 {dimension_numbers = #tpu.dot_dimension_numbers<[1], [0], [0], [1], [0, 0, 1, 1], [], []>} : vector<8x8xbf16>, vector<8x8xbf16>, vector<8x8xf32> -> vector<8x8xf32>
    %109 = vector.extract_strided_slice %24 {offsets = [16, 0], sizes = [8, 32], strides = [1, 1]} : vector<32x32xf32> to vector<8x32xf32>
    %110 = arith.truncf %108 : vector<8x8xf32> to vector<8x8xbf16>
    %111 = arith.truncf %109 : vector<8x32xf32> to vector<8x32xbf16>
    %cst_55 = arith.constant dense<0.000000e+00> : vector<8x32xf32>
    %112 = tpu.matmul %110, %111, %cst_55 {dimension_numbers = #tpu.dot_dimension_numbers<[1], [0], [0], [1], [0, 0, 1, 1], [], []>} : vector<8x8xbf16>, vector<8x32xbf16>, vector<8x32xf32> -> vector<8x32xf32>
    %113 = arith.addf %85, %112 : vector<8x32xf32>
    %114 = vector.extract_strided_slice %20 {offsets = [0, 24], sizes = [8, 8], strides = [1, 1]} : vector<8x32xf32> to vector<8x8xf32>
    %115 = vector.extract_strided_slice %21 {offsets = [0, 24], sizes = [8, 8], strides = [1, 1]} : vector<8x32xf32> to vector<8x8xf32>
    %116 = vector.extract_strided_slice %22 {offsets = [0, 24], sizes = [8, 8], strides = [1, 1]} : vector<8x32xf32> to vector<8x8xf32>
    %cst_56 = arith.constant dense<0.000000e+00> : vector<8x8xf32>
    %117 = tpu.matmul %114, %115, %cst_56 {dimension_numbers = #tpu.dot_dimension_numbers<[1], [1], [0], [0], [0, 0, 1, 0], [], []>} : vector<8x8xf32>, vector<8x8xf32>, vector<8x8xf32> -> vector<8x8xf32>
    %cst_57 = arith.constant 0.353553385 : f32
    %118 = vector.broadcast %cst_57 : f32 to vector<8x8xf32>
    %119 = arith.mulf %117, %118 : vector<8x8xf32>
    %120 = arith.addf %119, %29 : vector<8x8xf32>
    %cst_58 = arith.constant dense<0xFF800000> : vector<8xf32>
    %121 = vector.multi_reduction <maximumf>, %120, %cst_58 [1] : vector<8x8xf32> to vector<8xf32>
    %122 = vector.shape_cast %121 : vector<8xf32> to vector<8x1xf32>
    %123 = vector.broadcast %122 : vector<8x1xf32> to vector<8x8xf32>
    %124 = arith.subf %120, %123 : vector<8x8xf32>
    %125 = math.exp %124 : vector<8x8xf32>
    %cst_59 = arith.constant dense<0.000000e+00> : vector<8xf32>
    %126 = vector.multi_reduction <add>, %125, %cst_59 [1] : vector<8x8xf32> to vector<8xf32>
    %127 = vector.shape_cast %126 : vector<8xf32> to vector<8x1xf32>
    %128 = tpu.reciprocal %127 {approx = true} : vector<8x1xf32> -> vector<8x1xf32>
    %129 = vector.broadcast %128 : vector<8x1xf32> to vector<8x8xf32>
    %130 = arith.mulf %125, %129 : vector<8x8xf32>
    %c0_60 = arith.constant 0 : index
    %c3 = arith.constant 3 : index
    %c0_61 = arith.constant 0 : index
    %c0_62 = arith.constant 0 : index
    %131 = vector.load %arg27[%c0_60, %c3, %c0_61, %c0_62] : memref<1x4x8x8xf32, #tpu.memory_space<vmem>>, vector<1x1x8x8xf32>
    %132 = vector.shape_cast %131 : vector<1x1x8x8xf32> to vector<8x8xf32>
    %133 = vector.shape_cast %130 : vector<8x8xf32> to vector<1x1x8x8xf32>
    tpu.vector_store %arg27[%c0_60, %c3, %c0_61, %c0_62], %133 {strides = array<i32>} : memref<1x4x8x8xf32, #tpu.memory_space<vmem>>, vector<1x1x8x8xf32>,
    %134 = arith.truncf %130 : vector<8x8xf32> to vector<8x8xbf16>
    %135 = arith.truncf %116 : vector<8x8xf32> to vector<8x8xbf16>
    %cst_63 = arith.constant dense<0.000000e+00> : vector<8x8xf32>
    %136 = tpu.matmul %134, %135, %cst_63 {dimension_numbers = #tpu.dot_dimension_numbers<[1], [0], [0], [1], [0, 0, 1, 1], [], []>} : vector<8x8xbf16>, vector<8x8xbf16>, vector<8x8xf32> -> vector<8x8xf32>
    %137 = vector.extract_strided_slice %24 {offsets = [24, 0], sizes = [8, 32], strides = [1, 1]} : vector<32x32xf32> to vector<8x32xf32>
    %138 = arith.truncf %136 : vector<8x8xf32> to vector<8x8xbf16>
    %139 = arith.truncf %137 : vector<8x32xf32> to vector<8x32xbf16>
    %cst_64 = arith.constant dense<0.000000e+00> : vector<8x32xf32>
    %140 = tpu.matmul %138, %139, %cst_64 {dimension_numbers = #tpu.dot_dimension_numbers<[1], [0], [0], [1], [0, 0, 1, 1], [], []>} : vector<8x8xbf16>, vector<8x32xbf16>, vector<8x32xf32> -> vector<8x32xf32>
    %141 = arith.addf %113, %140 : vector<8x32xf32>
    %142 = vector.broadcast %26 : vector<1x32xf32> to vector<8x32xf32>
    %143 = arith.addf %141, %142 : vector<8x32xf32>
    %c0_65 = arith.constant 0 : index
    %c0_66 = arith.constant 0 : index
    %c0_67 = arith.constant 0 : index
    %144 = vector.load %arg10[%c0_65, %c0_66, %c0_67] : memref<1x1x32xf32, #tpu.memory_space<vmem>>, vector<1x1x32xf32>
    %145 = vector.shape_cast %144 : vector<1x1x32xf32> to vector<1x32xf32>
    %c0_68 = arith.constant 0 : index
    %c0_69 = arith.constant 0 : index
    %c0_70 = arith.constant 0 : index
    %146 = vector.load %arg11[%c0_68, %c0_69, %c0_70] : memref<1x1x32xf32, #tpu.memory_space<vmem>>, vector<1x1x32xf32>
    %147 = vector.shape_cast %146 : vector<1x1x32xf32> to vector<1x32xf32>
    %148 = arith.addf %4, %143 : vector<8x32xf32>
    %cst_71 = arith.constant dense<0.000000e+00> : vector<8xf32>
    %149 = vector.multi_reduction <add>, %148, %cst_71 [1] : vector<8x32xf32> to vector<8xf32>
    %150 = vector.shape_cast %149 : vector<8xf32> to vector<8x1xf32>
    %cst_72 = arith.constant 3.200000e+01 : f32
    %151 = vector.broadcast %cst_72 : f32 to vector<8x1xf32>
    %152 = arith.divf %150, %151 : vector<8x1xf32>
    %153 = vector.broadcast %152 : vector<8x1xf32> to vector<8x32xf32>
    %154 = arith.subf %148, %153 : vector<8x32xf32>
    %155 = arith.mulf %154, %154 : vector<8x32xf32>
    %cst_73 = arith.constant dense<0.000000e+00> : vector<8xf32>
    %156 = vector.multi_reduction <add>, %155, %cst_73 [1] : vector<8x32xf32> to vector<8xf32>
    %157 = vector.shape_cast %156 : vector<8xf32> to vector<8x1xf32>
    %cst_74 = arith.constant 3.200000e+01 : f32
    %158 = vector.broadcast %cst_74 : f32 to vector<8x1xf32>
    %159 = arith.divf %157, %158 : vector<8x1xf32>
    %cst_75 = arith.constant 9.99999997E-7 : f32
    %160 = vector.broadcast %cst_75 : f32 to vector<8x1xf32>
    %161 = arith.addf %159, %160 : vector<8x1xf32>
    %162 = math.rsqrt %161 : vector<8x1xf32>
    %163 = vector.broadcast %162 : vector<8x1xf32> to vector<8x32xf32>
    %164 = arith.mulf %154, %163 : vector<8x32xf32>
    %165 = vector.broadcast %145 : vector<1x32xf32> to vector<8x32xf32>
    %166 = arith.mulf %164, %165 : vector<8x32xf32>
    %167 = vector.broadcast %147 : vector<1x32xf32> to vector<8x32xf32>
    %168 = arith.addf %166, %167 : vector<8x32xf32>
    %c0_76 = arith.constant 0 : index
    %c0_77 = arith.constant 0 : index
    %c0_78 = arith.constant 0 : index
    %169 = vector.load %arg12[%c0_76, %c0_77, %c0_78] : memref<1x32x32xf32, #tpu.memory_space<vmem>>, vector<1x32x32xf32>
    %170 = vector.shape_cast %169 : vector<1x32x32xf32> to vector<32x32xf32>
    %171 = arith.truncf %168 : vector<8x32xf32> to vector<8x32xbf16>
    %172 = arith.truncf %170 : vector<32x32xf32> to vector<32x32xbf16>
    %cst_79 = arith.constant dense<0.000000e+00> : vector<8x32xf32>
    %173 = tpu.matmul %171, %172, %cst_79 {dimension_numbers = #tpu.dot_dimension_numbers<[1], [0], [0], [1], [0, 0, 1, 1], [], []>} : vector<8x32xbf16>, vector<32x32xbf16>, vector<8x32xf32> -> vector<8x32xf32>
    %c0_80 = arith.constant 0 : index
    %c0_81 = arith.constant 0 : index
    %c0_82 = arith.constant 0 : index
    %174 = vector.load %arg13[%c0_80, %c0_81, %c0_82] : memref<1x1x32xf32, #tpu.memory_space<vmem>>, vector<1x1x32xf32>
    %175 = vector.shape_cast %174 : vector<1x1x32xf32> to vector<1x32xf32>
    %176 = vector.broadcast %175 : vector<1x32xf32> to vector<8x32xf32>
    %177 = arith.addf %173, %176 : vector<8x32xf32>
    %c0_83 = arith.constant 0 : index
    %c0_84 = arith.constant 0 : index
    %c0_85 = arith.constant 0 : index
    %178 = vector.load %arg14[%c0_83, %c0_84, %c0_85] : memref<1x32x64xf32, #tpu.memory_space<vmem>>, vector<1x32x64xf32>
    %179 = vector.shape_cast %178 : vector<1x32x64xf32> to vector<32x64xf32>
    %180 = arith.truncf %6 : vector<8x32xf32> to vector<8x32xbf16>
    %181 = arith.truncf %179 : vector<32x64xf32> to vector<32x64xbf16>
    %cst_86 = arith.constant dense<0.000000e+00> : vector<8x64xf32>
    %182 = tpu.matmul %180, %181, %cst_86 {dimension_numbers = #tpu.dot_dimension_numbers<[1], [0], [0], [1], [0, 0, 1, 1], [], []>} : vector<8x32xbf16>, vector<32x64xbf16>, vector<8x64xf32> -> vector<8x64xf32>
    %c0_87 = arith.constant 0 : index
    %c0_88 = arith.constant 0 : index
    %c0_89 = arith.constant 0 : index
    %183 = vector.load %arg15[%c0_87, %c0_88, %c0_89] : memref<1x1x64xf32, #tpu.memory_space<vmem>>, vector<1x1x64xf32>
    %184 = vector.shape_cast %183 : vector<1x1x64xf32> to vector<1x64xf32>
    %185 = vector.broadcast %184 : vector<1x64xf32> to vector<8x64xf32>
    %186 = arith.addf %182, %185 : vector<8x64xf32>
    %187 = vector.extract_strided_slice %186 {offsets = [0, 0], sizes = [8, 32], strides = [1, 1]} : vector<8x64xf32> to vector<8x32xf32>
    %188 = vector.extract_strided_slice %186 {offsets = [0, 32], sizes = [8, 32], strides = [1, 1]} : vector<8x64xf32> to vector<8x32xf32>
    %c0_90 = arith.constant 0 : index
    %c0_91 = arith.constant 0 : index
    %c0_92 = arith.constant 0 : index
    %189 = vector.load %arg16[%c0_90, %c0_91, %c0_92] : memref<1x32x32xf32, #tpu.memory_space<vmem>>, vector<1x32x32xf32>
    %190 = vector.shape_cast %189 : vector<1x32x32xf32> to vector<32x32xf32>
    %c0_93 = arith.constant 0 : index
    %c0_94 = arith.constant 0 : index
    %c0_95 = arith.constant 0 : index
    %191 = vector.load %arg17[%c0_93, %c0_94, %c0_95] : memref<1x1x32xf32, #tpu.memory_space<vmem>>, vector<1x1x32xf32>
    %192 = vector.shape_cast %191 : vector<1x1x32xf32> to vector<1x32xf32>
    %cst_96 = arith.constant 0.000000e+00 : f32
    %193 = vector.broadcast %cst_96 : f32 to vector<8x32xf32>
    %cst_97 = arith.constant -1.000000e+09 : f32
    %194 = vector.broadcast %cst_97 : f32 to vector<1x8xf32>
    %195 = arith.mulf %10, %194 : vector<1x8xf32>
    %196 = vector.extract_strided_slice %177 {offsets = [0, 0], sizes = [8, 8], strides = [1, 1]} : vector<8x32xf32> to vector<8x8xf32>
    %197 = vector.extract_strided_slice %187 {offsets = [0, 0], sizes = [8, 8], strides = [1, 1]} : vector<8x32xf32> to vector<8x8xf32>
    %198 = vector.extract_strided_slice %188 {offsets = [0, 0], sizes = [8, 8], strides = [1, 1]} : vector<8x32xf32> to vector<8x8xf32>
    %cst_98 = arith.constant dense<0.000000e+00> : vector<8x8xf32>
    %199 = tpu.matmul %196, %197, %cst_98 {dimension_numbers = #tpu.dot_dimension_numbers<[1], [1], [0], [0], [0, 0, 1, 0], [], []>} : vector<8x8xf32>, vector<8x8xf32>, vector<8x8xf32> -> vector<8x8xf32>
    %cst_99 = arith.constant 0.353553385 : f32
    %200 = vector.broadcast %cst_99 : f32 to vector<8x8xf32>
    %201 = arith.mulf %199, %200 : vector<8x8xf32>
    %202 = vector.broadcast %195 : vector<1x8xf32> to vector<8x8xf32>
    %203 = arith.addf %201, %202 : vector<8x8xf32>
    %cst_100 = arith.constant dense<0xFF800000> : vector<8xf32>
    %204 = vector.multi_reduction <maximumf>, %203, %cst_100 [1] : vector<8x8xf32> to vector<8xf32>
    %205 = vector.shape_cast %204 : vector<8xf32> to vector<8x1xf32>
    %206 = vector.broadcast %205 : vector<8x1xf32> to vector<8x8xf32>
    %207 = arith.subf %203, %206 : vector<8x8xf32>
    %208 = math.exp %207 : vector<8x8xf32>
    %cst_101 = arith.constant dense<0.000000e+00> : vector<8xf32>
    %209 = vector.multi_reduction <add>, %208, %cst_101 [1] : vector<8x8xf32> to vector<8xf32>
    %210 = vector.shape_cast %209 : vector<8xf32> to vector<8x1xf32>
    %211 = tpu.reciprocal %210 {approx = true} : vector<8x1xf32> -> vector<8x1xf32>
    %212 = vector.broadcast %211 : vector<8x1xf32> to vector<8x8xf32>
    %213 = arith.mulf %208, %212 : vector<8x8xf32>
    %c0_102 = arith.constant 0 : index
    %c0_103 = arith.constant 0 : index
    %c0_104 = arith.constant 0 : index
    %c0_105 = arith.constant 0 : index
    %214 = vector.load %arg28[%c0_102, %c0_103, %c0_104, %c0_105] : memref<1x4x8x8xf32, #tpu.memory_space<vmem>>, vector<1x1x8x8xf32>
    %215 = vector.shape_cast %214 : vector<1x1x8x8xf32> to vector<8x8xf32>
    %216 = vector.shape_cast %213 : vector<8x8xf32> to vector<1x1x8x8xf32>
    tpu.vector_store %arg28[%c0_102, %c0_103, %c0_104, %c0_105], %216 {strides = array<i32>} : memref<1x4x8x8xf32, #tpu.memory_space<vmem>>, vector<1x1x8x8xf32>,
    %217 = arith.truncf %213 : vector<8x8xf32> to vector<8x8xbf16>
    %218 = arith.truncf %198 : vector<8x8xf32> to vector<8x8xbf16>
    %cst_106 = arith.constant dense<0.000000e+00> : vector<8x8xf32>
    %219 = tpu.matmul %217, %218, %cst_106 {dimension_numbers = #tpu.dot_dimension_numbers<[1], [0], [0], [1], [0, 0, 1, 1], [], []>} : vector<8x8xbf16>, vector<8x8xbf16>, vector<8x8xf32> -> vector<8x8xf32>
    %220 = vector.extract_strided_slice %190 {offsets = [0, 0], sizes = [8, 32], strides = [1, 1]} : vector<32x32xf32> to vector<8x32xf32>
    %221 = arith.truncf %219 : vector<8x8xf32> to vector<8x8xbf16>
    %222 = arith.truncf %220 : vector<8x32xf32> to vector<8x32xbf16>
    %cst_107 = arith.constant dense<0.000000e+00> : vector<8x32xf32>
    %223 = tpu.matmul %221, %222, %cst_107 {dimension_numbers = #tpu.dot_dimension_numbers<[1], [0], [0], [1], [0, 0, 1, 1], [], []>} : vector<8x8xbf16>, vector<8x32xbf16>, vector<8x32xf32> -> vector<8x32xf32>
    %224 = arith.addf %193, %223 : vector<8x32xf32>
    %225 = vector.extract_strided_slice %177 {offsets = [0, 8], sizes = [8, 8], strides = [1, 1]} : vector<8x32xf32> to vector<8x8xf32>
    %226 = vector.extract_strided_slice %187 {offsets = [0, 8], sizes = [8, 8], strides = [1, 1]} : vector<8x32xf32> to vector<8x8xf32>
    %227 = vector.extract_strided_slice %188 {offsets = [0, 8], sizes = [8, 8], strides = [1, 1]} : vector<8x32xf32> to vector<8x8xf32>
    %cst_108 = arith.constant dense<0.000000e+00> : vector<8x8xf32>
    %228 = tpu.matmul %225, %226, %cst_108 {dimension_numbers = #tpu.dot_dimension_numbers<[1], [1], [0], [0], [0, 0, 1, 0], [], []>} : vector<8x8xf32>, vector<8x8xf32>, vector<8x8xf32> -> vector<8x8xf32>
    %cst_109 = arith.constant 0.353553385 : f32
    %229 = vector.broadcast %cst_109 : f32 to vector<8x8xf32>
    %230 = arith.mulf %228, %229 : vector<8x8xf32>
    %231 = vector.broadcast %195 : vector<1x8xf32> to vector<8x8xf32>
    %232 = arith.addf %230, %231 : vector<8x8xf32>
    %cst_110 = arith.constant dense<0xFF800000> : vector<8xf32>
    %233 = vector.multi_reduction <maximumf>, %232, %cst_110 [1] : vector<8x8xf32> to vector<8xf32>
    %234 = vector.shape_cast %233 : vector<8xf32> to vector<8x1xf32>
    %235 = vector.broadcast %234 : vector<8x1xf32> to vector<8x8xf32>
    %236 = arith.subf %232, %235 : vector<8x8xf32>
    %237 = math.exp %236 : vector<8x8xf32>
    %cst_111 = arith.constant dense<0.000000e+00> : vector<8xf32>
    %238 = vector.multi_reduction <add>, %237, %cst_111 [1] : vector<8x8xf32> to vector<8xf32>
    %239 = vector.shape_cast %238 : vector<8xf32> to vector<8x1xf32>
    %240 = tpu.reciprocal %239 {approx = true} : vector<8x1xf32> -> vector<8x1xf32>
    %241 = vector.broadcast %240 : vector<8x1xf32> to vector<8x8xf32>
    %242 = arith.mulf %237, %241 : vector<8x8xf32>
    %c0_112 = arith.constant 0 : index
    %c1_113 = arith.constant 1 : index
    %c0_114 = arith.constant 0 : index
    %c0_115 = arith.constant 0 : index
    %243 = vector.load %arg28[%c0_112, %c1_113, %c0_114, %c0_115] : memref<1x4x8x8xf32, #tpu.memory_space<vmem>>, vector<1x1x8x8xf32>
    %244 = vector.shape_cast %243 : vector<1x1x8x8xf32> to vector<8x8xf32>
    %245 = vector.shape_cast %242 : vector<8x8xf32> to vector<1x1x8x8xf32>
    tpu.vector_store %arg28[%c0_112, %c1_113, %c0_114, %c0_115], %245 {strides = array<i32>} : memref<1x4x8x8xf32, #tpu.memory_space<vmem>>, vector<1x1x8x8xf32>,
    %246 = arith.truncf %242 : vector<8x8xf32> to vector<8x8xbf16>
    %247 = arith.truncf %227 : vector<8x8xf32> to vector<8x8xbf16>
    %cst_116 = arith.constant dense<0.000000e+00> : vector<8x8xf32>
    %248 = tpu.matmul %246, %247, %cst_116 {dimension_numbers = #tpu.dot_dimension_numbers<[1], [0], [0], [1], [0, 0, 1, 1], [], []>} : vector<8x8xbf16>, vector<8x8xbf16>, vector<8x8xf32> -> vector<8x8xf32>
    %249 = vector.extract_strided_slice %190 {offsets = [8, 0], sizes = [8, 32], strides = [1, 1]} : vector<32x32xf32> to vector<8x32xf32>
    %250 = arith.truncf %248 : vector<8x8xf32> to vector<8x8xbf16>
    %251 = arith.truncf %249 : vector<8x32xf32> to vector<8x32xbf16>
    %cst_117 = arith.constant dense<0.000000e+00> : vector<8x32xf32>
    %252 = tpu.matmul %250, %251, %cst_117 {dimension_numbers = #tpu.dot_dimension_numbers<[1], [0], [0], [1], [0, 0, 1, 1], [], []>} : vector<8x8xbf16>, vector<8x32xbf16>, vector<8x32xf32> -> vector<8x32xf32>
    %253 = arith.addf %224, %252 : vector<8x32xf32>
    %254 = vector.extract_strided_slice %177 {offsets = [0, 16], sizes = [8, 8], strides = [1, 1]} : vector<8x32xf32> to vector<8x8xf32>
    %255 = vector.extract_strided_slice %187 {offsets = [0, 16], sizes = [8, 8], strides = [1, 1]} : vector<8x32xf32> to vector<8x8xf32>
    %256 = vector.extract_strided_slice %188 {offsets = [0, 16], sizes = [8, 8], strides = [1, 1]} : vector<8x32xf32> to vector<8x8xf32>
    %cst_118 = arith.constant dense<0.000000e+00> : vector<8x8xf32>
    %257 = tpu.matmul %254, %255, %cst_118 {dimension_numbers = #tpu.dot_dimension_numbers<[1], [1], [0], [0], [0, 0, 1, 0], [], []>} : vector<8x8xf32>, vector<8x8xf32>, vector<8x8xf32> -> vector<8x8xf32>
    %cst_119 = arith.constant 0.353553385 : f32
    %258 = vector.broadcast %cst_119 : f32 to vector<8x8xf32>
    %259 = arith.mulf %257, %258 : vector<8x8xf32>
    %260 = vector.broadcast %195 : vector<1x8xf32> to vector<8x8xf32>
    %261 = arith.addf %259, %260 : vector<8x8xf32>
    %cst_120 = arith.constant dense<0xFF800000> : vector<8xf32>
    %262 = vector.multi_reduction <maximumf>, %261, %cst_120 [1] : vector<8x8xf32> to vector<8xf32>
    %263 = vector.shape_cast %262 : vector<8xf32> to vector<8x1xf32>
    %264 = vector.broadcast %263 : vector<8x1xf32> to vector<8x8xf32>
    %265 = arith.subf %261, %264 : vector<8x8xf32>
    %266 = math.exp %265 : vector<8x8xf32>
    %cst_121 = arith.constant dense<0.000000e+00> : vector<8xf32>
    %267 = vector.multi_reduction <add>, %266, %cst_121 [1] : vector<8x8xf32> to vector<8xf32>
    %268 = vector.shape_cast %267 : vector<8xf32> to vector<8x1xf32>
    %269 = tpu.reciprocal %268 {approx = true} : vector<8x1xf32> -> vector<8x1xf32>
    %270 = vector.broadcast %269 : vector<8x1xf32> to vector<8x8xf32>
    %271 = arith.mulf %266, %270 : vector<8x8xf32>
    %c0_122 = arith.constant 0 : index
    %c2_123 = arith.constant 2 : index
    %c0_124 = arith.constant 0 : index
    %c0_125 = arith.constant 0 : index
    %272 = vector.load %arg28[%c0_122, %c2_123, %c0_124, %c0_125] : memref<1x4x8x8xf32, #tpu.memory_space<vmem>>, vector<1x1x8x8xf32>
    %273 = vector.shape_cast %272 : vector<1x1x8x8xf32> to vector<8x8xf32>
    %274 = vector.shape_cast %271 : vector<8x8xf32> to vector<1x1x8x8xf32>
    tpu.vector_store %arg28[%c0_122, %c2_123, %c0_124, %c0_125], %274 {strides = array<i32>} : memref<1x4x8x8xf32, #tpu.memory_space<vmem>>, vector<1x1x8x8xf32>,
    %275 = arith.truncf %271 : vector<8x8xf32> to vector<8x8xbf16>
    %276 = arith.truncf %256 : vector<8x8xf32> to vector<8x8xbf16>
    %cst_126 = arith.constant dense<0.000000e+00> : vector<8x8xf32>
    %277 = tpu.matmul %275, %276, %cst_126 {dimension_numbers = #tpu.dot_dimension_numbers<[1], [0], [0], [1], [0, 0, 1, 1], [], []>} : vector<8x8xbf16>, vector<8x8xbf16>, vector<8x8xf32> -> vector<8x8xf32>
    %278 = vector.extract_strided_slice %190 {offsets = [16, 0], sizes = [8, 32], strides = [1, 1]} : vector<32x32xf32> to vector<8x32xf32>
    %279 = arith.truncf %277 : vector<8x8xf32> to vector<8x8xbf16>
    %280 = arith.truncf %278 : vector<8x32xf32> to vector<8x32xbf16>
    %cst_127 = arith.constant dense<0.000000e+00> : vector<8x32xf32>
    %281 = tpu.matmul %279, %280, %cst_127 {dimension_numbers = #tpu.dot_dimension_numbers<[1], [0], [0], [1], [0, 0, 1, 1], [], []>} : vector<8x8xbf16>, vector<8x32xbf16>, vector<8x32xf32> -> vector<8x32xf32>
    %282 = arith.addf %253, %281 : vector<8x32xf32>
    %283 = vector.extract_strided_slice %177 {offsets = [0, 24], sizes = [8, 8], strides = [1, 1]} : vector<8x32xf32> to vector<8x8xf32>
    %284 = vector.extract_strided_slice %187 {offsets = [0, 24], sizes = [8, 8], strides = [1, 1]} : vector<8x32xf32> to vector<8x8xf32>
    %285 = vector.extract_strided_slice %188 {offsets = [0, 24], sizes = [8, 8], strides = [1, 1]} : vector<8x32xf32> to vector<8x8xf32>
    %cst_128 = arith.constant dense<0.000000e+00> : vector<8x8xf32>
    %286 = tpu.matmul %283, %284, %cst_128 {dimension_numbers = #tpu.dot_dimension_numbers<[1], [1], [0], [0], [0, 0, 1, 0], [], []>} : vector<8x8xf32>, vector<8x8xf32>, vector<8x8xf32> -> vector<8x8xf32>
    %cst_129 = arith.constant 0.353553385 : f32
    %287 = vector.broadcast %cst_129 : f32 to vector<8x8xf32>
    %288 = arith.mulf %286, %287 : vector<8x8xf32>
    %289 = vector.broadcast %195 : vector<1x8xf32> to vector<8x8xf32>
    %290 = arith.addf %288, %289 : vector<8x8xf32>
    %cst_130 = arith.constant dense<0xFF800000> : vector<8xf32>
    %291 = vector.multi_reduction <maximumf>, %290, %cst_130 [1] : vector<8x8xf32> to vector<8xf32>
    %292 = vector.shape_cast %291 : vector<8xf32> to vector<8x1xf32>
    %293 = vector.broadcast %292 : vector<8x1xf32> to vector<8x8xf32>
    %294 = arith.subf %290, %293 : vector<8x8xf32>
    %295 = math.exp %294 : vector<8x8xf32>
    %cst_131 = arith.constant dense<0.000000e+00> : vector<8xf32>
    %296 = vector.multi_reduction <add>, %295, %cst_131 [1] : vector<8x8xf32> to vector<8xf32>
    %297 = vector.shape_cast %296 : vector<8xf32> to vector<8x1xf32>
    %298 = tpu.reciprocal %297 {approx = true} : vector<8x1xf32> -> vector<8x1xf32>
    %299 = vector.broadcast %298 : vector<8x1xf32> to vector<8x8xf32>
    %300 = arith.mulf %295, %299 : vector<8x8xf32>
    %c0_132 = arith.constant 0 : index
    %c3_133 = arith.constant 3 : index
    %c0_134 = arith.constant 0 : index
    %c0_135 = arith.constant 0 : index
    %301 = vector.load %arg28[%c0_132, %c3_133, %c0_134, %c0_135] : memref<1x4x8x8xf32, #tpu.memory_space<vmem>>, vector<1x1x8x8xf32>
    %302 = vector.shape_cast %301 : vector<1x1x8x8xf32> to vector<8x8xf32>
    %303 = vector.shape_cast %300 : vector<8x8xf32> to vector<1x1x8x8xf32>
    tpu.vector_store %arg28[%c0_132, %c3_133, %c0_134, %c0_135], %303 {strides = array<i32>} : memref<1x4x8x8xf32, #tpu.memory_space<vmem>>, vector<1x1x8x8xf32>,
    %304 = arith.truncf %300 : vector<8x8xf32> to vector<8x8xbf16>
    %305 = arith.truncf %285 : vector<8x8xf32> to vector<8x8xbf16>
    %cst_136 = arith.constant dense<0.000000e+00> : vector<8x8xf32>
    %306 = tpu.matmul %304, %305, %cst_136 {dimension_numbers = #tpu.dot_dimension_numbers<[1], [0], [0], [1], [0, 0, 1, 1], [], []>} : vector<8x8xbf16>, vector<8x8xbf16>, vector<8x8xf32> -> vector<8x8xf32>
    %307 = vector.extract_strided_slice %190 {offsets = [24, 0], sizes = [8, 32], strides = [1, 1]} : vector<32x32xf32> to vector<8x32xf32>
    %308 = arith.truncf %306 : vector<8x8xf32> to vector<8x8xbf16>
    %309 = arith.truncf %307 : vector<8x32xf32> to vector<8x32xbf16>
    %cst_137 = arith.constant dense<0.000000e+00> : vector<8x32xf32>
    %310 = tpu.matmul %308, %309, %cst_137 {dimension_numbers = #tpu.dot_dimension_numbers<[1], [0], [0], [1], [0, 0, 1, 1], [], []>} : vector<8x8xbf16>, vector<8x32xbf16>, vector<8x32xf32> -> vector<8x32xf32>
    %311 = arith.addf %282, %310 : vector<8x32xf32>
    %312 = vector.broadcast %192 : vector<1x32xf32> to vector<8x32xf32>
    %313 = arith.addf %311, %312 : vector<8x32xf32>
    %c0_138 = arith.constant 0 : index
    %c0_139 = arith.constant 0 : index
    %c0_140 = arith.constant 0 : index
    %314 = vector.load %arg18[%c0_138, %c0_139, %c0_140] : memref<1x1x32xf32, #tpu.memory_space<vmem>>, vector<1x1x32xf32>
    %315 = vector.shape_cast %314 : vector<1x1x32xf32> to vector<1x32xf32>
    %c0_141 = arith.constant 0 : index
    %c0_142 = arith.constant 0 : index
    %c0_143 = arith.constant 0 : index
    %316 = vector.load %arg19[%c0_141, %c0_142, %c0_143] : memref<1x1x32xf32, #tpu.memory_space<vmem>>, vector<1x1x32xf32>
    %317 = vector.shape_cast %316 : vector<1x1x32xf32> to vector<1x32xf32>
    %318 = arith.addf %168, %313 : vector<8x32xf32>
    %cst_144 = arith.constant dense<0.000000e+00> : vector<8xf32>
    %319 = vector.multi_reduction <add>, %318, %cst_144 [1] : vector<8x32xf32> to vector<8xf32>
    %320 = vector.shape_cast %319 : vector<8xf32> to vector<8x1xf32>
    %cst_145 = arith.constant 3.200000e+01 : f32
    %321 = vector.broadcast %cst_145 : f32 to vector<8x1xf32>
    %322 = arith.divf %320, %321 : vector<8x1xf32>
    %323 = vector.broadcast %322 : vector<8x1xf32> to vector<8x32xf32>
    %324 = arith.subf %318, %323 : vector<8x32xf32>
    %325 = arith.mulf %324, %324 : vector<8x32xf32>
    %cst_146 = arith.constant dense<0.000000e+00> : vector<8xf32>
    %326 = vector.multi_reduction <add>, %325, %cst_146 [1] : vector<8x32xf32> to vector<8xf32>
    %327 = vector.shape_cast %326 : vector<8xf32> to vector<8x1xf32>
    %cst_147 = arith.constant 3.200000e+01 : f32
    %328 = vector.broadcast %cst_147 : f32 to vector<8x1xf32>
    %329 = arith.divf %327, %328 : vector<8x1xf32>
    %cst_148 = arith.constant 9.99999997E-7 : f32
    %330 = vector.broadcast %cst_148 : f32 to vector<8x1xf32>
    %331 = arith.addf %329, %330 : vector<8x1xf32>
    %332 = math.rsqrt %331 : vector<8x1xf32>
    %333 = vector.broadcast %332 : vector<8x1xf32> to vector<8x32xf32>
    %334 = arith.mulf %324, %333 : vector<8x32xf32>
    %335 = vector.broadcast %315 : vector<1x32xf32> to vector<8x32xf32>
    %336 = arith.mulf %334, %335 : vector<8x32xf32>
    %337 = vector.broadcast %317 : vector<1x32xf32> to vector<8x32xf32>
    %338 = arith.addf %336, %337 : vector<8x32xf32>
    %c0_149 = arith.constant 0 : index
    %c0_150 = arith.constant 0 : index
    %c0_151 = arith.constant 0 : index
    %339 = vector.load %arg20[%c0_149, %c0_150, %c0_151] : memref<1x32x64xf32, #tpu.memory_space<vmem>>, vector<1x32x64xf32>
    %340 = vector.shape_cast %339 : vector<1x32x64xf32> to vector<32x64xf32>
    %341 = arith.truncf %338 : vector<8x32xf32> to vector<8x32xbf16>
    %342 = arith.truncf %340 : vector<32x64xf32> to vector<32x64xbf16>
    %cst_152 = arith.constant dense<0.000000e+00> : vector<8x64xf32>
    %343 = tpu.matmul %341, %342, %cst_152 {dimension_numbers = #tpu.dot_dimension_numbers<[1], [0], [0], [1], [0, 0, 1, 1], [], []>} : vector<8x32xbf16>, vector<32x64xbf16>, vector<8x64xf32> -> vector<8x64xf32>
    %c0_153 = arith.constant 0 : index
    %c0_154 = arith.constant 0 : index
    %c0_155 = arith.constant 0 : index
    %344 = vector.load %arg21[%c0_153, %c0_154, %c0_155] : memref<1x1x64xf32, #tpu.memory_space<vmem>>, vector<1x1x64xf32>
    %345 = vector.shape_cast %344 : vector<1x1x64xf32> to vector<1x64xf32>
    %346 = vector.broadcast %345 : vector<1x64xf32> to vector<8x64xf32>
    %347 = arith.addf %343, %346 : vector<8x64xf32>
    %cst_156 = arith.constant 0.000000e+00 : f32
    %348 = vector.broadcast %cst_156 : f32 to vector<8x64xf32>
    %349 = arith.maximumf %347, %348 : vector<8x64xf32>
    %c0_157 = arith.constant 0 : index
    %c0_158 = arith.constant 0 : index
    %c0_159 = arith.constant 0 : index
    %350 = vector.load %arg22[%c0_157, %c0_158, %c0_159] : memref<1x64x32xf32, #tpu.memory_space<vmem>>, vector<1x64x32xf32>
    %351 = vector.shape_cast %350 : vector<1x64x32xf32> to vector<64x32xf32>
    %352 = arith.truncf %349 : vector<8x64xf32> to vector<8x64xbf16>
    %353 = arith.truncf %351 : vector<64x32xf32> to vector<64x32xbf16>
    %cst_160 = arith.constant dense<0.000000e+00> : vector<8x32xf32>
    %354 = tpu.matmul %352, %353, %cst_160 {dimension_numbers = #tpu.dot_dimension_numbers<[1], [0], [0], [1], [0, 0, 1, 1], [], []>} : vector<8x64xbf16>, vector<64x32xbf16>, vector<8x32xf32> -> vector<8x32xf32>
    %c0_161 = arith.constant 0 : index
    %c0_162 = arith.constant 0 : index
    %c0_163 = arith.constant 0 : index
    %355 = vector.load %arg23[%c0_161, %c0_162, %c0_163] : memref<1x1x32xf32, #tpu.memory_space<vmem>>, vector<1x1x32xf32>
    %356 = vector.shape_cast %355 : vector<1x1x32xf32> to vector<1x32xf32>
    %357 = vector.broadcast %356 : vector<1x32xf32> to vector<8x32xf32>
    %358 = arith.addf %354, %357 : vector<8x32xf32>
    %c0_164 = arith.constant 0 : index
    %c0_165 = arith.constant 0 : index
    %c0_166 = arith.constant 0 : index
    %359 = vector.load %arg24[%c0_164, %c0_165, %c0_166] : memref<1x1x32xf32, #tpu.memory_space<vmem>>, vector<1x1x32xf32>
    %360 = vector.shape_cast %359 : vector<1x1x32xf32> to vector<1x32xf32>
    %c0_167 = arith.constant 0 : index
    %c0_168 = arith.constant 0 : index
    %c0_169 = arith.constant 0 : index
    %361 = vector.load %arg25[%c0_167, %c0_168, %c0_169] : memref<1x1x32xf32, #tpu.memory_space<vmem>>, vector<1x1x32xf32>
    %362 = vector.shape_cast %361 : vector<1x1x32xf32> to vector<1x32xf32>
    %363 = arith.addf %338, %358 : vector<8x32xf32>
    %cst_170 = arith.constant dense<0.000000e+00> : vector<8xf32>
    %364 = vector.multi_reduction <add>, %363, %cst_170 [1] : vector<8x32xf32> to vector<8xf32>
    %365 = vector.shape_cast %364 : vector<8xf32> to vector<8x1xf32>
    %cst_171 = arith.constant 3.200000e+01 : f32
    %366 = vector.broadcast %cst_171 : f32 to vector<8x1xf32>
    %367 = arith.divf %365, %366 : vector<8x1xf32>
    %368 = vector.broadcast %367 : vector<8x1xf32> to vector<8x32xf32>
    %369 = arith.subf %363, %368 : vector<8x32xf32>
    %370 = arith.mulf %369, %369 : vector<8x32xf32>
    %cst_172 = arith.constant dense<0.000000e+00> : vector<8xf32>
    %371 = vector.multi_reduction <add>, %370, %cst_172 [1] : vector<8x32xf32> to vector<8xf32>
    %372 = vector.shape_cast %371 : vector<8xf32> to vector<8x1xf32>
    %cst_173 = arith.constant 3.200000e+01 : f32
    %373 = vector.broadcast %cst_173 : f32 to vector<8x1xf32>
    %374 = arith.divf %372, %373 : vector<8x1xf32>
    %cst_174 = arith.constant 9.99999997E-7 : f32
    %375 = vector.broadcast %cst_174 : f32 to vector<8x1xf32>
    %376 = arith.addf %374, %375 : vector<8x1xf32>
    %377 = math.rsqrt %376 : vector<8x1xf32>
    %378 = vector.broadcast %377 : vector<8x1xf32> to vector<8x32xf32>
    %379 = arith.mulf %369, %378 : vector<8x32xf32>
    %380 = vector.broadcast %360 : vector<1x32xf32> to vector<8x32xf32>
    %381 = arith.mulf %379, %380 : vector<8x32xf32>
    %382 = vector.broadcast %362 : vector<1x32xf32> to vector<8x32xf32>
    %383 = arith.addf %381, %382 : vector<8x32xf32>
    %c0_175 = arith.constant 0 : index
    %c0_176 = arith.constant 0 : index
    %c0_177 = arith.constant 0 : index
    %384 = vector.load %arg26[%c0_175, %c0_176, %c0_177] : memref<1x8x32xf32, #tpu.memory_space<vmem>>, vector<1x8x32xf32>
    %385 = vector.shape_cast %384 : vector<1x8x32xf32> to vector<8x32xf32>
    %386 = vector.shape_cast %383 : vector<8x32xf32> to vector<1x8x32xf32>
    tpu.vector_store %arg26[%c0_175, %c0_176, %c0_177], %386 {strides = array<i32>} : memref<1x8x32xf32, #tpu.memory_space<vmem>>, vector<1x8x32xf32>,
    return
  }
  func.func @transform_0(%arg0: i32, %arg1: i32) -> (i32, i32, i32) {
    %c0_i32 = arith.constant 0 : i32
    %c0_i32_0 = arith.constant 0 : i32
    %c0_i32_1 = arith.constant 0 : i32
    return %arg0, %c0_i32, %c0_i32_0 : i32, i32, i32
  }
  func.func @transform_1(%arg0: i32, %arg1: i32) -> (i32, i32, i32) {
    %c0_i32 = arith.constant 0 : i32
    %c0_i32_0 = arith.constant 0 : i32
    %c0_i32_1 = arith.constant 0 : i32
    return %arg0, %c0_i32, %c0_i32_0 : i32, i32, i32
  }
  func.func @transform_2(%arg0: i32, %arg1: i32) -> (i32, i32, i32, i32) {
    %c0_i32 = arith.constant 0 : i32
    %c0_i32_0 = arith.constant 0 : i32
    %c0_i32_1 = arith.constant 0 : i32
    %c0_i32_2 = arith.constant 0 : i32
    %c0_i32_3 = arith.constant 0 : i32
    return %c0_i32, %c0_i32_0, %c0_i32_1, %c0_i32_2 : i32, i32, i32, i32
  }
  func.func @transform_3(%arg0: i32, %arg1: i32) -> (i32, i32, i32, i32) {
    %c0_i32 = arith.constant 0 : i32
    %c0_i32_0 = arith.constant 0 : i32
    %c0_i32_1 = arith.constant 0 : i32
    %c0_i32_2 = arith.constant 0 : i32
    return %arg0, %c0_i32, %c0_i32_0, %c0_i32_1 : i32, i32, i32, i32
  }
  func.func @transform_4(%arg0: i32, %arg1: i32) -> (i32, i32, i32) {
    %c0_i32 = arith.constant 0 : i32
    %c0_i32_0 = arith.constant 0 : i32
    %c0_i32_1 = arith.constant 0 : i32
    return %arg1, %c0_i32, %c0_i32_0 : i32, i32, i32
  }
  func.func @transform_5(%arg0: i32, %arg1: i32) -> (i32, i32, i32) {
    %c0_i32 = arith.constant 0 : i32
    %c0_i32_0 = arith.constant 0 : i32
    %c0_i32_1 = arith.constant 0 : i32
    return %arg1, %c0_i32, %c0_i32_0 : i32, i32, i32
  }
  func.func @transform_6(%arg0: i32, %arg1: i32) -> (i32, i32, i32) {
    %c0_i32 = arith.constant 0 : i32
    %c0_i32_0 = arith.constant 0 : i32
    %c0_i32_1 = arith.constant 0 : i32
    return %arg1, %c0_i32, %c0_i32_0 : i32, i32, i32
  }
  func.func @transform_7(%arg0: i32, %arg1: i32) -> (i32, i32, i32) {
    %c0_i32 = arith.constant 0 : i32
    %c0_i32_0 = arith.constant 0 : i32
    %c0_i32_1 = arith.constant 0 : i32
    return %arg1, %c0_i32, %c0_i32_0 : i32, i32, i32
  }
  func.func @transform_8(%arg0: i32, %arg1: i32) -> (i32, i32, i32) {
    %c0_i32 = arith.constant 0 : i32
    %c0_i32_0 = arith.constant 0 : i32
    %c0_i32_1 = arith.constant 0 : i32
    return %arg1, %c0_i32, %c0_i32_0 : i32, i32, i32
  }
  func.func @transform_9(%arg0: i32, %arg1: i32) -> (i32, i32, i32) {
    %c0_i32 = arith.constant 0 : i32
    %c0_i32_0 = arith.constant 0 : i32
    %c0_i32_1 = arith.constant 0 : i32
    return %arg1, %c0_i32, %c0_i32_0 : i32, i32, i32
  }
  func.func @transform_10(%arg0: i32, %arg1: i32) -> (i32, i32, i32) {
    %c0_i32 = arith.constant 0 : i32
    %c0_i32_0 = arith.constant 0 : i32
    %c0_i32_1 = arith.constant 0 : i32
    return %arg1, %c0_i32, %c0_i32_0 : i32, i32, i32
  }
  func.func @transform_11(%arg0: i32, %arg1: i32) -> (i32, i32, i32) {
    %c0_i32 = arith.constant 0 : i32
    %c0_i32_0 = arith.constant 0 : i32
    %c0_i32_1 = arith.constant 0 : i32
    return %arg1, %c0_i32, %c0_i32_0 : i32, i32, i32
  }
  func.func @transform_12(%arg0: i32, %arg1: i32) -> (i32, i32, i32) {
    %c0_i32 = arith.constant 0 : i32
    %c0_i32_0 = arith.constant 0 : i32
    %c0_i32_1 = arith.constant 0 : i32
    return %arg1, %c0_i32, %c0_i32_0 : i32, i32, i32
  }
  func.func @transform_13(%arg0: i32, %arg1: i32) -> (i32, i32, i32) {
    %c0_i32 = arith.constant 0 : i32
    %c0_i32_0 = arith.constant 0 : i32
    %c0_i32_1 = arith.constant 0 : i32
    return %arg1, %c0_i32, %c0_i32_0 : i32, i32, i32
  }
  func.func @transform_14(%arg0: i32, %arg1: i32) -> (i32, i32, i32) {
    %c0_i32 = arith.constant 0 : i32
    %c0_i32_0 = arith.constant 0 : i32
    %c0_i32_1 = arith.constant 0 : i32
    return %arg1, %c0_i32, %c0_i32_0 : i32, i32, i32
  }
  func.func @transform_15(%arg0: i32, %arg1: i32) -> (i32, i32, i32) {
    %c0_i32 = arith.constant 0 : i32
    %c0_i32_0 = arith.constant 0 : i32
    %c0_i32_1 = arith.constant 0 : i32
    return %arg1, %c0_i32, %c0_i32_0 : i32, i32, i32
  }
  func.func @transform_16(%arg0: i32, %arg1: i32) -> (i32, i32, i32) {
    %c0_i32 = arith.constant 0 : i32
    %c0_i32_0 = arith.constant 0 : i32
    %c0_i32_1 = arith.constant 0 : i32
    return %arg1, %c0_i32, %c0_i32_0 : i32, i32, i32
  }
  func.func @transform_17(%arg0: i32, %arg1: i32) -> (i32, i32, i32) {
    %c0_i32 = arith.constant 0 : i32
    %c0_i32_0 = arith.constant 0 : i32
    %c0_i32_1 = arith.constant 0 : i32
    return %arg1, %c0_i32, %c0_i32_0 : i32, i32, i32
  }
  func.func @transform_18(%arg0: i32, %arg1: i32) -> (i32, i32, i32) {
    %c0_i32 = arith.constant 0 : i32
    %c0_i32_0 = arith.constant 0 : i32
    %c0_i32_1 = arith.constant 0 : i32
    return %arg1, %c0_i32, %c0_i32_0 : i32, i32, i32
  }
  func.func @transform_19(%arg0: i32, %arg1: i32) -> (i32, i32, i32) {
    %c0_i32 = arith.constant 0 : i32
    %c0_i32_0 = arith.constant 0 : i32
    %c0_i32_1 = arith.constant 0 : i32
    return %arg1, %c0_i32, %c0_i32_0 : i32, i32, i32
  }
  func.func @transform_20(%arg0: i32, %arg1: i32) -> (i32, i32, i32) {
    %c0_i32 = arith.constant 0 : i32
    %c0_i32_0 = arith.constant 0 : i32
    %c0_i32_1 = arith.constant 0 : i32
    return %arg1, %c0_i32, %c0_i32_0 : i32, i32, i32
  }
  func.func @transform_21(%arg0: i32, %arg1: i32) -> (i32, i32, i32) {
    %c0_i32 = arith.constant 0 : i32
    %c0_i32_0 = arith.constant 0 : i32
    %c0_i32_1 = arith.constant 0 : i32
    return %arg1, %c0_i32, %c0_i32_0 : i32, i32, i32
  }
  func.func @transform_22(%arg0: i32, %arg1: i32) -> (i32, i32, i32) {
    %c0_i32 = arith.constant 0 : i32
    %c0_i32_0 = arith.constant 0 : i32
    %c0_i32_1 = arith.constant 0 : i32
    return %arg1, %c0_i32, %c0_i32_0 : i32, i32, i32
  }
  func.func @transform_23(%arg0: i32, %arg1: i32) -> (i32, i32, i32) {
    %c0_i32 = arith.constant 0 : i32
    %c0_i32_0 = arith.constant 0 : i32
    %c0_i32_1 = arith.constant 0 : i32
    return %arg1, %c0_i32, %c0_i32_0 : i32, i32, i32
  }
  func.func @transform_24(%arg0: i32, %arg1: i32) -> (i32, i32, i32) {
    %c0_i32 = arith.constant 0 : i32
    %c0_i32_0 = arith.constant 0 : i32
    %c0_i32_1 = arith.constant 0 : i32
    return %arg0, %c0_i32, %c0_i32_0 : i32, i32, i32
  }
  func.func @transform_25(%arg0: i32, %arg1: i32) -> (i32, i32, i32, i32) {
    %c2_i32 = arith.constant 2 : i32
    %0 = arith.muli %arg1, %c2_i32 : i32
    %1 = arith.addi %0, %arg0 : i32
    %c0_i32 = arith.constant 0 : i32
    %c0_i32_0 = arith.constant 0 : i32
    %c0_i32_1 = arith.constant 0 : i32
    %c0_i32_2 = arith.constant 0 : i32
    return %1, %c0_i32, %c0_i32_0, %c0_i32_1 : i32, i32, i32, i32
  }
  func.func @transform_26(%arg0: i32, %arg1: i32) -> (i32, i32, i32, i32) {
    %c2_i32 = arith.constant 2 : i32
    %0 = arith.muli %arg1, %c2_i32 : i32
    %1 = arith.addi %0, %arg0 : i32
    %c0_i32 = arith.constant 0 : i32
    %c0_i32_0 = arith.constant 0 : i32
    %c0_i32_1 = arith.constant 0 : i32
    %c0_i32_2 = arith.constant 0 : i32
    return %1, %c0_i32, %c0_i32_0, %c0_i32_1 : i32, i32, i32, i32
  }
}

</mosaic_0001>

<llo_original>
// kernel: decoder_forward.1
$region0: #{decoder_forward.1}
  #allocation0 [shape = 'u32[]', space=smem, size = 0x4, offset = 0x4, fixed_abs, tag = 'smem constant byte address 0x4 - core index']
  #allocation1 [shape = 'u32[144,128]{1,0:T(1,128)}', space=vmem, size = 0x12000, scoped, tag = 'internal scratch']
  %s0 = inlined_call_operand.vmem [shape: f32[2,8,32], index: 0, kind: input, shape index: {}]
  %s1 = inlined_call_operand.vmem [shape: f32[2,8,32], index: 1, kind: input, shape index: {}]
  %s2 = inlined_call_operand.vmem [shape: f32[1,1,8,8], index: 2, kind: input, shape index: {}]
  %s3 = inlined_call_operand.vmem [shape: f32[2,1,1,8], index: 3, kind: input, shape index: {}]
  %s4 = inlined_call_operand.vmem [shape: f32[2,32,96], index: 4, kind: input, shape index: {}]
  %s5 = inlined_call_operand.vmem [shape: f32[2,1,96], index: 5, kind: input, shape index: {}]
  %s6 = inlined_call_operand.vmem [shape: f32[2,32,32], index: 6, kind: input, shape index: {}]
  %s7 = inlined_call_operand.vmem [shape: f32[2,1,32], index: 7, kind: input, shape index: {}]
  %s8 = inlined_call_operand.vmem [shape: f32[2,1,32], index: 8, kind: input, shape index: {}]
  %s9 = inlined_call_operand.vmem [shape: f32[2,1,32], index: 9, kind: input, shape index: {}]
  %s10 = inlined_call_operand.vmem [shape: f32[2,32,32], index: 10, kind: input, shape index: {}]
  %s11 = inlined_call_operand.vmem [shape: f32[2,1,32], index: 11, kind: input, shape index: {}]
  %s12 = inlined_call_operand.vmem [shape: f32[2,32,64], index: 12, kind: input, shape index: {}]
  %s13 = inlined_call_operand.vmem [shape: f32[2,1,64], index: 13, kind: input, shape index: {}]
  %s14 = inlined_call_operand.vmem [shape: f32[2,32,32], index: 14, kind: input, shape index: {}]
  %s15 = inlined_call_operand.vmem [shape: f32[2,1,32], index: 15, kind: input, shape index: {}]
  %s16 = inlined_call_operand.vmem [shape: f32[2,1,32], index: 16, kind: input, shape index: {}]
  %s17 = inlined_call_operand.vmem [shape: f32[2,1,32], index: 17, kind: input, shape index: {}]
  %s18 = inlined_call_operand.vmem [shape: f32[2,32,64], index: 18, kind: input, shape index: {}]
  %s19 = inlined_call_operand.vmem [shape: f32[2,1,64], index: 19, kind: input, shape index: {}]
  %s20 = inlined_call_operand.vmem [shape: f32[2,64,32], index: 20, kind: input, shape index: {}]
  %s21 = inlined_call_operand.vmem [shape: f32[2,1,32], index: 21, kind: input, shape index: {}]
  %s22 = inlined_call_operand.vmem [shape: f32[2,1,32], index: 22, kind: input, shape index: {}]
  %s23 = inlined_call_operand.vmem [shape: f32[2,1,32], index: 23, kind: input, shape index: {}]
  %s24 = inlined_call_operand.hbm [shape: f32[2,8,32], index: 24, kind: output, shape index: {0}]
  %s25 = inlined_call_operand.vmem [shape: f32[4,4,8,8], index: 25, kind: output, shape index: {1}]
  %s26 = inlined_call_operand.vmem [shape: f32[4,4,8,8], index: 26, kind: output, shape index: {2}]
  %27 = xla_tuple %s24, %s25, %s26
  %s28 = sld [smem:[#allocation0]]
  $region149: #{decoder_forward.1} parent=0
    _
  %s30 = ssub.s32 1, %s28
  %s31 = scalar_select 0, %s30, %s28
  $region1: #{decoder_forward.1} parent=0
    #allocation2 [shape = 'u8[8192]{0}', space=vmem, size = 0x2000, scoped, tag = 'output window, operand 0']
    #allocation3 [shape = 's32[2]{0}', space=sflag, size = 0x8, scoped, tag = 'scoped memory for decoder_forward.1']
    %32 = vsyncpa [#allocation3], 0
    %s33 = scalar_lea.sflag [#allocation3], 1
    %34 = vsyncpa %s33, 0
    loop: start=0, step=1, limit=6
    $region2: #{decoder_forward.1} parent=1 // loop_pre_header
      _
    $region3: #{decoder_forward.1} parent=1 // loop_header
      %s36 = sphi 0, %s40
      %p37 = scmp.ge.s32.totalorder %s36, 6
      %s43 = sphi 0, %s55
      %s44 = sphi 0, %s51
      %s45 = sphi 0, %s43
      %s46 = sphi 0, %s44
      %s47 = sphi 0, %s45
      %s48 = sphi 0, %s46
      %s58 = sphi 0, %s60
      %s61 = sphi 0, %s58
      %s62 = sphi 0, %s61
      %s78 = sphi 0, %s62
      %s84 = sphi 0, %s86
      %s87 = sphi 0, %s84
      %s88 = sphi 0, %s87
      %s104 = sphi 0, %s88
      %s108 = sphi 0, %s108
      %s110 = sphi 0, %s108
      %s111 = sphi 0, %s110
      %s125 = sphi 0, %s111
      %s131 = sphi 0, %s133
      %s134 = sphi 0, %s131
      %s135 = sphi 0, %s134
      %s151 = sphi 0, %s135
      %s157 = sphi 0, %s159
      %s160 = sphi 0, %s157
      %s161 = sphi 0, %s160
      %s177 = sphi 0, %s161
      %s183 = sphi 0, %s185
      %s186 = sphi 0, %s183
      %s187 = sphi 0, %s186
      %s203 = sphi 0, %s187
      %s209 = sphi 0, %s211
      %s212 = sphi 0, %s209
      %s213 = sphi 0, %s212
      %s229 = sphi 0, %s213
      %s235 = sphi 0, %s237
      %s238 = sphi 0, %s235
      %s239 = sphi 0, %s238
      %s255 = sphi 0, %s239
      %s261 = sphi 0, %s263
      %s264 = sphi 0, %s261
      %s265 = sphi 0, %s264
      %s281 = sphi 0, %s265
      %s287 = sphi 0, %s289
      %s290 = sphi 0, %s287
      %s291 = sphi 0, %s290
      %s307 = sphi 0, %s291
      %s313 = sphi 0, %s315
      %s316 = sphi 0, %s313
      %s317 = sphi 0, %s316
      %s333 = sphi 0, %s317
      %s339 = sphi 0, %s341
      %s342 = sphi 0, %s339
      %s343 = sphi 0, %s342
      %s359 = sphi 0, %s343
      %s365 = sphi 0, %s367
      %s368 = sphi 0, %s365
      %s369 = sphi 0, %s368
      %s385 = sphi 0, %s369
      %s391 = sphi 0, %s393
      %s394 = sphi 0, %s391
      %s395 = sphi 0, %s394
      %s411 = sphi 0, %s395
      %s417 = sphi 0, %s419
      %s420 = sphi 0, %s417
      %s421 = sphi 0, %s420
      %s437 = sphi 0, %s421
      %s443 = sphi 0, %s445
      %s446 = sphi 0, %s443
      %s447 = sphi 0, %s446
      %s463 = sphi 0, %s447
      %s469 = sphi 0, %s471
      %s472 = sphi 0, %s469
      %s473 = sphi 0, %s472
      %s489 = sphi 0, %s473
      %s495 = sphi 0, %s497
      %s498 = sphi 0, %s495
      %s499 = sphi 0, %s498
      %s515 = sphi 0, %s499
      %s521 = sphi 0, %s523
      %s524 = sphi 0, %s521
      %s525 = sphi 0, %s524
      %s541 = sphi 0, %s525
      %s547 = sphi 0, %s549
      %s550 = sphi 0, %s547
      %s551 = sphi 0, %s550
      %s567 = sphi 0, %s551
      %s573 = sphi 0, %s575
      %s576 = sphi 0, %s573
      %s577 = sphi 0, %s576
      %s593 = sphi 0, %s577
      %s599 = sphi 0, %s601
      %s602 = sphi 0, %s599
      %s603 = sphi 0, %s602
      %s619 = sphi 0, %s603
      %s625 = sphi 0, %s627
      %s628 = sphi 0, %s625
      %s629 = sphi 0, %s628
      %s645 = sphi 0, %s629
      %s651 = sphi 0, %s653
      %s654 = sphi 0, %s651
      %s655 = sphi 0, %s654
      %s671 = sphi 0, %s655
      %s677 = sphi 0, %s679
      %s680 = sphi 0, %s677
      %s681 = sphi 0, %s680
      %s697 = sphi 0, %s681
      %s707 = sphi 0, %s709
      %s710 = sphi 0, %s707
      %s711 = sphi 0, %s710
      %s727 = sphi 0, %s711
      %s737 = sphi 0, %s739
      %s740 = sphi 0, %s737
      %s741 = sphi 0, %s740
      %s757 = sphi 0, %s741
    $region4: #{decoder_forward.1} parent=1 // loop_header_branch
      %39 = sbr.rel (%p37) target = $region8
    $region5: #{decoder_forward.1} parent=1 // loop_body
      %s41 = ssub.s32 %s36, 1
      %s42 = ssub.s32 %s36, 2
      %s49 = sadd.s32 1, %s44
      %p50 = scmp.ge.s32.totalorder %s49, 2
      %s51 = scalar_select %p50, 0, %s49
      %s52 = sadd.s32 1, %s43
      %s53 = scalar_select %p50, %s52, %s43
      %p54 = scmp.ge.s32.totalorder %s53, 2
      %s55 = scalar_select %p54, 0, %s53
      %s56 = ssub.s32 %s43, %s55
      %p57 = scmp.eq.s32.totalorder %s56, 0
      %s59 = sadd.s32 %s58, 1
      %s60 = scalar_select %p57, %s58, %s59
      %p63 = pneg %p57
      %p64 = scmp.eq.s32.totalorder %s36, 3
      %p65 = por %p63, %p64
      %p66 = scmp.ne.s32.totalorder %s58, %s61
      %p67 = scmp.eq.s32.totalorder %s36, 0
      %p68 = por %p66, %p67
      %p69 = scmp.ne.s32.totalorder %s58, %s61
      %p70 = scmp.eq.s32.totalorder %s41, 3
      %p71 = por %p69, %p70
      %p72 = scmp.ne.s32.totalorder %s61, %s62
      %p73 = scmp.eq.s32.totalorder %s41, 0
      %p74 = por %p72, %p73
      %p75 = scmp.ne.s32.totalorder %s61, %s62
      %p76 = scmp.eq.s32.totalorder %s42, 3
      %p77 = por %p75, %p76
      %p79 = scmp.ne.s32.totalorder %s62, %s78
      %p80 = scmp.eq.s32.totalorder %s42, 0
      %p81 = por %p79, %p80
      %s82 = ssub.s32 %s43, %s55
      %p83 = scmp.eq.s32.totalorder %s82, 0
      %s85 = sadd.s32 %s84, 1
      %s86 = scalar_select %p83, %s84, %s85
      %p89 = pneg %p83
      %p90 = scmp.eq.s32.totalorder %s36, 3
      %p91 = por %p89, %p90
      %p92 = scmp.ne.s32.totalorder %s84, %s87
      %p93 = scmp.eq.s32.totalorder %s36, 0
      %p94 = por %p92, %p93
      %p95 = scmp.ne.s32.totalorder %s84, %s87
      %p96 = scmp.eq.s32.totalorder %s41, 3
      %p97 = por %p95, %p96
      %p98 = scmp.ne.s32.totalorder %s87, %s88
      %p99 = scmp.eq.s32.totalorder %s41, 0
      %p100 = por %p98, %p99
      %p101 = scmp.ne.s32.totalorder %s87, %s88
      %p102 = scmp.eq.s32.totalorder %s42, 3
      %p103 = por %p101, %p102
      %p105 = scmp.ne.s32.totalorder %s88, %s104
      %p106 = scmp.eq.s32.totalorder %s42, 0
      %p107 = por %p105, %p106
      %s109 = sadd.s32 %s108, 1
      %p112 = scmp.eq.s32.totalorder %s36, 3
      %p113 = scmp.ne.s32.totalorder %s108, %s110
      %p114 = scmp.eq.s32.totalorder %s36, 0
      %p115 = por %p113, %p114
      %p116 = scmp.ne.s32.totalorder %s108, %s110
      %p117 = scmp.eq.s32.totalorder %s41, 3
      %p118 = por %p116, %p117
      %p119 = scmp.ne.s32.totalorder %s110, %s111
      %p120 = scmp.eq.s32.totalorder %s41, 0
      %p121 = por %p119, %p120
      %p122 = scmp.ne.s32.totalorder %s110, %s111
      %p123 = scmp.eq.s32.totalorder %s42, 3
      %p124 = por %p122, %p123
      %p126 = scmp.ne.s32.totalorder %s111, %s125
      %p127 = scmp.eq.s32.totalorder %s42, 0
      %p128 = por %p126, %p127
      %s129 = ssub.s32 %s43, %s55
      %p130 = scmp.eq.s32.totalorder %s129, 0
      %s132 = sadd.s32 %s131, 1
      %s133 = scalar_select %p130, %s131, %s132
      %p136 = pneg %p130
      %p137 = scmp.eq.s32.totalorder %s36, 3
      %p138 = por %p136, %p137
      %p139 = scmp.ne.s32.totalorder %s131, %s134
      %p140 = scmp.eq.s32.totalorder %s36, 0
      %p141 = por %p139, %p140
      %p142 = scmp.ne.s32.totalorder %s131, %s134
      %p143 = scmp.eq.s32.totalorder %s41, 3
      %p144 = por %p142, %p143
      %p145 = scmp.ne.s32.totalorder %s134, %s135
      %p146 = scmp.eq.s32.totalorder %s41, 0
      %p147 = por %p145, %p146
      %p148 = scmp.ne.s32.totalorder %s134, %s135
      %p149 = scmp.eq.s32.totalorder %s42, 3
      %p150 = por %p148, %p149
      %p152 = scmp.ne.s32.totalorder %s135, %s151
      %p153 = scmp.eq.s32.totalorder %s42, 0
      %p154 = por %p152, %p153
      %s155 = ssub.s32 %s44, %s51
      %p156 = scmp.eq.s32.totalorder %s155, 0
      %s158 = sadd.s32 %s157, 1
      %s159 = scalar_select %p156, %s157, %s158
      %p162 = pneg %p156
      %p163 = scmp.eq.s32.totalorder %s36, 3
      %p164 = por %p162, %p163
      %p165 = scmp.ne.s32.totalorder %s157, %s160
      %p166 = scmp.eq.s32.totalorder %s36, 0
      %p167 = por %p165, %p166
      %p168 = scmp.ne.s32.totalorder %s157, %s160
      %p169 = scmp.eq.s32.totalorder %s41, 3
      %p170 = por %p168, %p169
      %p171 = scmp.ne.s32.totalorder %s160, %s161
      %p172 = scmp.eq.s32.totalorder %s41, 0
      %p173 = por %p171, %p172
      %p174 = scmp.ne.s32.totalorder %s160, %s161
      %p175 = scmp.eq.s32.totalorder %s42, 3
      %p176 = por %p174, %p175
      %p178 = scmp.ne.s32.totalorder %s161, %s177
      %p179 = scmp.eq.s32.totalorder %s42, 0
      %p180 = por %p178, %p179
      %s181 = ssub.s32 %s44, %s51
      %p182 = scmp.eq.s32.totalorder %s181, 0
      %s184 = sadd.s32 %s183, 1
      %s185 = scalar_select %p182, %s183, %s184
      %p188 = pneg %p182
      %p189 = scmp.eq.s32.totalorder %s36, 3
      %p190 = por %p188, %p189
      %p191 = scmp.ne.s32.totalorder %s183, %s186
      %p192 = scmp.eq.s32.totalorder %s36, 0
      %p193 = por %p191, %p192
      %p194 = scmp.ne.s32.totalorder %s183, %s186
      %p195 = scmp.eq.s32.totalorder %s41, 3
      %p196 = por %p194, %p195
      %p197 = scmp.ne.s32.totalorder %s186, %s187
      %p198 = scmp.eq.s32.totalorder %s41, 0
      %p199 = por %p197, %p198
      %p200 = scmp.ne.s32.totalorder %s186, %s187
      %p201 = scmp.eq.s32.totalorder %s42, 3
      %p202 = por %p200, %p201
      %p204 = scmp.ne.s32.totalorder %s187, %s203
      %p205 = scmp.eq.s32.totalorder %s42, 0
      %p206 = por %p204, %p205
      %s207 = ssub.s32 %s44, %s51
      %p208 = scmp.eq.s32.totalorder %s207, 0
      %s210 = sadd.s32 %s209, 1
      %s211 = scalar_select %p208, %s209, %s210
      %p214 = pneg %p208
      %p215 = scmp.eq.s32.totalorder %s36, 3
      %p216 = por %p214, %p215
      %p217 = scmp.ne.s32.totalorder %s209, %s212
      %p218 = scmp.eq.s32.totalorder %s36, 0
      %p219 = por %p217, %p218
      %p220 = scmp.ne.s32.totalorder %s209, %s212
      %p221 = scmp.eq.s32.totalorder %s41, 3
      %p222 = por %p220, %p221
      %p223 = scmp.ne.s32.totalorder %s212, %s213
      %p224 = scmp.eq.s32.totalorder %s41, 0
      %p225 = por %p223, %p224
      %p226 = scmp.ne.s32.totalorder %s212, %s213
      %p227 = scmp.eq.s32.totalorder %s42, 3
      %p228 = por %p226, %p227
      %p230 = scmp.ne.s32.totalorder %s213, %s229
      %p231 = scmp.eq.s32.totalorder %s42, 0
      %p232 = por %p230, %p231
      %s233 = ssub.s32 %s44, %s51
      %p234 = scmp.eq.s32.totalorder %s233, 0
      %s236 = sadd.s32 %s235, 1
      %s237 = scalar_select %p234, %s235, %s236
      %p240 = pneg %p234
      %p241 = scmp.eq.s32.totalorder %s36, 3
      %p242 = por %p240, %p241
      %p243 = scmp.ne.s32.totalorder %s235, %s238
      %p244 = scmp.eq.s32.totalorder %s36, 0
      %p245 = por %p243, %p244
      %p246 = scmp.ne.s32.totalorder %s235, %s238
      %p247 = scmp.eq.s32.totalorder %s41, 3
      %p248 = por %p246, %p247
      %p249 = scmp.ne.s32.totalorder %s238, %s239
      %p250 = scmp.eq.s32.totalorder %s41, 0
      %p251 = por %p249, %p250
      %p252 = scmp.ne.s32.totalorder %s238, %s239
      %p253 = scmp.eq.s32.totalorder %s42, 3
      %p254 = por %p252, %p253
      %p256 = scmp.ne.s32.totalorder %s239, %s255
      %p257 = scmp.eq.s32.totalorder %s42, 0
      %p258 = por %p256, %p257
      %s259 = ssub.s32 %s44, %s51
      %p260 = scmp.eq.s32.totalorder %s259, 0
      %s262 = sadd.s32 %s261, 1
      %s263 = scalar_select %p260, %s261, %s262
      %p266 = pneg %p260
      %p267 = scmp.eq.s32.totalorder %s36, 3
      %p268 = por %p266, %p267
      %p269 = scmp.ne.s32.totalorder %s261, %s264
      %p270 = scmp.eq.s32.totalorder %s36, 0
      %p271 = por %p269, %p270
      %p272 = scmp.ne.s32.totalorder %s261, %s264
      %p273 = scmp.eq.s32.totalorder %s41, 3
      %p274 = por %p272, %p273
      %p275 = scmp.ne.s32.totalorder %s264, %s265
      %p276 = scmp.eq.s32.totalorder %s41, 0
      %p277 = por %p275, %p276
      %p278 = scmp.ne.s32.totalorder %s264, %s265
      %p279 = scmp.eq.s32.totalorder %s42, 3
      %p280 = por %p278, %p279
      %p282 = scmp.ne.s32.totalorder %s265, %s281
      %p283 = scmp.eq.s32.totalorder %s42, 0
      %p284 = por %p282, %p283
      %s285 = ssub.s32 %s44, %s51
      %p286 = scmp.eq.s32.totalorder %s285, 0
      %s288 = sadd.s32 %s287, 1
      %s289 = scalar_select %p286, %s287, %s288
      %p292 = pneg %p286
      %p293 = scmp.eq.s32.totalorder %s36, 3
      %p294 = por %p292, %p293
      %p295 = scmp.ne.s32.totalorder %s287, %s290
      %p296 = scmp.eq.s32.totalorder %s36, 0
      %p297 = por %p295, %p296
      %p298 = scmp.ne.s32.totalorder %s287, %s290
      %p299 = scmp.eq.s32.totalorder %s41, 3
      %p300 = por %p298, %p299
      %p301 = scmp.ne.s32.totalorder %s290, %s291
      %p302 = scmp.eq.s32.totalorder %s41, 0
      %p303 = por %p301, %p302
      %p304 = scmp.ne.s32.totalorder %s290, %s291
      %p305 = scmp.eq.s32.totalorder %s42, 3
      %p306 = por %p304, %p305
      %p308 = scmp.ne.s32.totalorder %s291, %s307
      %p309 = scmp.eq.s32.totalorder %s42, 0
      %p310 = por %p308, %p309
      %s311 = ssub.s32 %s44, %s51
      %p312 = scmp.eq.s32.totalorder %s311, 0
      %s314 = sadd.s32 %s313, 1
      %s315 = scalar_select %p312, %s313, %s314
      %p318 = pneg %p312
      %p319 = scmp.eq.s32.totalorder %s36, 3
      %p320 = por %p318, %p319
      %p321 = scmp.ne.s32.totalorder %s313, %s316
      %p322 = scmp.eq.s32.totalorder %s36, 0
      %p323 = por %p321, %p322
      %p324 = scmp.ne.s32.totalorder %s313, %s316
      %p325 = scmp.eq.s32.totalorder %s41, 3
      %p326 = por %p324, %p325
      %p327 = scmp.ne.s32.totalorder %s316, %s317
      %p328 = scmp.eq.s32.totalorder %s41, 0
      %p329 = por %p327, %p328
      %p330 = scmp.ne.s32.totalorder %s316, %s317
      %p331 = scmp.eq.s32.totalorder %s42, 3
      %p332 = por %p330, %p331
      %p334 = scmp.ne.s32.totalorder %s317, %s333
      %p335 = scmp.eq.s32.totalorder %s42, 0
      %p336 = por %p334, %p335
      %s337 = ssub.s32 %s44, %s51
      %p338 = scmp.eq.s32.totalorder %s337, 0
      %s340 = sadd.s32 %s339, 1
      %s341 = scalar_select %p338, %s339, %s340
      %p344 = pneg %p338
      %p345 = scmp.eq.s32.totalorder %s36, 3
      %p346 = por %p344, %p345
      %p347 = scmp.ne.s32.totalorder %s339, %s342
      %p348 = scmp.eq.s32.totalorder %s36, 0
      %p349 = por %p347, %p348
      %p350 = scmp.ne.s32.totalorder %s339, %s342
      %p351 = scmp.eq.s32.totalorder %s41, 3
      %p352 = por %p350, %p351
      %p353 = scmp.ne.s32.totalorder %s342, %s343
      %p354 = scmp.eq.s32.totalorder %s41, 0
      %p355 = por %p353, %p354
      %p356 = scmp.ne.s32.totalorder %s342, %s343
      %p357 = scmp.eq.s32.totalorder %s42, 3
      %p358 = por %p356, %p357
      %p360 = scmp.ne.s32.totalorder %s343, %s359
      %p361 = scmp.eq.s32.totalorder %s42, 0
      %p362 = por %p360, %p361
      %s363 = ssub.s32 %s44, %s51
      %p364 = scmp.eq.s32.totalorder %s363, 0
      %s366 = sadd.s32 %s365, 1
      %s367 = scalar_select %p364, %s365, %s366
      %p370 = pneg %p364
      %p371 = scmp.eq.s32.totalorder %s36, 3
      %p372 = por %p370, %p371
      %p373 = scmp.ne.s32.totalorder %s365, %s368
      %p374 = scmp.eq.s32.totalorder %s36, 0
      %p375 = por %p373, %p374
      %p376 = scmp.ne.s32.totalorder %s365, %s368
      %p377 = scmp.eq.s32.totalorder %s41, 3
      %p378 = por %p376, %p377
      %p379 = scmp.ne.s32.totalorder %s368, %s369
      %p380 = scmp.eq.s32.totalorder %s41, 0
      %p381 = por %p379, %p380
      %p382 = scmp.ne.s32.totalorder %s368, %s369
      %p383 = scmp.eq.s32.totalorder %s42, 3
      %p384 = por %p382, %p383
      %p386 = scmp.ne.s32.totalorder %s369, %s385
      %p387 = scmp.eq.s32.totalorder %s42, 0
      %p388 = por %p386, %p387
      %s389 = ssub.s32 %s44, %s51
      %p390 = scmp.eq.s32.totalorder %s389, 0
      %s392 = sadd.s32 %s391, 1
      %s393 = scalar_select %p390, %s391, %s392
      %p396 = pneg %p390
      %p397 = scmp.eq.s32.totalorder %s36, 3
      %p398 = por %p396, %p397
      %p399 = scmp.ne.s32.totalorder %s391, %s394
      %p400 = scmp.eq.s32.totalorder %s36, 0
      %p401 = por %p399, %p400
      %p402 = scmp.ne.s32.totalorder %s391, %s394
      %p403 = scmp.eq.s32.totalorder %s41, 3
      %p404 = por %p402, %p403
      %p405 = scmp.ne.s32.totalorder %s394, %s395
      %p406 = scmp.eq.s32.totalorder %s41, 0
      %p407 = por %p405, %p406
      %p408 = scmp.ne.s32.totalorder %s394, %s395
      %p409 = scmp.eq.s32.totalorder %s42, 3
      %p410 = por %p408, %p409
      %p412 = scmp.ne.s32.totalorder %s395, %s411
      %p413 = scmp.eq.s32.totalorder %s42, 0
      %p414 = por %p412, %p413
      %s415 = ssub.s32 %s44, %s51
      %p416 = scmp.eq.s32.totalorder %s415, 0
      %s418 = sadd.s32 %s417, 1
      %s419 = scalar_select %p416, %s417, %s418
      %p422 = pneg %p416
      %p423 = scmp.eq.s32.totalorder %s36, 3
      %p424 = por %p422, %p423
      %p425 = scmp.ne.s32.totalorder %s417, %s420
      %p426 = scmp.eq.s32.totalorder %s36, 0
      %p427 = por %p425, %p426
      %p428 = scmp.ne.s32.totalorder %s417, %s420
      %p429 = scmp.eq.s32.totalorder %s41, 3
      %p430 = por %p428, %p429
      %p431 = scmp.ne.s32.totalorder %s420, %s421
      %p432 = scmp.eq.s32.totalorder %s41, 0
      %p433 = por %p431, %p432
      %p434 = scmp.ne.s32.totalorder %s420, %s421
      %p435 = scmp.eq.s32.totalorder %s42, 3
      %p436 = por %p434, %p435
      %p438 = scmp.ne.s32.totalorder %s421, %s437
      %p439 = scmp.eq.s32.totalorder %s42, 0
      %p440 = por %p438, %p439
      %s441 = ssub.s32 %s44, %s51
      %p442 = scmp.eq.s32.totalorder %s441, 0
      %s444 = sadd.s32 %s443, 1
      %s445 = scalar_select %p442, %s443, %s444
      %p448 = pneg %p442
      %p449 = scmp.eq.s32.totalorder %s36, 3
      %p450 = por %p448, %p449
      %p451 = scmp.ne.s32.totalorder %s443, %s446
      %p452 = scmp.eq.s32.totalorder %s36, 0
      %p453 = por %p451, %p452
      %p454 = scmp.ne.s32.totalorder %s443, %s446
      %p455 = scmp.eq.s32.totalorder %s41, 3
      %p456 = por %p454, %p455
      %p457 = scmp.ne.s32.totalorder %s446, %s447
      %p458 = scmp.eq.s32.totalorder %s41, 0
      %p459 = por %p457, %p458
      %p460 = scmp.ne.s32.totalorder %s446, %s447
      %p461 = scmp.eq.s32.totalorder %s42, 3
      %p462 = por %p460, %p461
      %p464 = scmp.ne.s32.totalorder %s447, %s463
      %p465 = scmp.eq.s32.totalorder %s42, 0
      %p466 = por %p464, %p465
      %s467 = ssub.s32 %s44, %s51
      %p468 = scmp.eq.s32.totalorder %s467, 0
      %s470 = sadd.s32 %s469, 1
      %s471 = scalar_select %p468, %s469, %s470
      %p474 = pneg %p468
      %p475 = scmp.eq.s32.totalorder %s36, 3
      %p476 = por %p474, %p475
      %p477 = scmp.ne.s32.totalorder %s469, %s472
      %p478 = scmp.eq.s32.totalorder %s36, 0
      %p479 = por %p477, %p478
      %p480 = scmp.ne.s32.totalorder %s469, %s472
      %p481 = scmp.eq.s32.totalorder %s41, 3
      %p482 = por %p480, %p481
      %p483 = scmp.ne.s32.totalorder %s472, %s473
      %p484 = scmp.eq.s32.totalorder %s41, 0
      %p485 = por %p483, %p484
      %p486 = scmp.ne.s32.totalorder %s472, %s473
      %p487 = scmp.eq.s32.totalorder %s42, 3
      %p488 = por %p486, %p487
      %p490 = scmp.ne.s32.totalorder %s473, %s489
      %p491 = scmp.eq.s32.totalorder %s42, 0
      %p492 = por %p490, %p491
      %s493 = ssub.s32 %s44, %s51
      %p494 = scmp.eq.s32.totalorder %s493, 0
      %s496 = sadd.s32 %s495, 1
      %s497 = scalar_select %p494, %s495, %s496
      %p500 = pneg %p494
      %p501 = scmp.eq.s32.totalorder %s36, 3
      %p502 = por %p500, %p501
      %p503 = scmp.ne.s32.totalorder %s495, %s498
      %p504 = scmp.eq.s32.totalorder %s36, 0
      %p505 = por %p503, %p504
      %p506 = scmp.ne.s32.totalorder %s495, %s498
      %p507 = scmp.eq.s32.totalorder %s41, 3
      %p508 = por %p506, %p507
      %p509 = scmp.ne.s32.totalorder %s498, %s499
      %p510 = scmp.eq.s32.totalorder %s41, 0
      %p511 = por %p509, %p510
      %p512 = scmp.ne.s32.totalorder %s498, %s499
      %p513 = scmp.eq.s32.totalorder %s42, 3
      %p514 = por %p512, %p513
      %p516 = scmp.ne.s32.totalorder %s499, %s515
      %p517 = scmp.eq.s32.totalorder %s42, 0
      %p518 = por %p516, %p517
      %s519 = ssub.s32 %s44, %s51
      %p520 = scmp.eq.s32.totalorder %s519, 0
      %s522 = sadd.s32 %s521, 1
      %s523 = scalar_select %p520, %s521, %s522
      %p526 = pneg %p520
      %p527 = scmp.eq.s32.totalorder %s36, 3
      %p528 = por %p526, %p527
      %p529 = scmp.ne.s32.totalorder %s521, %s524
      %p530 = scmp.eq.s32.totalorder %s36, 0
      %p531 = por %p529, %p530
      %p532 = scmp.ne.s32.totalorder %s521, %s524
      %p533 = scmp.eq.s32.totalorder %s41, 3
      %p534 = por %p532, %p533
      %p535 = scmp.ne.s32.totalorder %s524, %s525
      %p536 = scmp.eq.s32.totalorder %s41, 0
      %p537 = por %p535, %p536
      %p538 = scmp.ne.s32.totalorder %s524, %s525
      %p539 = scmp.eq.s32.totalorder %s42, 3
      %p540 = por %p538, %p539
      %p542 = scmp.ne.s32.totalorder %s525, %s541
      %p543 = scmp.eq.s32.totalorder %s42, 0
      %p544 = por %p542, %p543
      %s545 = ssub.s32 %s44, %s51
      %p546 = scmp.eq.s32.totalorder %s545, 0
      %s548 = sadd.s32 %s547, 1
      %s549 = scalar_select %p546, %s547, %s548
      %p552 = pneg %p546
      %p553 = scmp.eq.s32.totalorder %s36, 3
      %p554 = por %p552, %p553
      %p555 = scmp.ne.s32.totalorder %s547, %s550
      %p556 = scmp.eq.s32.totalorder %s36, 0
      %p557 = por %p555, %p556
      %p558 = scmp.ne.s32.totalorder %s547, %s550
      %p559 = scmp.eq.s32.totalorder %s41, 3
      %p560 = por %p558, %p559
      %p561 = scmp.ne.s32.totalorder %s550, %s551
      %p562 = scmp.eq.s32.totalorder %s41, 0
      %p563 = por %p561, %p562
      %p564 = scmp.ne.s32.totalorder %s550, %s551
      %p565 = scmp.eq.s32.totalorder %s42, 3
      %p566 = por %p564, %p565
      %p568 = scmp.ne.s32.totalorder %s551, %s567
      %p569 = scmp.eq.s32.totalorder %s42, 0
      %p570 = por %p568, %p569
      %s571 = ssub.s32 %s44, %s51
      %p572 = scmp.eq.s32.totalorder %s571, 0
      %s574 = sadd.s32 %s573, 1
      %s575 = scalar_select %p572, %s573, %s574
      %p578 = pneg %p572
      %p579 = scmp.eq.s32.totalorder %s36, 3
      %p580 = por %p578, %p579
      %p581 = scmp.ne.s32.totalorder %s573, %s576
      %p582 = scmp.eq.s32.totalorder %s36, 0
      %p583 = por %p581, %p582
      %p584 = scmp.ne.s32.totalorder %s573, %s576
      %p585 = scmp.eq.s32.totalorder %s41, 3
      %p586 = por %p584, %p585
      %p587 = scmp.ne.s32.totalorder %s576, %s577
      %p588 = scmp.eq.s32.totalorder %s41, 0
      %p589 = por %p587, %p588
      %p590 = scmp.ne.s32.totalorder %s576, %s577
      %p591 = scmp.eq.s32.totalorder %s42, 3
      %p592 = por %p590, %p591
      %p594 = scmp.ne.s32.totalorder %s577, %s593
      %p595 = scmp.eq.s32.totalorder %s42, 0
      %p596 = por %p594, %p595
      %s597 = ssub.s32 %s44, %s51
      %p598 = scmp.eq.s32.totalorder %s597, 0
      %s600 = sadd.s32 %s599, 1
      %s601 = scalar_select %p598, %s599, %s600
      %p604 = pneg %p598
      %p605 = scmp.eq.s32.totalorder %s36, 3
      %p606 = por %p604, %p605
      %p607 = scmp.ne.s32.totalorder %s599, %s602
      %p608 = scmp.eq.s32.totalorder %s36, 0
      %p609 = por %p607, %p608
      %p610 = scmp.ne.s32.totalorder %s599, %s602
      %p611 = scmp.eq.s32.totalorder %s41, 3
      %p612 = por %p610, %p611
      %p613 = scmp.ne.s32.totalorder %s602, %s603
      %p614 = scmp.eq.s32.totalorder %s41, 0
      %p615 = por %p613, %p614
      %p616 = scmp.ne.s32.totalorder %s602, %s603
      %p617 = scmp.eq.s32.totalorder %s42, 3
      %p618 = por %p616, %p617
      %p620 = scmp.ne.s32.totalorder %s603, %s619
      %p621 = scmp.eq.s32.totalorder %s42, 0
      %p622 = por %p620, %p621
      %s623 = ssub.s32 %s44, %s51
      %p624 = scmp.eq.s32.totalorder %s623, 0
      %s626 = sadd.s32 %s625, 1
      %s627 = scalar_select %p624, %s625, %s626
      %p630 = pneg %p624
      %p631 = scmp.eq.s32.totalorder %s36, 3
      %p632 = por %p630, %p631
      %p633 = scmp.ne.s32.totalorder %s625, %s628
      %p634 = scmp.eq.s32.totalorder %s36, 0
      %p635 = por %p633, %p634
      %p636 = scmp.ne.s32.totalorder %s625, %s628
      %p637 = scmp.eq.s32.totalorder %s41, 3
      %p638 = por %p636, %p637
      %p639 = scmp.ne.s32.totalorder %s628, %s629
      %p640 = scmp.eq.s32.totalorder %s41, 0
      %p641 = por %p639, %p640
      %p642 = scmp.ne.s32.totalorder %s628, %s629
      %p643 = scmp.eq.s32.totalorder %s42, 3
      %p644 = por %p642, %p643
      %p646 = scmp.ne.s32.totalorder %s629, %s645
      %p647 = scmp.eq.s32.totalorder %s42, 0
      %p648 = por %p646, %p647
      %s649 = ssub.s32 %s44, %s51
      %p650 = scmp.eq.s32.totalorder %s649, 0
      %s652 = sadd.s32 %s651, 1
      %s653 = scalar_select %p650, %s651, %s652
      %p656 = pneg %p650
      %p657 = scmp.eq.s32.totalorder %s36, 3
      %p658 = por %p656, %p657
      %p659 = scmp.ne.s32.totalorder %s651, %s654
      %p660 = scmp.eq.s32.totalorder %s36, 0
      %p661 = por %p659, %p660
      %p662 = scmp.ne.s32.totalorder %s651, %s654
      %p663 = scmp.eq.s32.totalorder %s41, 3
      %p664 = por %p662, %p663
      %p665 = scmp.ne.s32.totalorder %s654, %s655
      %p666 = scmp.eq.s32.totalorder %s41, 0
      %p667 = por %p665, %p666
      %p668 = scmp.ne.s32.totalorder %s654, %s655
      %p669 = scmp.eq.s32.totalorder %s42, 3
      %p670 = por %p668, %p669
      %p672 = scmp.ne.s32.totalorder %s655, %s671
      %p673 = scmp.eq.s32.totalorder %s42, 0
      %p674 = por %p672, %p673
      %s675 = ssub.s32 %s43, %s55
      %p676 = scmp.eq.s32.totalorder %s675, 0
      %s678 = sadd.s32 %s677, 1
      %s679 = scalar_select %p676, %s677, %s678
      %p682 = pneg %p676
      %p683 = scmp.eq.s32.totalorder %s36, 3
      %p684 = por %p682, %p683
      %p685 = scmp.ne.s32.totalorder %s677, %s680
      %p686 = scmp.eq.s32.totalorder %s36, 0
      %p687 = por %p685, %p686
      %p688 = scmp.ne.s32.totalorder %s677, %s680
      %p689 = scmp.eq.s32.totalorder %s41, 3
      %p690 = por %p688, %p689
      %p691 = scmp.ne.s32.totalorder %s680, %s681
      %p692 = scmp.eq.s32.totalorder %s41, 0
      %p693 = por %p691, %p692
      %p694 = scmp.ne.s32.totalorder %s680, %s681
      %p695 = scmp.eq.s32.totalorder %s42, 3
      %p696 = por %p694, %p695
      %p698 = scmp.ne.s32.totalorder %s681, %s697
      %p699 = scmp.eq.s32.totalorder %s42, 0
      %p700 = por %p698, %p699
      %s701 = smul.u32 %s44, 2
      %s702 = sadd.s32 %s701, %s43
      %s703 = smul.u32 %s51, 2
      %s704 = sadd.s32 %s703, %s55
      %s705 = ssub.s32 %s702, %s704
      %p706 = scmp.eq.s32.totalorder %s705, 0
      %s708 = sadd.s32 %s707, 1
      %s709 = scalar_select %p706, %s707, %s708
      %p712 = pneg %p706
      %p713 = scmp.eq.s32.totalorder %s36, 3
      %p714 = por %p712, %p713
      %p715 = scmp.ne.s32.totalorder %s707, %s710
      %p716 = scmp.eq.s32.totalorder %s36, 0
      %p717 = por %p715, %p716
      %p718 = scmp.ne.s32.totalorder %s707, %s710
      %p719 = scmp.eq.s32.totalorder %s41, 3
      %p720 = por %p718, %p719
      %p721 = scmp.ne.s32.totalorder %s710, %s711
      %p722 = scmp.eq.s32.totalorder %s41, 0
      %p723 = por %p721, %p722
      %p724 = scmp.ne.s32.totalorder %s710, %s711
      %p725 = scmp.eq.s32.totalorder %s42, 3
      %p726 = por %p724, %p725
      %p728 = scmp.ne.s32.totalorder %s711, %s727
      %p729 = scmp.eq.s32.totalorder %s42, 0
      %p730 = por %p728, %p729
      %s731 = smul.u32 %s44, 2
      %s732 = sadd.s32 %s731, %s43
      %s733 = smul.u32 %s51, 2
      %s734 = sadd.s32 %s733, %s55
      %s735 = ssub.s32 %s732, %s734
      %p736 = scmp.eq.s32.totalorder %s735, 0
      %s738 = sadd.s32 %s737, 1
      %s739 = scalar_select %p736, %s737, %s738
      %p742 = pneg %p736
      %p743 = scmp.eq.s32.totalorder %s36, 3
      %p744 = por %p742, %p743
      %p745 = scmp.ne.s32.totalorder %s737, %s740
      %p746 = scmp.eq.s32.totalorder %s36, 0
      %p747 = por %p745, %p746
      %p748 = scmp.ne.s32.totalorder %s737, %s740
      %p749 = scmp.eq.s32.totalorder %s41, 3
      %p750 = por %p748, %p749
      %p751 = scmp.ne.s32.totalorder %s740, %s741
      %p752 = scmp.eq.s32.totalorder %s41, 0
      %p753 = por %p751, %p752
      %p754 = scmp.ne.s32.totalorder %s740, %s741
      %p755 = scmp.eq.s32.totalorder %s42, 3
      %p756 = por %p754, %p755
      %p758 = scmp.ne.s32.totalorder %s741, %s757
      %p759 = scmp.eq.s32.totalorder %s42, 0
      %p760 = por %p758, %p759
      %p761 = scmp.le.s32.totalorder 1, %s36
      %p762 = scmp.lt.s32.totalorder %s36, 5
      %p763 = pnand %p761, %p762
      %p764 = pneg %p763
      // Predicated region
      $region9: #{decoder_forward.1} parent=5 // pred_check
        _
      $region10: #{decoder_forward.1} parent=5 // pred_check_branch
        %766 = sbr.rel (%p763) target = $region12
      $region11: #{decoder_forward.1} parent=5 // pred_region
        %s767 = ssub.s32 %s36, 1
        // Predicated region
        $region13: #{decoder_forward.1} parent=11 // pred_check
          %p768 = pneg %p121
        $region14: #{decoder_forward.1} parent=11 // pred_check_branch
          %770 = sbr.rel (%p768) target = $region16
        $region15: #{decoder_forward.1} parent=11 // pred_region
          _
        $region16: #{decoder_forward.1} parent=11 // pred_fallthru
          _
      $region12: #{decoder_forward.1} parent=5 // pred_fallthru
        _
      %p771 = scmp.lt.s32.totalorder %s36, 4
      // Predicated region
      $region17: #{decoder_forward.1} parent=5 // pred_check
        %p772 = pneg %p771
      $region18: #{decoder_forward.1} parent=5 // pred_check_branch
        %774 = sbr.rel (%p772) target = $region20
      $region19: #{decoder_forward.1} parent=5 // pred_region
        // Predicated region
        $region21: #{decoder_forward.1} parent=19 // pred_check
          %p775 = pneg %p68
        $region22: #{decoder_forward.1} parent=19 // pred_check_branch
          %777 = sbr.rel (%p775) target = $region24
        $region23: #{decoder_forward.1} parent=19 // pred_region
          %p778 = scmp.lt.s32.totalorder %s43, 1
          %s779 = scalar_select %p778, %s43, 1
          %s780 = smul.addr %s779, 8
          %s781 = scalar_lea.vmem %s0, %s780
        $region24: #{decoder_forward.1} parent=19 // pred_fallthru
          _
        // Predicated region
        $region25: #{decoder_forward.1} parent=19 // pred_check
          %p782 = pneg %p94
        $region26: #{decoder_forward.1} parent=19 // pred_check_branch
          %784 = sbr.rel (%p782) target = $region28
        $region27: #{decoder_forward.1} parent=19 // pred_region
          %p785 = scmp.lt.s32.totalorder %s43, 1
          %s786 = scalar_select %p785, %s43, 1
          %s787 = smul.addr %s786, 8
          %s788 = scalar_lea.vmem %s1, %s787
        $region28: #{decoder_forward.1} parent=19 // pred_fallthru
          _
        // Predicated region
        $region29: #{decoder_forward.1} parent=19 // pred_check
          %p789 = pneg %p141
        $region30: #{decoder_forward.1} parent=19 // pred_check_branch
          %791 = sbr.rel (%p789) target = $region32
        $region31: #{decoder_forward.1} parent=19 // pred_region
          %p792 = scmp.lt.s32.totalorder %s43, 1
          %s793 = scalar_select %p792, %s43, 1
          %s794 = scalar_lea.vmem %s3, %s793
        $region32: #{decoder_forward.1} parent=19 // pred_fallthru
          _
        // Predicated region
        $region33: #{decoder_forward.1} parent=19 // pred_check
          %p795 = pneg %p167
        $region34: #{decoder_forward.1} parent=19 // pred_check_branch
          %797 = sbr.rel (%p795) target = $region36
        $region35: #{decoder_forward.1} parent=19 // pred_region
          %p798 = scmp.lt.s32.totalorder %s44, 1
          %s799 = scalar_select %p798, %s44, 1
          %s800 = smul.addr %s799, 4
          %s801 = smul.addr %s800, 8
          %s802 = scalar_lea.vmem %s4, %s801
        $region36: #{decoder_forward.1} parent=19 // pred_fallthru
          _
        // Predicated region
        $region37: #{decoder_forward.1} parent=19 // pred_check
          %p803 = pneg %p193
        $region38: #{decoder_forward.1} parent=19 // pred_check_branch
          %805 = sbr.rel (%p803) target = $region40
        $region39: #{decoder_forward.1} parent=19 // pred_region
          %p806 = scmp.lt.s32.totalorder %s44, 1
          %s807 = scalar_select %p806, %s44, 1
          %s808 = scalar_lea.vmem %s5, %s807
        $region40: #{decoder_forward.1} parent=19 // pred_fallthru
          _
        // Predicated region
        $region41: #{decoder_forward.1} parent=19 // pred_check
          %p809 = pneg %p219
        $region42: #{decoder_forward.1} parent=19 // pred_check_branch
          %811 = sbr.rel (%p809) target = $region44
        $region43: #{decoder_forward.1} parent=19 // pred_region
          %p812 = scmp.lt.s32.totalorder %s44, 1
          %s813 = scalar_select %p812, %s44, 1
          %s814 = smul.addr %s813, 4
          %s815 = smul.addr %s814, 8
          %s816 = scalar_lea.vmem %s6, %s815
        $region44: #{decoder_forward.1} parent=19 // pred_fallthru
          _
        // Predicated region
        $region45: #{decoder_forward.1} parent=19 // pred_check
          %p817 = pneg %p245
        $region46: #{decoder_forward.1} parent=19 // pred_check_branch
          %819 = sbr.rel (%p817) target = $region48
        $region47: #{decoder_forward.1} parent=19 // pred_region
          %p820 = scmp.lt.s32.totalorder %s44, 1
          %s821 = scalar_select %p820, %s44, 1
          %s822 = scalar_lea.vmem %s7, %s821
        $region48: #{decoder_forward.1} parent=19 // pred_fallthru
          _
        // Predicated region
        $region49: #{decoder_forward.1} parent=19 // pred_check
          %p823 = pneg %p271
        $region50: #{decoder_forward.1} parent=19 // pred_check_branch
          %825 = sbr.rel (%p823) target = $region52
        $region51: #{decoder_forward.1} parent=19 // pred_region
          %p826 = scmp.lt.s32.totalorder %s44, 1
          %s827 = scalar_select %p826, %s44, 1
          %s828 = scalar_lea.vmem %s8, %s827
        $region52: #{decoder_forward.1} parent=19 // pred_fallthru
          _
        // Predicated region
        $region53: #{decoder_forward.1} parent=19 // pred_check
          %p829 = pneg %p297
        $region54: #{decoder_forward.1} parent=19 // pred_check_branch
          %831 = sbr.rel (%p829) target = $region56
        $region55: #{decoder_forward.1} parent=19 // pred_region
          %p832 = scmp.lt.s32.totalorder %s44, 1
          %s833 = scalar_select %p832, %s44, 1
          %s834 = scalar_lea.vmem %s9, %s833
        $region56: #{decoder_forward.1} parent=19 // pred_fallthru
          _
        // Predicated region
        $region57: #{decoder_forward.1} parent=19 // pred_check
          %p835 = pneg %p323
        $region58: #{decoder_forward.1} parent=19 // pred_check_branch
          %837 = sbr.rel (%p835) target = $region60
        $region59: #{decoder_forward.1} parent=19 // pred_region
          %p838 = scmp.lt.s32.totalorder %s44, 1
          %s839 = scalar_select %p838, %s44, 1
          %s840 = smul.addr %s839, 4
          %s841 = smul.addr %s840, 8
          %s842 = scalar_lea.vmem %s10, %s841
        $region60: #{decoder_forward.1} parent=19 // pred_fallthru
          _
        // Predicated region
        $region61: #{decoder_forward.1} parent=19 // pred_check
          %p843 = pneg %p349
        $region62: #{decoder_forward.1} parent=19 // pred_check_branch
          %845 = sbr.rel (%p843) target = $region64
        $region63: #{decoder_forward.1} parent=19 // pred_region
          %p846 = scmp.lt.s32.totalorder %s44, 1
          %s847 = scalar_select %p846, %s44, 1
          %s848 = scalar_lea.vmem %s11, %s847
        $region64: #{decoder_forward.1} parent=19 // pred_fallthru
          _
        // Predicated region
        $region65: #{decoder_forward.1} parent=19 // pred_check
          %p849 = pneg %p375
        $region66: #{decoder_forward.1} parent=19 // pred_check_branch
          %851 = sbr.rel (%p849) target = $region68
        $region67: #{decoder_forward.1} parent=19 // pred_region
          %p852 = scmp.lt.s32.totalorder %s44, 1
          %s853 = scalar_select %p852, %s44, 1
          %s854 = smul.addr %s853, 4
          %s855 = smul.addr %s854, 8
          %s856 = scalar_lea.vmem %s12, %s855
        $region68: #{decoder_forward.1} parent=19 // pred_fallthru
          _
        // Predicated region
        $region69: #{decoder_forward.1} parent=19 // pred_check
          %p857 = pneg %p401
        $region70: #{decoder_forward.1} parent=19 // pred_check_branch
          %859 = sbr.rel (%p857) target = $region72
        $region71: #{decoder_forward.1} parent=19 // pred_region
          %p860 = scmp.lt.s32.totalorder %s44, 1
          %s861 = scalar_select %p860, %s44, 1
          %s862 = scalar_lea.vmem %s13, %s861
        $region72: #{decoder_forward.1} parent=19 // pred_fallthru
          _
        // Predicated region
        $region73: #{decoder_forward.1} parent=19 // pred_check
          %p863 = pneg %p427
        $region74: #{decoder_forward.1} parent=19 // pred_check_branch
          %865 = sbr.rel (%p863) target = $region76
        $region75: #{decoder_forward.1} parent=19 // pred_region
          %p866 = scmp.lt.s32.totalorder %s44, 1
          %s867 = scalar_select %p866, %s44, 1
          %s868 = smul.addr %s867, 4
          %s869 = smul.addr %s868, 8
          %s870 = scalar_lea.vmem %s14, %s869
        $region76: #{decoder_forward.1} parent=19 // pred_fallthru
          _
        // Predicated region
        $region77: #{decoder_forward.1} parent=19 // pred_check
          %p871 = pneg %p453
        $region78: #{decoder_forward.1} parent=19 // pred_check_branch
          %873 = sbr.rel (%p871) target = $region80
        $region79: #{decoder_forward.1} parent=19 // pred_region
          %p874 = scmp.lt.s32.totalorder %s44, 1
          %s875 = scalar_select %p874, %s44, 1
          %s876 = scalar_lea.vmem %s15, %s875
        $region80: #{decoder_forward.1} parent=19 // pred_fallthru
          _
        // Predicated region
        $region81: #{decoder_forward.1} parent=19 // pred_check
          %p877 = pneg %p479
        $region82: #{decoder_forward.1} parent=19 // pred_check_branch
          %879 = sbr.rel (%p877) target = $region84
        $region83: #{decoder_forward.1} parent=19 // pred_region
          %p880 = scmp.lt.s32.totalorder %s44, 1
          %s881 = scalar_select %p880, %s44, 1
          %s882 = scalar_lea.vmem %s16, %s881
        $region84: #{decoder_forward.1} parent=19 // pred_fallthru
          _
        // Predicated region
        $region85: #{decoder_forward.1} parent=19 // pred_check
          %p883 = pneg %p505
        $region86: #{decoder_forward.1} parent=19 // pred_check_branch
          %885 = sbr.rel (%p883) target = $region88
        $region87: #{decoder_forward.1} parent=19 // pred_region
          %p886 = scmp.lt.s32.totalorder %s44, 1
          %s887 = scalar_select %p886, %s44, 1
          %s888 = scalar_lea.vmem %s17, %s887
        $region88: #{decoder_forward.1} parent=19 // pred_fallthru
          _
        // Predicated region
        $region89: #{decoder_forward.1} parent=19 // pred_check
          %p889 = pneg %p531
        $region90: #{decoder_forward.1} parent=19 // pred_check_branch
          %891 = sbr.rel (%p889) target = $region92
        $region91: #{decoder_forward.1} parent=19 // pred_region
          %p892 = scmp.lt.s32.totalorder %s44, 1
          %s893 = scalar_select %p892, %s44, 1
          %s894 = smul.addr %s893, 4
          %s895 = smul.addr %s894, 8
          %s896 = scalar_lea.vmem %s18, %s895
        $region92: #{decoder_forward.1} parent=19 // pred_fallthru
          _
        // Predicated region
        $region93: #{decoder_forward.1} parent=19 // pred_check
          %p897 = pneg %p557
        $region94: #{decoder_forward.1} parent=19 // pred_check_branch
          %899 = sbr.rel (%p897) target = $region96
        $region95: #{decoder_forward.1} parent=19 // pred_region
          %p900 = scmp.lt.s32.totalorder %s44, 1
          %s901 = scalar_select %p900, %s44, 1
          %s902 = scalar_lea.vmem %s19, %s901
        $region96: #{decoder_forward.1} parent=19 // pred_fallthru
          _
        // Predicated region
        $region97: #{decoder_forward.1} parent=19 // pred_check
          %p903 = pneg %p583
        $region98: #{decoder_forward.1} parent=19 // pred_check_branch
          %905 = sbr.rel (%p903) target = $region100
        $region99: #{decoder_forward.1} parent=19 // pred_region
          %p906 = scmp.lt.s32.totalorder %s44, 1
          %s907 = scalar_select %p906, %s44, 1
          %s908 = smul.addr %s907, 8
          %s909 = smul.addr %s908, 8
          %s910 = scalar_lea.vmem %s20, %s909
        $region100: #{decoder_forward.1} parent=19 // pred_fallthru
          _
        // Predicated region
        $region101: #{decoder_forward.1} parent=19 // pred_check
          %p911 = pneg %p609
        $region102: #{decoder_forward.1} parent=19 // pred_check_branch
          %913 = sbr.rel (%p911) target = $region104
        $region103: #{decoder_forward.1} parent=19 // pred_region
          %p914 = scmp.lt.s32.totalorder %s44, 1
          %s915 = scalar_select %p914, %s44, 1
          %s916 = scalar_lea.vmem %s21, %s915
        $region104: #{decoder_forward.1} parent=19 // pred_fallthru
          _
        // Predicated region
        $region105: #{decoder_forward.1} parent=19 // pred_check
          %p917 = pneg %p635
        $region106: #{decoder_forward.1} parent=19 // pred_check_branch
          %919 = sbr.rel (%p917) target = $region108
        $region107: #{decoder_forward.1} parent=19 // pred_region
          %p920 = scmp.lt.s32.totalorder %s44, 1
          %s921 = scalar_select %p920, %s44, 1
          %s922 = scalar_lea.vmem %s22, %s921
        $region108: #{decoder_forward.1} parent=19 // pred_fallthru
          _
        // Predicated region
        $region109: #{decoder_forward.1} parent=19 // pred_check
          %p923 = pneg %p661
        $region110: #{decoder_forward.1} parent=19 // pred_check_branch
          %925 = sbr.rel (%p923) target = $region112
        $region111: #{decoder_forward.1} parent=19 // pred_region
          %p926 = scmp.lt.s32.totalorder %s44, 1
          %s927 = scalar_select %p926, %s44, 1
          %s928 = scalar_lea.vmem %s23, %s927
        $region112: #{decoder_forward.1} parent=19 // pred_fallthru
          _
      $region20: #{decoder_forward.1} parent=5 // pred_fallthru
        _
      %p929 = scmp.le.s32.totalorder 1, %s36
      %p930 = scmp.lt.s32.totalorder %s36, 5
      %p931 = pnand %p929, %p930
      %p932 = pneg %p931
      // Predicated region
      $region113: #{decoder_forward.1} parent=5 // pred_check
        _
      $region114: #{decoder_forward.1} parent=5 // pred_check_branch
        %934 = sbr.rel (%p931) target = $region116
      $region115: #{decoder_forward.1} parent=5 // pred_region
        %s935 = ssub.s32 %s36, 1
        %p936 = scmp.lt.s32.totalorder %s45, 1
        %s937 = scalar_select %p936, %s45, 1
        %s938 = smul.addr %s937, 8
        %s939 = scalar_lea.vmem %s0, %s938
        %p940 = pneg %p74
        %p941 = pneg %p71
        %p942 = scmp.lt.s32.totalorder %s45, 1
        %s943 = scalar_select %p942, %s45, 1
        %s944 = smul.addr %s943, 8
        %s945 = scalar_lea.vmem %s1, %s944
        %p946 = pneg %p100
        %p947 = pneg %p97
        %p948 = pneg %p121
        %p949 = pneg %p118
        %p950 = scmp.lt.s32.totalorder %s45, 1
        %s951 = scalar_select %p950, %s45, 1
        %s952 = scalar_lea.vmem %s3, %s951
        %p953 = pneg %p147
        %p954 = pneg %p144
        %p955 = scmp.lt.s32.totalorder %s46, 1
        %s956 = scalar_select %p955, %s46, 1
        %s957 = smul.addr %s956, 4
        %s958 = smul.addr %s957, 8
        %s959 = scalar_lea.vmem %s4, %s958
        %p960 = pneg %p173
        %p961 = pneg %p170
        %p962 = scmp.lt.s32.totalorder %s46, 1
        %s963 = scalar_select %p962, %s46, 1
        %s964 = scalar_lea.vmem %s5, %s963
        %p965 = pneg %p199
        %p966 = pneg %p196
        %p967 = scmp.lt.s32.totalorder %s46, 1
        %s968 = scalar_select %p967, %s46, 1
        %s969 = smul.addr %s968, 4
        %s970 = smul.addr %s969, 8
        %s971 = scalar_lea.vmem %s6, %s970
        %p972 = pneg %p225
        %p973 = pneg %p222
        %p974 = scmp.lt.s32.totalorder %s46, 1
        %s975 = scalar_select %p974, %s46, 1
        %s976 = scalar_lea.vmem %s7, %s975
        %p977 = pneg %p251
        %p978 = pneg %p248
        %p979 = scmp.lt.s32.totalorder %s46, 1
        %s980 = scalar_select %p979, %s46, 1
        %s981 = scalar_lea.vmem %s8, %s980
        %p982 = pneg %p277
        %p983 = pneg %p274
        %p984 = scmp.lt.s32.totalorder %s46, 1
        %s985 = scalar_select %p984, %s46, 1
        %s986 = scalar_lea.vmem %s9, %s985
        %p987 = pneg %p303
        %p988 = pneg %p300
        %p989 = scmp.lt.s32.totalorder %s46, 1
        %s990 = scalar_select %p989, %s46, 1
        %s991 = smul.addr %s990, 4
        %s992 = smul.addr %s991, 8
        %s993 = scalar_lea.vmem %s10, %s992
        %p994 = pneg %p329
        %p995 = pneg %p326
        %p996 = scmp.lt.s32.totalorder %s46, 1
        %s997 = scalar_select %p996, %s46, 1
        %s998 = scalar_lea.vmem %s11, %s997
        %p999 = pneg %p355
        %p1000 = pneg %p352
        %p1001 = scmp.lt.s32.totalorder %s46, 1
        %s1002 = scalar_select %p1001, %s46, 1
        %s1003 = smul.addr %s1002, 4
        %s1004 = smul.addr %s1003, 8
        %s1005 = scalar_lea.vmem %s12, %s1004
        %p1006 = pneg %p381
        %p1007 = pneg %p378
        %p1008 = scmp.lt.s32.totalorder %s46, 1
        %s1009 = scalar_select %p1008, %s46, 1
        %s1010 = scalar_lea.vmem %s13, %s1009
        %p1011 = pneg %p407
        %p1012 = pneg %p404
        %p1013 = scmp.lt.s32.totalorder %s46, 1
        %s1014 = scalar_select %p1013, %s46, 1
        %s1015 = smul.addr %s1014, 4
        %s1016 = smul.addr %s1015, 8
        %s1017 = scalar_lea.vmem %s14, %s1016
        %p1018 = pneg %p433
        %p1019 = pneg %p430
        %p1020 = scmp.lt.s32.totalorder %s46, 1
        %s1021 = scalar_select %p1020, %s46, 1
        %s1022 = scalar_lea.vmem %s15, %s1021
        %p1023 = pneg %p459
        %p1024 = pneg %p456
        %p1025 = scmp.lt.s32.totalorder %s46, 1
        %s1026 = scalar_select %p1025, %s46, 1
        %s1027 = scalar_lea.vmem %s16, %s1026
        %p1028 = pneg %p485
        %p1029 = pneg %p482
        %p1030 = scmp.lt.s32.totalorder %s46, 1
        %s1031 = scalar_select %p1030, %s46, 1
        %s1032 = scalar_lea.vmem %s17, %s1031
        %p1033 = pneg %p511
        %p1034 = pneg %p508
        %p1035 = scmp.lt.s32.totalorder %s46, 1
        %s1036 = scalar_select %p1035, %s46, 1
        %s1037 = smul.addr %s1036, 4
        %s1038 = smul.addr %s1037, 8
        %s1039 = scalar_lea.vmem %s18, %s1038
        %p1040 = pneg %p537
        %p1041 = pneg %p534
        %p1042 = scmp.lt.s32.totalorder %s46, 1
        %s1043 = scalar_select %p1042, %s46, 1
        %s1044 = scalar_lea.vmem %s19, %s1043
        %p1045 = pneg %p563
        %p1046 = pneg %p560
        %p1047 = scmp.lt.s32.totalorder %s46, 1
        %s1048 = scalar_select %p1047, %s46, 1
        %s1049 = smul.addr %s1048, 8
        %s1050 = smul.addr %s1049, 8
        %s1051 = scalar_lea.vmem %s20, %s1050
        %p1052 = pneg %p589
        %p1053 = pneg %p586
        %p1054 = scmp.lt.s32.totalorder %s46, 1
        %s1055 = scalar_select %p1054, %s46, 1
        %s1056 = scalar_lea.vmem %s21, %s1055
        %p1057 = pneg %p615
        %p1058 = pneg %p612
        %p1059 = scmp.lt.s32.totalorder %s46, 1
        %s1060 = scalar_select %p1059, %s46, 1
        %s1061 = scalar_lea.vmem %s22, %s1060
        %p1062 = pneg %p641
        %p1063 = pneg %p638
        %p1064 = scmp.lt.s32.totalorder %s46, 1
        %s1065 = scalar_select %p1064, %s46, 1
        %s1066 = scalar_lea.vmem %s23, %s1065
        %p1067 = pneg %p667
        %p1068 = pneg %p664
        %p1069 = pneg %p693
        %p1070 = pneg %p690
        %s1071 = sand.u32 %s680, 1
        %s1072 = scalar_lea.sflag [#allocation3], %s1071
        %s1073 = sand.u32 %s680, 1
        %s1074 = smul.addr %s1073, 8
        %s1075 = scalar_lea.vmem [#allocation2], %s1074
        %p1076 = pneg %p723
        %p1077 = pneg %p720
        %s1078 = smul.u32 %s46, 2
        %s1079 = sadd.s32 %s1078, %s45
        %p1080 = scmp.lt.s32.totalorder %s1079, 3
        %s1081 = scalar_select %p1080, %s1079, 3
        %s1082 = smul.addr %s1081, 4
        %s1083 = smul.addr %s1082, 8
        %s1084 = scalar_lea.vmem %s25, %s1083
        %p1085 = pneg %p753
        %p1086 = pneg %p750
        %s1087 = smul.u32 %s46, 2
        %s1088 = sadd.s32 %s1087, %s45
        %p1089 = scmp.lt.s32.totalorder %s1088, 3
        %s1090 = scalar_select %p1089, %s1088, 3
        %s1091 = smul.addr %s1090, 4
        %s1092 = smul.addr %s1091, 8
        %s1093 = scalar_lea.vmem %s26, %s1092
        %p1094 = scmp.lt.s32.totalorder %s45, 1
        %s1095 = scalar_select %p1094, %s45, 1
        %s1096 = smul.addr %s1095, 8
        %s1097 = scalar_lea.vmem %s0, %s1096
        %p1098 = scmp.lt.s32.totalorder %s45, 1
        %s1099 = scalar_select %p1098, %s45, 1
        %s1100 = smul.addr %s1099, 8
        %s1101 = scalar_lea.vmem %s1, %s1100
        %p1102 = scmp.lt.s32.totalorder %s45, 1
        %s1103 = scalar_select %p1102, %s45, 1
        %s1104 = scalar_lea.vmem %s3, %s1103
        %p1105 = scmp.lt.s32.totalorder %s46, 1
        %s1106 = scalar_select %p1105, %s46, 1
        %s1107 = smul.addr %s1106, 4
        %s1108 = smul.addr %s1107, 8
        %s1109 = scalar_lea.vmem %s4, %s1108
        %p1110 = scmp.lt.s32.totalorder %s46, 1
        %s1111 = scalar_select %p1110, %s46, 1
        %s1112 = scalar_lea.vmem %s5, %s1111
        %p1113 = scmp.lt.s32.totalorder %s46, 1
        %s1114 = scalar_select %p1113, %s46, 1
        %s1115 = smul.addr %s1114, 4
        %s1116 = smul.addr %s1115, 8
        %s1117 = scalar_lea.vmem %s6, %s1116
        %p1118 = scmp.lt.s32.totalorder %s46, 1
        %s1119 = scalar_select %p1118, %s46, 1
        %s1120 = scalar_lea.vmem %s7, %s1119
        %p1121 = scmp.lt.s32.totalorder %s46, 1
        %s1122 = scalar_select %p1121, %s46, 1
        %s1123 = scalar_lea.vmem %s8, %s1122
        %p1124 = scmp.lt.s32.totalorder %s46, 1
        %s1125 = scalar_select %p1124, %s46, 1
        %s1126 = scalar_lea.vmem %s9, %s1125
        %p1127 = scmp.lt.s32.totalorder %s46, 1
        %s1128 = scalar_select %p1127, %s46, 1
        %s1129 = smul.addr %s1128, 4
        %s1130 = smul.addr %s1129, 8
        %s1131 = scalar_lea.vmem %s10, %s1130
        %p1132 = scmp.lt.s32.totalorder %s46, 1
        %s1133 = scalar_select %p1132, %s46, 1
        %s1134 = scalar_lea.vmem %s11, %s1133
        %p1135 = scmp.lt.s32.totalorder %s46, 1
        %s1136 = scalar_select %p1135, %s46, 1
        %s1137 = smul.addr %s1136, 4
        %s1138 = smul.addr %s1137, 8
        %s1139 = scalar_lea.vmem %s12, %s1138
        %p1140 = scmp.lt.s32.totalorder %s46, 1
        %s1141 = scalar_select %p1140, %s46, 1
        %s1142 = scalar_lea.vmem %s13, %s1141
        %p1143 = scmp.lt.s32.totalorder %s46, 1
        %s1144 = scalar_select %p1143, %s46, 1
        %s1145 = smul.addr %s1144, 4
        %s1146 = smul.addr %s1145, 8
        %s1147 = scalar_lea.vmem %s14, %s1146
        %p1148 = scmp.lt.s32.totalorder %s46, 1
        %s1149 = scalar_select %p1148, %s46, 1
        %s1150 = scalar_lea.vmem %s15, %s1149
        %p1151 = scmp.lt.s32.totalorder %s46, 1
        %s1152 = scalar_select %p1151, %s46, 1
        %s1153 = scalar_lea.vmem %s16, %s1152
        %p1154 = scmp.lt.s32.totalorder %s46, 1
        %s1155 = scalar_select %p1154, %s46, 1
        %s1156 = scalar_lea.vmem %s17, %s1155
        %p1157 = scmp.lt.s32.totalorder %s46, 1
        %s1158 = scalar_select %p1157, %s46, 1
        %s1159 = smul.addr %s1158, 4
        %s1160 = smul.addr %s1159, 8
        %s1161 = scalar_lea.vmem %s18, %s1160
        %p1162 = scmp.lt.s32.totalorder %s46, 1
        %s1163 = scalar_select %p1162, %s46, 1
        %s1164 = scalar_lea.vmem %s19, %s1163
        %p1165 = scmp.lt.s32.totalorder %s46, 1
        %s1166 = scalar_select %p1165, %s46, 1
        %s1167 = smul.addr %s1166, 8
        %s1168 = smul.addr %s1167, 8
        %s1169 = scalar_lea.vmem %s20, %s1168
        %p1170 = scmp.lt.s32.totalorder %s46, 1
        %s1171 = scalar_select %p1170, %s46, 1
        %s1172 = scalar_lea.vmem %s21, %s1171
        %p1173 = scmp.lt.s32.totalorder %s46, 1
        %s1174 = scalar_select %p1173, %s46, 1
        %s1175 = scalar_lea.vmem %s22, %s1174
        %p1176 = scmp.lt.s32.totalorder %s46, 1
        %s1177 = scalar_select %p1176, %s46, 1
        %s1178 = scalar_lea.vmem %s23, %s1177
        %s1179 = smul.u32 %s46, 2
        %s1180 = sadd.s32 %s1179, %s45
        %p1181 = scmp.lt.s32.totalorder %s1180, 3
        %s1182 = scalar_select %p1181, %s1180, 3
        %s1183 = smul.addr %s1182, 4
        %s1184 = smul.addr %s1183, 8
        %s1185 = scalar_lea.vmem %s25, %s1184
        %s1186 = smul.u32 %s46, 2
        %s1187 = sadd.s32 %s1186, %s45
        %s1188 = smul.u32 %s46, 2
        %s1189 = sadd.s32 %s1188, %s45
        %p1190 = scmp.lt.s32.totalorder %s1189, 3
        %s1191 = scalar_select %p1190, %s1189, 3
        %s1192 = smul.addr %s1191, 4
        %s1193 = smul.addr %s1192, 8
        %s1194 = scalar_lea.vmem %s26, %s1193
        %s1195 = smul.u32 %s46, 2
        %s1196 = sadd.s32 %s1195, %s45
        %p1198 = scmp.eq.s32.totalorder %s46, 0
        // Predicated region
        $region117: #{decoder_forward.1} parent=115 // pred_check
          %p1199 = pneg %p1198
        $region118: #{decoder_forward.1} parent=115 // pred_check_branch
          %1201 = sbr.rel (%p1199) target = $region120
        $region119: #{decoder_forward.1} parent=115 // pred_region
          %v1202 = vld [vmem:[%s1097] sm:$0xff]
          %vm1203 = vcmask 261120
          %1204 = vst.msk [vmem:[%s1075] sm:$0xff] %vm1203, %v1202
        $region120: #{decoder_forward.1} parent=115 // pred_fallthru
          _
        %v1205 = vld [vmem:[%s1075] sm:$0xff]
        %v1206 = vld [vmem:[%s1101] sm:$0xff]
        %v1207 = vld [vmem:[%s2] sm:$0xff]
        %v1208 = vld [vmem:[%s1104] sm:$0x1]
        %v1209 = vld [vmem:[%s1109] sm:$0xff]
        %v1210 = vld [vmem:[%s1109 + $0x8] sm:$0xff]
        %v1211 = vld [vmem:[%s1109 + $0x10] sm:$0xff]
        %v1212 = vld [vmem:[%s1109 + $0x18] sm:$0xff]
        %v1213 = vpack.c.bf16 %v1205, %v1205
        %v1214 = vpack.c.bf16 %v1210, %v1209
        %v1215 = vpack.c.bf16 %v1212, %v1211
        %v1216 = vld [vmem:[%s1112] sm:$0x1]
        %v1218 = vlaneseq
        %v1219 = vshrl.u32 %v1218, 7
        %v1220 = vsub.s32 0, %v1219
        %v1221 = vrot.slane %v1216, %v1220
        %vm1223 = vcmask 261120
        %v1225 = vsel %vm1223, %v1213, 0
        %1227 = vmatprep.subr.bf16.mxu0 0
        %1228 = vmatpush1.bf16.msra.mxu0 %v1214
        %1229 = vmatprep.subr.bf16.mxu0 0
        %1230 = vmatpush1.bf16.msra.mxu0 %v1215
        %1231 = vmatprep.subr.bf16.mxu0 0
        %1232 = vmatpush1.bf16.msra.mxu0 0
        %1233 = vmatprep.subr.bf16.mxu0 0
        %1234 = vmatpush1.bf16.msra.mxu0 0
        %1235 = vmatprep.subr.bf16.mxu0 0
        %1236 = vmatpush1.bf16.msra.mxu0 0
        %1237 = vmatprep.subr.bf16.mxu0 0
        %1238 = vmatpush1.bf16.msra.mxu0 0
        %1239 = vmatprep.subr.bf16.mxu0 0
        %1240 = vmatpush1.bf16.msra.mxu0 0
        %1241 = vmatprep.subr.bf16.mxu0 0
        %1242 = vmatpush1.bf16.msra.mxu0 0
        %1243 = vmatprep.subr.bf16.mxu0 0
        %1244 = vmatpush1.bf16.msra.mxu0 0
        %1245 = vmatprep.subr.bf16.mxu0 0
        %1246 = vmatpush1.bf16.msra.mxu0 0
        %1247 = vmatprep.subr.bf16.mxu0 0
        %1248 = vmatpush1.bf16.msra.mxu0 0
        %1249 = vmatprep.subr.bf16.mxu0 0
        %1250 = vmatpush1.bf16.msra.mxu0 0
        %1251 = vmatprep.subr.bf16.mxu0 0
        %1252 = vmatpush1.bf16.msra.mxu0 0
        %1253 = vmatprep.subr.bf16.mxu0 0
        %1254 = vmatpush1.bf16.msra.mxu0 0
        %1255 = vmatprep.subr.bf16.mxu0 0
        %1256 = vmatpush1.bf16.msra.mxu0 0
        %1257 = vmatprep.subr.bf16.mxu0 0
        %1258 = vmatpush1.bf16.msra.mxu0 0
        %1259 = vmatprep.mubr.bf16.mxu0 0
        %1260 = vmatmul.mubr.bf16.gmra.mrb[0].mxu0 %v1225
        %v1261 = vpop.f32.mrb[0].mxu0
        %v1262 = vadd.f32 %v1221, %v1261
        %v1263 = vpop.f32.mrb[0].mxu0
        %v1264 = vpop.f32.mrb[0].mxu0
        %v1265 = vpop.f32.mrb[0].mxu0
        %1266 = vdwg.mxu0
        %v1267 = vld [vmem:[%s1117] sm:$0xff]
        %v1268 = vld [vmem:[%s1117 + $0x8] sm:$0xff]
        %v1269 = vld [vmem:[%s1117 + $0x10] sm:$0xff]
        %v1270 = vld [vmem:[%s1117 + $0x18] sm:$0xff]
        %v1271 = vld [vmem:[%s1120] sm:$0x1]
        %v1272 = vmul.f32 %v1207, -1e+09
        %1274 = vrot.lane.b32.xlu0 %v1262, 96
        %v1275 = vpop.permute.xlu0 %1274
        %vm1276 = vcmask 64512
        %v1277 = vsel %vm1276, %v1262, 0
        %v1279 = vsel %vm1276, %v1275, 0
        %1281 = vmatprep.subr.mxu0 0.0
        %1282 = vmatpush1.xpose.msra.mxu0 %v1279
        %1283 = vmatprep.subr.mxu0 0.0
        %1284 = vmatpush1.xpose.msra.mxu0 0.0
        %1285 = vmatprep.subr.mxu0 0.0
        %1286 = vmatpush1.xpose.msra.mxu0 0.0
        %1287 = vmatprep.subr.mxu0 0.0
        %1288 = vmatpush1.xpose.msra.mxu0 0.0
        %1289 = vmatprep.subr.mxu0 0.0
        %1290 = vmatpush1.xpose.msra.mxu0 0.0
        %1291 = vmatprep.subr.mxu0 0.0
        %1292 = vmatpush1.xpose.msra.mxu0 0.0
        %1293 = vmatprep.subr.mxu0 0.0
        %1294 = vmatpush1.xpose.msra.mxu0 0.0
        %1295 = vmatprep.subr.mxu0 0.0
        %1296 = vmatpush1.xpose.msra.mxu0 0.0
        %1297 = vmatprep.subr.mxu0 0.0
        %1298 = vmatpush1.xpose.msra.mxu0 0.0
        %1299 = vmatprep.subr.mxu0 0.0
        %1300 = vmatpush1.xpose.msra.mxu0 0.0
        %1301 = vmatprep.subr.mxu0 0.0
        %1302 = vmatpush1.xpose.msra.mxu0 0.0
        %1303 = vmatprep.subr.mxu0 0.0
        %1304 = vmatpush1.xpose.msra.mxu0 0.0
        %1305 = vmatprep.subr.mxu0 0.0
        %1306 = vmatpush1.xpose.msra.mxu0 0.0
        %1307 = vmatprep.subr.mxu0 0.0
        %1308 = vmatpush1.xpose.msra.mxu0 0.0
        %1309 = vmatprep.subr.mxu0 0.0
        %1310 = vmatpush1.xpose.msra.mxu0 0.0
        %1311 = vmatprep.subr.mxu0 0.0
        %1312 = vmatpush1.xpose.msra.mxu0 0.0
        %1313 = vmatprep.subr.mxu0 0.0
        %1314 = vmatpush1.xpose.msra.mxu0 0.0
        %1315 = vmatprep.subr.mxu0 0.0
        %1316 = vmatpush1.xpose.msra.mxu0 0.0
        %1317 = vmatprep.subr.mxu0 0.0
        %1318 = vmatpush1.xpose.msra.mxu0 0.0
        %1319 = vmatprep.subr.mxu0 0.0
        %1320 = vmatpush1.xpose.msra.mxu0 0.0
        %1321 = vmatprep.subr.mxu0 0.0
        %1322 = vmatpush1.xpose.msra.mxu0 0.0
        %1323 = vmatprep.subr.mxu0 0.0
        %1324 = vmatpush1.xpose.msra.mxu0 0.0
        %1325 = vmatprep.subr.mxu0 0.0
        %1326 = vmatpush1.xpose.msra.mxu0 0.0
        %1327 = vmatprep.subr.mxu0 0.0
        %1328 = vmatpush1.xpose.msra.mxu0 0.0
        %1329 = vmatprep.subr.mxu0 0.0
        %1330 = vmatpush1.xpose.msra.mxu0 0.0
        %1331 = vmatprep.subr.mxu0 0.0
        %1332 = vmatpush1.xpose.msra.mxu0 0.0
        %1333 = vmatprep.subr.mxu0 0.0
        %1334 = vmatpush1.xpose.msra.mxu0 0.0
        %1335 = vmatprep.subr.mxu0 0.0
        %1336 = vmatpush1.xpose.msra.mxu0 0.0
        %1337 = vmatprep.subr.mxu0 0.0
        %1338 = vmatpush1.xpose.msra.mxu0 0.0
        %1339 = vmatprep.subr.mxu0 0.0
        %1340 = vmatpush1.xpose.msra.mxu0 0.0
        %1341 = vmatprep.subr.mxu0 0.0
        %1342 = vmatpush1.xpose.msra.mxu0 0.0
        %1343 = vmatprep.subr.mxu0 0.0
        %1344 = vmatpush1.xpose.msra.mxu0 0.0
        %1345 = vmatprep.mubr.f32.mxu0 0.0
        %1346 = vmatmul.mubr.f32.gmra.mrb[0].mxu0 %v1277
        %v1347 = vpop.f32.mrb[0].mxu0
        %v1348 = vadd.f32 0.0, %v1347
        %v1349 = vpop.f32.mrb[0].mxu0
        %1350 = vdwg.mxu0
        %v1351 = vmul.f32 %v1348, 0.35355338
        %v1352 = vadd.f32 %v1351, %v1272
        %v1353 = vsel %vm1276, %v1352, -inf
        %1354 = vmax.xlane.f32.xlu0 %v1353
        %v1355 = vpop.xlane.xlu0 %1354
        %v1356 = vsub.f32 %v1352, %v1355
        %v1357 = vmul.f32 %v1356, 1.442695
        %v1358 = vpow.pop %v1357
        %v1359 = vsel %vm1276, %v1358, 0.0
        %1360 = vadd.xlane.f32.xlu0 %v1359
        %v1361 = vpop.xlane.xlu0 %1360
        %v1362 = vrcp.pop %v1361
        %v1363 = vmul.f32 %v1358, %v1362
        %1364 = vst.msk [vmem:[%s1185] sm:$0xff] %vm1276, %v1363
        %v1365 = vpack.c.bf16 %v1363, %v1363
        %v1366 = vpack.c.bf16 %v1262, %v1262
        %1368 = vrot.lane.b32.xlu0 %v1366, 64
        %v1369 = vpop.permute.xlu0 %1368
        %v1371 = vsel %vm1276, %v1365, 0
        %vm1373 = vcmask 1043456
        %v1375 = vsel %vm1373, %v1369, 0
        %1377 = vmatprep.subr.bf16.mxu0 0
        %1378 = vmatpush1.bf16.msra.mxu0 %v1375
        %1379 = vmatprep.subr.bf16.mxu0 0
        %1380 = vmatpush1.bf16.msra.mxu0 0
        %1381 = vmatprep.subr.bf16.mxu0 0
        %1382 = vmatpush1.bf16.msra.mxu0 0
        %1383 = vmatprep.subr.bf16.mxu0 0
        %1384 = vmatpush1.bf16.msra.mxu0 0
        %1385 = vmatprep.subr.bf16.mxu0 0
        %1386 = vmatpush1.bf16.msra.mxu0 0
        %1387 = vmatprep.subr.bf16.mxu0 0
        %1388 = vmatpush1.bf16.msra.mxu0 0
        %1389 = vmatprep.subr.bf16.mxu0 0
        %1390 = vmatpush1.bf16.msra.mxu0 0
        %1391 = vmatprep.subr.bf16.mxu0 0
        %1392 = vmatpush1.bf16.msra.mxu0 0
        %1393 = vmatprep.subr.bf16.mxu0 0
        %1394 = vmatpush1.bf16.msra.mxu0 0
        %1395 = vmatprep.subr.bf16.mxu0 0
        %1396 = vmatpush1.bf16.msra.mxu0 0
        %1397 = vmatprep.subr.bf16.mxu0 0
        %1398 = vmatpush1.bf16.msra.mxu0 0
        %1399 = vmatprep.subr.bf16.mxu0 0
        %1400 = vmatpush1.bf16.msra.mxu0 0
        %1401 = vmatprep.subr.bf16.mxu0 0
        %1402 = vmatpush1.bf16.msra.mxu0 0
        %1403 = vmatprep.subr.bf16.mxu0 0
        %1404 = vmatpush1.bf16.msra.mxu0 0
        %1405 = vmatprep.subr.bf16.mxu0 0
        %1406 = vmatpush1.bf16.msra.mxu0 0
        %1407 = vmatprep.subr.bf16.mxu0 0
        %1408 = vmatpush1.bf16.msra.mxu0 0
        %1409 = vmatprep.mubr.bf16.mxu0 0
        %1410 = vmatmul.mubr.bf16.gmra.mrb[0].mxu0 %v1371
        %v1411 = vpop.f32.mrb[0].mxu0
        %v1412 = vadd.f32 0.0, %v1411
        %v1413 = vpop.f32.mrb[0].mxu0
        %v1414 = vpop.f32.mrb[0].mxu0
        %v1415 = vpop.f32.mrb[0].mxu0
        %1416 = vdwg.mxu0
        %v1417 = vpack.c.bf16 %v1412, %v1412
        %v1418 = vpack.c.bf16 %v1267, %v1267
        %1419 = vrot.lane.b32.xlu0 %v1262, 120
        %v1420 = vpop.permute.xlu0 %1419
        %1421 = vrot.lane.b32.xlu0 %v1262, 88
        %v1422 = vpop.permute.xlu0 %1421
        %v1423 = vsel %vm1276, %v1420, 0
        %v1425 = vsel %vm1276, %v1422, 0
        %1427 = vmatprep.subr.mxu0 0.0
        %1428 = vmatpush1.xpose.msra.mxu0 %v1425
        %1429 = vmatprep.subr.mxu0 0.0
        %1430 = vmatpush1.xpose.msra.mxu0 0.0
        %1431 = vmatprep.subr.mxu0 0.0
        %1432 = vmatpush1.xpose.msra.mxu0 0.0
        %1433 = vmatprep.subr.mxu0 0.0
        %1434 = vmatpush1.xpose.msra.mxu0 0.0
        %1435 = vmatprep.subr.mxu0 0.0
        %1436 = vmatpush1.xpose.msra.mxu0 0.0
        %1437 = vmatprep.subr.mxu0 0.0
        %1438 = vmatpush1.xpose.msra.mxu0 0.0
        %1439 = vmatprep.subr.mxu0 0.0
        %1440 = vmatpush1.xpose.msra.mxu0 0.0
        %1441 = vmatprep.subr.mxu0 0.0
        %1442 = vmatpush1.xpose.msra.mxu0 0.0
        %1443 = vmatprep.subr.mxu0 0.0
        %1444 = vmatpush1.xpose.msra.mxu0 0.0
        %1445 = vmatprep.subr.mxu0 0.0
        %1446 = vmatpush1.xpose.msra.mxu0 0.0
        %1447 = vmatprep.subr.mxu0 0.0
        %1448 = vmatpush1.xpose.msra.mxu0 0.0
        %1449 = vmatprep.subr.mxu0 0.0
        %1450 = vmatpush1.xpose.msra.mxu0 0.0
        %1451 = vmatprep.subr.mxu0 0.0
        %1452 = vmatpush1.xpose.msra.mxu0 0.0
        %1453 = vmatprep.subr.mxu0 0.0
        %1454 = vmatpush1.xpose.msra.mxu0 0.0
        %1455 = vmatprep.subr.mxu0 0.0
        %1456 = vmatpush1.xpose.msra.mxu0 0.0
        %1457 = vmatprep.subr.mxu0 0.0
        %1458 = vmatpush1.xpose.msra.mxu0 0.0
        %1459 = vmatprep.subr.mxu0 0.0
        %1460 = vmatpush1.xpose.msra.mxu0 0.0
        %1461 = vmatprep.subr.mxu0 0.0
        %1462 = vmatpush1.xpose.msra.mxu0 0.0
        %1463 = vmatprep.subr.mxu0 0.0
        %1464 = vmatpush1.xpose.msra.mxu0 0.0
        %1465 = vmatprep.subr.mxu0 0.0
        %1466 = vmatpush1.xpose.msra.mxu0 0.0
        %1467 = vmatprep.subr.mxu0 0.0
        %1468 = vmatpush1.xpose.msra.mxu0 0.0
        %1469 = vmatprep.subr.mxu0 0.0
        %1470 = vmatpush1.xpose.msra.mxu0 0.0
        %1471 = vmatprep.subr.mxu0 0.0
        %1472 = vmatpush1.xpose.msra.mxu0 0.0
        %1473 = vmatprep.subr.mxu0 0.0
        %1474 = vmatpush1.xpose.msra.mxu0 0.0
        %1475 = vmatprep.subr.mxu0 0.0
        %1476 = vmatpush1.xpose.msra.mxu0 0.0
        %1477 = vmatprep.subr.mxu0 0.0
        %1478 = vmatpush1.xpose.msra.mxu0 0.0
        %1479 = vmatprep.subr.mxu0 0.0
        %1480 = vmatpush1.xpose.msra.mxu0 0.0
        %1481 = vmatprep.subr.mxu0 0.0
        %1482 = vmatpush1.xpose.msra.mxu0 0.0
        %1483 = vmatprep.subr.mxu0 0.0
        %1484 = vmatpush1.xpose.msra.mxu0 0.0
        %1485 = vmatprep.subr.mxu0 0.0
        %1486 = vmatpush1.xpose.msra.mxu0 0.0
        %1487 = vmatprep.subr.mxu0 0.0
        %1488 = vmatpush1.xpose.msra.mxu0 0.0
        %1489 = vmatprep.subr.mxu0 0.0
        %1490 = vmatpush1.xpose.msra.mxu0 0.0
        %1491 = vmatprep.mubr.f32.mxu0 0.0
        %1492 = vmatmul.mubr.f32.gmra.mrb[0].mxu0 %v1423
        %v1493 = vpop.f32.mrb[0].mxu0
        %v1494 = vadd.f32 0.0, %v1493
        %v1495 = vpop.f32.mrb[0].mxu0
        %1496 = vdwg.mxu0
        %v1497 = vmul.f32 %v1494, 0.35355338
        %v1498 = vadd.f32 %v1497, %v1272
        %v1499 = vsel %vm1276, %v1498, -inf
        %1500 = vmax.xlane.f32.xlu0 %v1499
        %v1501 = vpop.xlane.xlu0 %1500
        %v1502 = vsub.f32 %v1498, %v1501
        %v1503 = vmul.f32 %v1502, 1.442695
        %v1504 = vpow.pop %v1503
        %v1505 = vsel %vm1276, %v1504, 0.0
        %1506 = vadd.xlane.f32.xlu0 %v1505
        %v1507 = vpop.xlane.xlu0 %1506
        %v1508 = vrcp.pop %v1507
        %v1509 = vmul.f32 %v1504, %v1508
        %s1510 = scalar_lea.vmem %s1185, 8
        %1511 = vst.msk [vmem:[%s1510] sm:$0xff] %vm1276, %v1509
        %v1512 = vpack.c.bf16 %v1509, %v1509
        %1513 = vrot.lane.b32.xlu0 %v1366, 56
        %v1514 = vpop.permute.xlu0 %1513
        %v1516 = vsel %vm1276, %v1512, 0
        %v1519 = vsel %vm1373, %v1514, 0
        %1521 = vmatprep.subr.bf16.mxu0 0
        %1522 = vmatpush1.bf16.msra.mxu0 %v1519
        %1523 = vmatprep.subr.bf16.mxu0 0
        %1524 = vmatpush1.bf16.msra.mxu0 0
        %1525 = vmatprep.subr.bf16.mxu0 0
        %1526 = vmatpush1.bf16.msra.mxu0 0
        %1527 = vmatprep.subr.bf16.mxu0 0
        %1528 = vmatpush1.bf16.msra.mxu0 0
        %1529 = vmatprep.subr.bf16.mxu0 0
        %1530 = vmatpush1.bf16.msra.mxu0 0
        %1531 = vmatprep.subr.bf16.mxu0 0
        %1532 = vmatpush1.bf16.msra.mxu0 0
        %1533 = vmatprep.subr.bf16.mxu0 0
        %1534 = vmatpush1.bf16.msra.mxu0 0
        %1535 = vmatprep.subr.bf16.mxu0 0
        %1536 = vmatpush1.bf16.msra.mxu0 0
        %1537 = vmatprep.subr.bf16.mxu0 0
        %1538 = vmatpush1.bf16.msra.mxu0 0
        %1539 = vmatprep.subr.bf16.mxu0 0
        %1540 = vmatpush1.bf16.msra.mxu0 0
        %1541 = vmatprep.subr.bf16.mxu0 0
        %1542 = vmatpush1.bf16.msra.mxu0 0
        %1543 = vmatprep.subr.bf16.mxu0 0
        %1544 = vmatpush1.bf16.msra.mxu0 0
        %1545 = vmatprep.subr.bf16.mxu0 0
        %1546 = vmatpush1.bf16.msra.mxu0 0
        %1547 = vmatprep.subr.bf16.mxu0 0
        %1548 = vmatpush1.bf16.msra.mxu0 0
        %1549 = vmatprep.subr.bf16.mxu0 0
        %1550 = vmatpush1.bf16.msra.mxu0 0
        %1551 = vmatprep.subr.bf16.mxu0 0
        %1552 = vmatpush1.bf16.msra.mxu0 0
        %1553 = vmatprep.mubr.bf16.mxu0 0
        %1554 = vmatmul.mubr.bf16.gmra.mrb[0].mxu0 %v1516
        %v1555 = vpop.f32.mrb[0].mxu0
        %v1556 = vadd.f32 0.0, %v1555
        %v1557 = vpop.f32.mrb[0].mxu0
        %v1558 = vpop.f32.mrb[0].mxu0
        %v1559 = vpop.f32.mrb[0].mxu0
        %1560 = vdwg.mxu0
        %v1561 = vpack.c.bf16 %v1556, %v1556
        %v1562 = vpack.c.bf16 %v1268, %v1268
        %v1564 = vsel %vm1276, %v1561, 0
        %v1567 = vsel %vm1373, %v1562, 0
        %1569 = vmatprep.subr.bf16.mxu0 0
        %1570 = vmatpush1.bf16.msra.mxu0 %v1567
        %1571 = vmatprep.subr.bf16.mxu0 0
        %1572 = vmatpush1.bf16.msra.mxu0 0
        %1573 = vmatprep.subr.bf16.mxu0 0
        %1574 = vmatpush1.bf16.msra.mxu0 0
        %1575 = vmatprep.subr.bf16.mxu0 0
        %1576 = vmatpush1.bf16.msra.mxu0 0
        %1577 = vmatprep.subr.bf16.mxu0 0
        %1578 = vmatpush1.bf16.msra.mxu0 0
        %1579 = vmatprep.subr.bf16.mxu0 0
        %1580 = vmatpush1.bf16.msra.mxu0 0
        %1581 = vmatprep.subr.bf16.mxu0 0
        %1582 = vmatpush1.bf16.msra.mxu0 0
        %1583 = vmatprep.subr.bf16.mxu0 0
        %1584 = vmatpush1.bf16.msra.mxu0 0
        %1585 = vmatprep.subr.bf16.mxu0 0
        %1586 = vmatpush1.bf16.msra.mxu0 0
        %1587 = vmatprep.subr.bf16.mxu0 0
        %1588 = vmatpush1.bf16.msra.mxu0 0
        %1589 = vmatprep.subr.bf16.mxu0 0
        %1590 = vmatpush1.bf16.msra.mxu0 0
        %1591 = vmatprep.subr.bf16.mxu0 0
        %1592 = vmatpush1.bf16.msra.mxu0 0
        %1593 = vmatprep.subr.bf16.mxu0 0
        %1594 = vmatpush1.bf16.msra.mxu0 0
        %1595 = vmatprep.subr.bf16.mxu0 0
        %1596 = vmatpush1.bf16.msra.mxu0 0
        %1597 = vmatprep.subr.bf16.mxu0 0
        %1598 = vmatpush1.bf16.msra.mxu0 0
        %1599 = vmatprep.subr.bf16.mxu0 0
        %1600 = vmatpush1.bf16.msra.mxu0 0
        %1601 = vmatprep.mubr.bf16.mxu0 0
        %1602 = vmatmul.mubr.bf16.gmra.mrb[0].mxu0 %v1564
        %v1603 = vpop.f32.mrb[0].mxu0
        %v1604 = vadd.f32 0.0, %v1603
        %v1605 = vpop.f32.mrb[0].mxu0
        %v1606 = vpop.f32.mrb[0].mxu0
        %v1607 = vpop.f32.mrb[0].mxu0
        %1608 = vdwg.mxu0
        %v1610 = vsel %vm1276, %v1417, 0
        %v1613 = vsel %vm1373, %v1418, 0
        %1615 = vmatprep.subr.bf16.mxu0 0
        %1616 = vmatpush1.bf16.msra.mxu0 %v1613
        %1617 = vmatprep.subr.bf16.mxu0 0
        %1618 = vmatpush1.bf16.msra.mxu0 0
        %1619 = vmatprep.subr.bf16.mxu0 0
        %1620 = vmatpush1.bf16.msra.mxu0 0
        %1621 = vmatprep.subr.bf16.mxu0 0
        %1622 = vmatpush1.bf16.msra.mxu0 0
        %1623 = vmatprep.subr.bf16.mxu0 0
        %1624 = vmatpush1.bf16.msra.mxu0 0
        %1625 = vmatprep.subr.bf16.mxu0 0
        %1626 = vmatpush1.bf16.msra.mxu0 0
        %1627 = vmatprep.subr.bf16.mxu0 0
        %1628 = vmatpush1.bf16.msra.mxu0 0
        %1629 = vmatprep.subr.bf16.mxu0 0
        %1630 = vmatpush1.bf16.msra.mxu0 0
        %1631 = vmatprep.subr.bf16.mxu0 0
        %1632 = vmatpush1.bf16.msra.mxu0 0
        %1633 = vmatprep.subr.bf16.mxu0 0
        %1634 = vmatpush1.bf16.msra.mxu0 0
        %1635 = vmatprep.subr.bf16.mxu0 0
        %1636 = vmatpush1.bf16.msra.mxu0 0
        %1637 = vmatprep.subr.bf16.mxu0 0
        %1638 = vmatpush1.bf16.msra.mxu0 0
        %1639 = vmatprep.subr.bf16.mxu0 0
        %1640 = vmatpush1.bf16.msra.mxu0 0
        %1641 = vmatprep.subr.bf16.mxu0 0
        %1642 = vmatpush1.bf16.msra.mxu0 0
        %1643 = vmatprep.subr.bf16.mxu0 0
        %1644 = vmatpush1.bf16.msra.mxu0 0
        %1645 = vmatprep.subr.bf16.mxu0 0
        %1646 = vmatpush1.bf16.msra.mxu0 0
        %1647 = vmatprep.mubr.bf16.mxu0 0
        %1648 = vmatmul.mubr.bf16.gmra.mrb[0].mxu0 %v1610
        %v1649 = vpop.f32.mrb[0].mxu0
        %v1650 = vadd.f32 %v1604, %v1649
        %v1651 = vpop.f32.mrb[0].mxu0
        %v1652 = vpop.f32.mrb[0].mxu0
        %v1653 = vpop.f32.mrb[0].mxu0
        %1654 = vdwg.mxu0
        %1655 = vrot.lane.b32.xlu0 %v1262, 112
        %v1656 = vpop.permute.xlu0 %1655
        %1657 = vrot.lane.b32.xlu0 %v1262, 80
        %v1658 = vpop.permute.xlu0 %1657
        %v1659 = vsel %vm1276, %v1656, 0
        %v1661 = vsel %vm1276, %v1658, 0
        %1663 = vmatprep.subr.mxu0 0.0
        %1664 = vmatpush1.xpose.msra.mxu0 %v1661
        %1665 = vmatprep.subr.mxu0 0.0
        %1666 = vmatpush1.xpose.msra.mxu0 0.0
        %1667 = vmatprep.subr.mxu0 0.0
        %1668 = vmatpush1.xpose.msra.mxu0 0.0
        %1669 = vmatprep.subr.mxu0 0.0
        %1670 = vmatpush1.xpose.msra.mxu0 0.0
        %1671 = vmatprep.subr.mxu0 0.0
        %1672 = vmatpush1.xpose.msra.mxu0 0.0
        %1673 = vmatprep.subr.mxu0 0.0
        %1674 = vmatpush1.xpose.msra.mxu0 0.0
        %1675 = vmatprep.subr.mxu0 0.0
        %1676 = vmatpush1.xpose.msra.mxu0 0.0
        %1677 = vmatprep.subr.mxu0 0.0
        %1678 = vmatpush1.xpose.msra.mxu0 0.0
        %1679 = vmatprep.subr.mxu0 0.0
        %1680 = vmatpush1.xpose.msra.mxu0 0.0
        %1681 = vmatprep.subr.mxu0 0.0
        %1682 = vmatpush1.xpose.msra.mxu0 0.0
        %1683 = vmatprep.subr.mxu0 0.0
        %1684 = vmatpush1.xpose.msra.mxu0 0.0
        %1685 = vmatprep.subr.mxu0 0.0
        %1686 = vmatpush1.xpose.msra.mxu0 0.0
        %1687 = vmatprep.subr.mxu0 0.0
        %1688 = vmatpush1.xpose.msra.mxu0 0.0
        %1689 = vmatprep.subr.mxu0 0.0
        %1690 = vmatpush1.xpose.msra.mxu0 0.0
        %1691 = vmatprep.subr.mxu0 0.0
        %1692 = vmatpush1.xpose.msra.mxu0 0.0
        %1693 = vmatprep.subr.mxu0 0.0
        %1694 = vmatpush1.xpose.msra.mxu0 0.0
        %1695 = vmatprep.subr.mxu0 0.0
        %1696 = vmatpush1.xpose.msra.mxu0 0.0
        %1697 = vmatprep.subr.mxu0 0.0
        %1698 = vmatpush1.xpose.msra.mxu0 0.0
        %1699 = vmatprep.subr.mxu0 0.0
        %1700 = vmatpush1.xpose.msra.mxu0 0.0
        %1701 = vmatprep.subr.mxu0 0.0
        %1702 = vmatpush1.xpose.msra.mxu0 0.0
        %1703 = vmatprep.subr.mxu0 0.0
        %1704 = vmatpush1.xpose.msra.mxu0 0.0
        %1705 = vmatprep.subr.mxu0 0.0
        %1706 = vmatpush1.xpose.msra.mxu0 0.0
        %1707 = vmatprep.subr.mxu0 0.0
        %1708 = vmatpush1.xpose.msra.mxu0 0.0
        %1709 = vmatprep.subr.mxu0 0.0
        %1710 = vmatpush1.xpose.msra.mxu0 0.0
        %1711 = vmatprep.subr.mxu0 0.0
        %1712 = vmatpush1.xpose.msra.mxu0 0.0
        %1713 = vmatprep.subr.mxu0 0.0
        %1714 = vmatpush1.xpose.msra.mxu0 0.0
        %1715 = vmatprep.subr.mxu0 0.0
        %1716 = vmatpush1.xpose.msra.mxu0 0.0
        %1717 = vmatprep.subr.mxu0 0.0
        %1718 = vmatpush1.xpose.msra.mxu0 0.0
        %1719 = vmatprep.subr.mxu0 0.0
        %1720 = vmatpush1.xpose.msra.mxu0 0.0
        %1721 = vmatprep.subr.mxu0 0.0
        %1722 = vmatpush1.xpose.msra.mxu0 0.0
        %1723 = vmatprep.subr.mxu0 0.0
        %1724 = vmatpush1.xpose.msra.mxu0 0.0
        %1725 = vmatprep.subr.mxu0 0.0
        %1726 = vmatpush1.xpose.msra.mxu0 0.0
        %1727 = vmatprep.mubr.f32.mxu0 0.0
        %1728 = vmatmul.mubr.f32.gmra.mrb[0].mxu0 %v1659
        %v1729 = vpop.f32.mrb[0].mxu0
        %v1730 = vadd.f32 0.0, %v1729
        %v1731 = vpop.f32.mrb[0].mxu0
        %1732 = vdwg.mxu0
        %v1733 = vmul.f32 %v1730, 0.35355338
        %v1734 = vadd.f32 %v1733, %v1272
        %v1735 = vsel %vm1276, %v1734, -inf
        %1736 = vmax.xlane.f32.xlu0 %v1735
        %v1737 = vpop.xlane.xlu0 %1736
        %v1738 = vsub.f32 %v1734, %v1737
        %v1739 = vmul.f32 %v1738, 1.442695
        %v1740 = vpow.pop %v1739
        %v1741 = vsel %vm1276, %v1740, 0.0
        %1742 = vadd.xlane.f32.xlu0 %v1741
        %v1743 = vpop.xlane.xlu0 %1742
        %v1744 = vrcp.pop %v1743
        %v1745 = vmul.f32 %v1740, %v1744
        %s1746 = scalar_lea.vmem %s1185, 16
        %1747 = vst.msk [vmem:[%s1746] sm:$0xff] %vm1276, %v1745
        %v1748 = vpack.c.bf16 %v1745, %v1745
        %1749 = vrot.lane.b32.xlu0 %v1366, 48
        %v1750 = vpop.permute.xlu0 %1749
        %v1752 = vsel %vm1276, %v1748, 0
        %v1755 = vsel %vm1373, %v1750, 0
        %1757 = vmatprep.subr.bf16.mxu0 0
        %1758 = vmatpush1.bf16.msra.mxu0 %v1755
        %1759 = vmatprep.subr.bf16.mxu0 0
        %1760 = vmatpush1.bf16.msra.mxu0 0
        %1761 = vmatprep.subr.bf16.mxu0 0
        %1762 = vmatpush1.bf16.msra.mxu0 0
        %1763 = vmatprep.subr.bf16.mxu0 0
        %1764 = vmatpush1.bf16.msra.mxu0 0
        %1765 = vmatprep.subr.bf16.mxu0 0
        %1766 = vmatpush1.bf16.msra.mxu0 0
        %1767 = vmatprep.subr.bf16.mxu0 0
        %1768 = vmatpush1.bf16.msra.mxu0 0
        %1769 = vmatprep.subr.bf16.mxu0 0
        %1770 = vmatpush1.bf16.msra.mxu0 0
        %1771 = vmatprep.subr.bf16.mxu0 0
        %1772 = vmatpush1.bf16.msra.mxu0 0
        %1773 = vmatprep.subr.bf16.mxu0 0
        %1774 = vmatpush1.bf16.msra.mxu0 0
        %1775 = vmatprep.subr.bf16.mxu0 0
        %1776 = vmatpush1.bf16.msra.mxu0 0
        %1777 = vmatprep.subr.bf16.mxu0 0
        %1778 = vmatpush1.bf16.msra.mxu0 0
        %1779 = vmatprep.subr.bf16.mxu0 0
        %1780 = vmatpush1.bf16.msra.mxu0 0
        %1781 = vmatprep.subr.bf16.mxu0 0
        %1782 = vmatpush1.bf16.msra.mxu0 0
        %1783 = vmatprep.subr.bf16.mxu0 0
        %1784 = vmatpush1.bf16.msra.mxu0 0
        %1785 = vmatprep.subr.bf16.mxu0 0
        %1786 = vmatpush1.bf16.msra.mxu0 0
        %1787 = vmatprep.subr.bf16.mxu0 0
        %1788 = vmatpush1.bf16.msra.mxu0 0
        %1789 = vmatprep.mubr.bf16.mxu0 0
        %1790 = vmatmul.mubr.bf16.gmra.mrb[0].mxu0 %v1752
        %v1791 = vpop.f32.mrb[0].mxu0
        %v1792 = vadd.f32 0.0, %v1791
        %v1793 = vpop.f32.mrb[0].mxu0
        %v1794 = vpop.f32.mrb[0].mxu0
        %v1795 = vpop.f32.mrb[0].mxu0
        %1796 = vdwg.mxu0
        %v1797 = vpack.c.bf16 %v1792, %v1792
        %v1798 = vpack.c.bf16 %v1269, %v1269
        %v1800 = vsel %vm1276, %v1797, 0
        %v1803 = vsel %vm1373, %v1798, 0
        %1805 = vmatprep.subr.bf16.mxu0 0
        %1806 = vmatpush1.bf16.msra.mxu0 %v1803
        %1807 = vmatprep.subr.bf16.mxu0 0
        %1808 = vmatpush1.bf16.msra.mxu0 0
        %1809 = vmatprep.subr.bf16.mxu0 0
        %1810 = vmatpush1.bf16.msra.mxu0 0
        %1811 = vmatprep.subr.bf16.mxu0 0
        %1812 = vmatpush1.bf16.msra.mxu0 0
        %1813 = vmatprep.subr.bf16.mxu0 0
        %1814 = vmatpush1.bf16.msra.mxu0 0
        %1815 = vmatprep.subr.bf16.mxu0 0
        %1816 = vmatpush1.bf16.msra.mxu0 0
        %1817 = vmatprep.subr.bf16.mxu0 0
        %1818 = vmatpush1.bf16.msra.mxu0 0
        %1819 = vmatprep.subr.bf16.mxu0 0
        %1820 = vmatpush1.bf16.msra.mxu0 0
        %1821 = vmatprep.subr.bf16.mxu0 0
        %1822 = vmatpush1.bf16.msra.mxu0 0
        %1823 = vmatprep.subr.bf16.mxu0 0
        %1824 = vmatpush1.bf16.msra.mxu0 0
        %1825 = vmatprep.subr.bf16.mxu0 0
        %1826 = vmatpush1.bf16.msra.mxu0 0
        %1827 = vmatprep.subr.bf16.mxu0 0
        %1828 = vmatpush1.bf16.msra.mxu0 0
        %1829 = vmatprep.subr.bf16.mxu0 0
        %1830 = vmatpush1.bf16.msra.mxu0 0
        %1831 = vmatprep.subr.bf16.mxu0 0
        %1832 = vmatpush1.bf16.msra.mxu0 0
        %1833 = vmatprep.subr.bf16.mxu0 0
        %1834 = vmatpush1.bf16.msra.mxu0 0
        %1835 = vmatprep.subr.bf16.mxu0 0
        %1836 = vmatpush1.bf16.msra.mxu0 0
        %1837 = vmatprep.mubr.bf16.mxu0 0
        %1838 = vmatmul.mubr.bf16.gmra.mrb[0].mxu0 %v1800
        %v1839 = vpop.f32.mrb[0].mxu0
        %v1840 = vadd.f32 0.0, %v1839
        %v1841 = vpop.f32.mrb[0].mxu0
        %v1842 = vpop.f32.mrb[0].mxu0
        %v1843 = vpop.f32.mrb[0].mxu0
        %1844 = vdwg.mxu0
        %v1845 = vadd.f32 %v1650, %v1840
        %1846 = vrot.lane.b32.xlu0 %v1262, 104
        %v1847 = vpop.permute.xlu0 %1846
        %1848 = vrot.lane.b32.xlu0 %v1262, 72
        %v1849 = vpop.permute.xlu0 %1848
        %v1850 = vsel %vm1276, %v1847, 0
        %v1852 = vsel %vm1276, %v1849, 0
        %1854 = vmatprep.subr.mxu0 0.0
        %1855 = vmatpush1.xpose.msra.mxu0 %v1852
        %1856 = vmatprep.subr.mxu0 0.0
        %1857 = vmatpush1.xpose.msra.mxu0 0.0
        %1858 = vmatprep.subr.mxu0 0.0
        %1859 = vmatpush1.xpose.msra.mxu0 0.0
        %1860 = vmatprep.subr.mxu0 0.0
        %1861 = vmatpush1.xpose.msra.mxu0 0.0
        %1862 = vmatprep.subr.mxu0 0.0
        %1863 = vmatpush1.xpose.msra.mxu0 0.0
        %1864 = vmatprep.subr.mxu0 0.0
        %1865 = vmatpush1.xpose.msra.mxu0 0.0
        %1866 = vmatprep.subr.mxu0 0.0
        %1867 = vmatpush1.xpose.msra.mxu0 0.0
        %1868 = vmatprep.subr.mxu0 0.0
        %1869 = vmatpush1.xpose.msra.mxu0 0.0
        %1870 = vmatprep.subr.mxu0 0.0
        %1871 = vmatpush1.xpose.msra.mxu0 0.0
        %1872 = vmatprep.subr.mxu0 0.0
        %1873 = vmatpush1.xpose.msra.mxu0 0.0
        %1874 = vmatprep.subr.mxu0 0.0
        %1875 = vmatpush1.xpose.msra.mxu0 0.0
        %1876 = vmatprep.subr.mxu0 0.0
        %1877 = vmatpush1.xpose.msra.mxu0 0.0
        %1878 = vmatprep.subr.mxu0 0.0
        %1879 = vmatpush1.xpose.msra.mxu0 0.0
        %1880 = vmatprep.subr.mxu0 0.0
        %1881 = vmatpush1.xpose.msra.mxu0 0.0
        %1882 = vmatprep.subr.mxu0 0.0
        %1883 = vmatpush1.xpose.msra.mxu0 0.0
        %1884 = vmatprep.subr.mxu0 0.0
        %1885 = vmatpush1.xpose.msra.mxu0 0.0
        %1886 = vmatprep.subr.mxu0 0.0
        %1887 = vmatpush1.xpose.msra.mxu0 0.0
        %1888 = vmatprep.subr.mxu0 0.0
        %1889 = vmatpush1.xpose.msra.mxu0 0.0
        %1890 = vmatprep.subr.mxu0 0.0
        %1891 = vmatpush1.xpose.msra.mxu0 0.0
        %1892 = vmatprep.subr.mxu0 0.0
        %1893 = vmatpush1.xpose.msra.mxu0 0.0
        %1894 = vmatprep.subr.mxu0 0.0
        %1895 = vmatpush1.xpose.msra.mxu0 0.0
        %1896 = vmatprep.subr.mxu0 0.0
        %1897 = vmatpush1.xpose.msra.mxu0 0.0
        %1898 = vmatprep.subr.mxu0 0.0
        %1899 = vmatpush1.xpose.msra.mxu0 0.0
        %1900 = vmatprep.subr.mxu0 0.0
        %1901 = vmatpush1.xpose.msra.mxu0 0.0
        %1902 = vmatprep.subr.mxu0 0.0
        %1903 = vmatpush1.xpose.msra.mxu0 0.0
        %1904 = vmatprep.subr.mxu0 0.0
        %1905 = vmatpush1.xpose.msra.mxu0 0.0
        %1906 = vmatprep.subr.mxu0 0.0
        %1907 = vmatpush1.xpose.msra.mxu0 0.0
        %1908 = vmatprep.subr.mxu0 0.0
        %1909 = vmatpush1.xpose.msra.mxu0 0.0
        %1910 = vmatprep.subr.mxu0 0.0
        %1911 = vmatpush1.xpose.msra.mxu0 0.0
        %1912 = vmatprep.subr.mxu0 0.0
        %1913 = vmatpush1.xpose.msra.mxu0 0.0
        %1914 = vmatprep.subr.mxu0 0.0
        %1915 = vmatpush1.xpose.msra.mxu0 0.0
        %1916 = vmatprep.subr.mxu0 0.0
        %1917 = vmatpush1.xpose.msra.mxu0 0.0
        %1918 = vmatprep.mubr.f32.mxu0 0.0
        %1919 = vmatmul.mubr.f32.gmra.mrb[0].mxu0 %v1850
        %v1920 = vpop.f32.mrb[0].mxu0
        %v1921 = vadd.f32 0.0, %v1920
        %v1922 = vpop.f32.mrb[0].mxu0
        %1923 = vdwg.mxu0
        %v1924 = vmul.f32 %v1921, 0.35355338
        %v1925 = vadd.f32 %v1924, %v1272
        %v1926 = vsel %vm1276, %v1925, -inf
        %1927 = vmax.xlane.f32.xlu0 %v1926
        %v1928 = vpop.xlane.xlu0 %1927
        %v1929 = vsub.f32 %v1925, %v1928
        %v1930 = vmul.f32 %v1929, 1.442695
        %v1931 = vpow.pop %v1930
        %v1932 = vsel %vm1276, %v1931, 0.0
        %1933 = vadd.xlane.f32.xlu0 %v1932
        %v1934 = vpop.xlane.xlu0 %1933
        %v1935 = vrcp.pop %v1934
        %v1936 = vmul.f32 %v1931, %v1935
        %s1937 = scalar_lea.vmem %s1185, 24
        %1938 = vst.msk [vmem:[%s1937] sm:$0xff] %vm1276, %v1936
        %v1939 = vpack.c.bf16 %v1936, %v1936
        %1940 = vrot.lane.b32.xlu0 %v1366, 40
        %v1941 = vpop.permute.xlu0 %1940
        %v1943 = vsel %vm1276, %v1939, 0
        %v1946 = vsel %vm1373, %v1941, 0
        %1948 = vmatprep.subr.bf16.mxu0 0
        %1949 = vmatpush1.bf16.msra.mxu0 %v1946
        %1950 = vmatprep.subr.bf16.mxu0 0
        %1951 = vmatpush1.bf16.msra.mxu0 0
        %1952 = vmatprep.subr.bf16.mxu0 0
        %1953 = vmatpush1.bf16.msra.mxu0 0
        %1954 = vmatprep.subr.bf16.mxu0 0
        %1955 = vmatpush1.bf16.msra.mxu0 0
        %1956 = vmatprep.subr.bf16.mxu0 0
        %1957 = vmatpush1.bf16.msra.mxu0 0
        %1958 = vmatprep.subr.bf16.mxu0 0
        %1959 = vmatpush1.bf16.msra.mxu0 0
        %1960 = vmatprep.subr.bf16.mxu0 0
        %1961 = vmatpush1.bf16.msra.mxu0 0
        %1962 = vmatprep.subr.bf16.mxu0 0
        %1963 = vmatpush1.bf16.msra.mxu0 0
        %1964 = vmatprep.subr.bf16.mxu0 0
        %1965 = vmatpush1.bf16.msra.mxu0 0
        %1966 = vmatprep.subr.bf16.mxu0 0
        %1967 = vmatpush1.bf16.msra.mxu0 0
        %1968 = vmatprep.subr.bf16.mxu0 0
        %1969 = vmatpush1.bf16.msra.mxu0 0
        %1970 = vmatprep.subr.bf16.mxu0 0
        %1971 = vmatpush1.bf16.msra.mxu0 0
        %1972 = vmatprep.subr.bf16.mxu0 0
        %1973 = vmatpush1.bf16.msra.mxu0 0
        %1974 = vmatprep.subr.bf16.mxu0 0
        %1975 = vmatpush1.bf16.msra.mxu0 0
        %1976 = vmatprep.subr.bf16.mxu0 0
        %1977 = vmatpush1.bf16.msra.mxu0 0
        %1978 = vmatprep.subr.bf16.mxu0 0
        %1979 = vmatpush1.bf16.msra.mxu0 0
        %1980 = vmatprep.mubr.bf16.mxu0 0
        %1981 = vmatmul.mubr.bf16.gmra.mrb[0].mxu0 %v1943
        %v1982 = vpop.f32.mrb[0].mxu0
        %v1983 = vadd.f32 0.0, %v1982
        %v1984 = vpop.f32.mrb[0].mxu0
        %v1985 = vpop.f32.mrb[0].mxu0
        %v1986 = vpop.f32.mrb[0].mxu0
        %1987 = vdwg.mxu0
        %v1988 = vpack.c.bf16 %v1983, %v1983
        %v1989 = vpack.c.bf16 %v1270, %v1270
        %v1991 = vsel %vm1276, %v1988, 0
        %v1994 = vsel %vm1373, %v1989, 0
        %1996 = vmatprep.subr.bf16.mxu0 0
        %1997 = vmatpush1.bf16.msra.mxu0 %v1994
        %1998 = vmatprep.subr.bf16.mxu0 0
        %1999 = vmatpush1.bf16.msra.mxu0 0
        %2000 = vmatprep.subr.bf16.mxu0 0
        %2001 = vmatpush1.bf16.msra.mxu0 0
        %2002 = vmatprep.subr.bf16.mxu0 0
        %2003 = vmatpush1.bf16.msra.mxu0 0
        %2004 = vmatprep.subr.bf16.mxu0 0
        %2005 = vmatpush1.bf16.msra.mxu0 0
        %2006 = vmatprep.subr.bf16.mxu0 0
        %2007 = vmatpush1.bf16.msra.mxu0 0
        %2008 = vmatprep.subr.bf16.mxu0 0
        %2009 = vmatpush1.bf16.msra.mxu0 0
        %2010 = vmatprep.subr.bf16.mxu0 0
        %2011 = vmatpush1.bf16.msra.mxu0 0
        %2012 = vmatprep.subr.bf16.mxu0 0
        %2013 = vmatpush1.bf16.msra.mxu0 0
        %2014 = vmatprep.subr.bf16.mxu0 0
        %2015 = vmatpush1.bf16.msra.mxu0 0
        %2016 = vmatprep.subr.bf16.mxu0 0
        %2017 = vmatpush1.bf16.msra.mxu0 0
        %2018 = vmatprep.subr.bf16.mxu0 0
        %2019 = vmatpush1.bf16.msra.mxu0 0
        %2020 = vmatprep.subr.bf16.mxu0 0
        %2021 = vmatpush1.bf16.msra.mxu0 0
        %2022 = vmatprep.subr.bf16.mxu0 0
        %2023 = vmatpush1.bf16.msra.mxu0 0
        %2024 = vmatprep.subr.bf16.mxu0 0
        %2025 = vmatpush1.bf16.msra.mxu0 0
        %2026 = vmatprep.subr.bf16.mxu0 0
        %2027 = vmatpush1.bf16.msra.mxu0 0
        %2028 = vmatprep.mubr.bf16.mxu0 0
        %2029 = vmatmul.mubr.bf16.gmra.mrb[0].mxu0 %v1991
        %v2030 = vpop.f32.mrb[0].mxu0
        %v2031 = vadd.f32 0.0, %v2030
        %v2032 = vpop.f32.mrb[0].mxu0
        %v2033 = vpop.f32.mrb[0].mxu0
        %v2034 = vpop.f32.mrb[0].mxu0
        %2035 = vdwg.mxu0
        %v2036 = vadd.f32 %v1845, %v2031
        %v2038 = vlaneseq
        %v2039 = vshrl.u32 %v2038, 7
        %v2040 = vsub.s32 0, %v2039
        %v2041 = vrot.slane %v1271, %v2040
        %v2043 = vadd.f32 %v2036, %v2041
        %v2044 = vld [vmem:[%s1123] sm:$0x1]
        %v2045 = vld [vmem:[%s1126] sm:$0x1]
        %v2046 = vadd.f32 %v1205, %v2043
        %v2047 = vsel %vm1223, %v2046, 0.0
        %2048 = vadd.xlane.f32.xlu0 %v2047
        %v2049 = vpop.xlane.xlu0 %2048
        %v2050 = vrcp.pop 32.0
        %v2051 = vmul.f32 %v2049, %v2050
        %v2052 = vsub.f32 %v2046, %v2051
        %v2053 = vmul.f32 %v2052, %v2052
        %v2054 = vsel %vm1223, %v2053, 0.0
        %2055 = vadd.xlane.f32.xlu0 %v2054
        %v2056 = vpop.xlane.xlu0 %2055
        %v2057 = vmul.f32 %v2056, %v2050
        %v2058 = vadd.f32 %v2057, 1e-06
        %v2059 = vrsqrt.pop %v2058
        %v2060 = vmul.f32 %v2052, %v2059
        %v2062 = vlaneseq
        %v2063 = vshrl.u32 %v2062, 7
        %v2064 = vsub.s32 0, %v2063
        %v2065 = vrot.slane %v2044, %v2064
        %v2067 = vmul.f32 %v2060, %v2065
        %v2069 = vlaneseq
        %v2070 = vshrl.u32 %v2069, 7
        %v2071 = vsub.s32 0, %v2070
        %v2072 = vrot.slane %v2045, %v2071
        %v2074 = vadd.f32 %v2067, %v2072
        %v2075 = vld [vmem:[%s1131] sm:$0xff]
        %v2076 = vld [vmem:[%s1131 + $0x8] sm:$0xff]
        %v2077 = vld [vmem:[%s1131 + $0x10] sm:$0xff]
        %v2078 = vld [vmem:[%s1131 + $0x18] sm:$0xff]
        %v2079 = vpack.c.bf16 %v2074, %v2074
        %v2080 = vpack.c.bf16 %v2076, %v2075
        %v2081 = vpack.c.bf16 %v2078, %v2077
        %v2082 = vld [vmem:[%s1134] sm:$0x1]
        %v2084 = vlaneseq
        %v2085 = vshrl.u32 %v2084, 7
        %v2086 = vsub.s32 0, %v2085
        %v2087 = vrot.slane %v2082, %v2086
        %v2090 = vsel %vm1223, %v2079, 0
        %2092 = vmatprep.subr.bf16.mxu0 0
        %2093 = vmatpush1.bf16.msra.mxu0 %v2080
        %2094 = vmatprep.subr.bf16.mxu0 0
        %2095 = vmatpush1.bf16.msra.mxu0 %v2081
        %2096 = vmatprep.subr.bf16.mxu0 0
        %2097 = vmatpush1.bf16.msra.mxu0 0
        %2098 = vmatprep.subr.bf16.mxu0 0
        %2099 = vmatpush1.bf16.msra.mxu0 0
        %2100 = vmatprep.subr.bf16.mxu0 0
        %2101 = vmatpush1.bf16.msra.mxu0 0
        %2102 = vmatprep.subr.bf16.mxu0 0
        %2103 = vmatpush1.bf16.msra.mxu0 0
        %2104 = vmatprep.subr.bf16.mxu0 0
        %2105 = vmatpush1.bf16.msra.mxu0 0
        %2106 = vmatprep.subr.bf16.mxu0 0
        %2107 = vmatpush1.bf16.msra.mxu0 0
        %2108 = vmatprep.subr.bf16.mxu0 0
        %2109 = vmatpush1.bf16.msra.mxu0 0
        %2110 = vmatprep.subr.bf16.mxu0 0
        %2111 = vmatpush1.bf16.msra.mxu0 0
        %2112 = vmatprep.subr.bf16.mxu0 0
        %2113 = vmatpush1.bf16.msra.mxu0 0
        %2114 = vmatprep.subr.bf16.mxu0 0
        %2115 = vmatpush1.bf16.msra.mxu0 0
        %2116 = vmatprep.subr.bf16.mxu0 0
        %2117 = vmatpush1.bf16.msra.mxu0 0
        %2118 = vmatprep.subr.bf16.mxu0 0
        %2119 = vmatpush1.bf16.msra.mxu0 0
        %2120 = vmatprep.subr.bf16.mxu0 0
        %2121 = vmatpush1.bf16.msra.mxu0 0
        %2122 = vmatprep.subr.bf16.mxu0 0
        %2123 = vmatpush1.bf16.msra.mxu0 0
        %2124 = vmatprep.mubr.bf16.mxu0 0
        %2125 = vmatmul.mubr.bf16.gmra.mrb[0].mxu0 %v2090
        %v2126 = vpop.f32.mrb[0].mxu0
        %v2127 = vadd.f32 %v2087, %v2126
        %v2128 = vpop.f32.mrb[0].mxu0
        %v2129 = vpop.f32.mrb[0].mxu0
        %v2130 = vpop.f32.mrb[0].mxu0
        %2131 = vdwg.mxu0
        %v2132 = vld [vmem:[%s1139] sm:$0xff]
        %v2133 = vld [vmem:[%s1139 + $0x8] sm:$0xff]
        %v2134 = vld [vmem:[%s1139 + $0x10] sm:$0xff]
        %v2135 = vld [vmem:[%s1139 + $0x18] sm:$0xff]
        %v2136 = vpack.c.bf16 %v1206, %v1206
        %v2137 = vpack.c.bf16 %v2133, %v2132
        %v2138 = vpack.c.bf16 %v2135, %v2134
        %v2139 = vld [vmem:[%s1142] sm:$0x1]
        %v2141 = vlaneseq
        %v2142 = vshrl.u32 %v2141, 7
        %v2143 = vsub.s32 0, %v2142
        %v2144 = vrot.slane %v2139, %v2143
        %v2147 = vsel %vm1223, %v2136, 0
        %2149 = vmatprep.subr.bf16.mxu0 0
        %2150 = vmatpush1.bf16.msra.mxu0 %v2137
        %2151 = vmatprep.subr.bf16.mxu0 0
        %2152 = vmatpush1.bf16.msra.mxu0 %v2138
        %2153 = vmatprep.subr.bf16.mxu0 0
        %2154 = vmatpush1.bf16.msra.mxu0 0
        %2155 = vmatprep.subr.bf16.mxu0 0
        %2156 = vmatpush1.bf16.msra.mxu0 0
        %2157 = vmatprep.subr.bf16.mxu0 0
        %2158 = vmatpush1.bf16.msra.mxu0 0
        %2159 = vmatprep.subr.bf16.mxu0 0
        %2160 = vmatpush1.bf16.msra.mxu0 0
        %2161 = vmatprep.subr.bf16.mxu0 0
        %2162 = vmatpush1.bf16.msra.mxu0 0
        %2163 = vmatprep.subr.bf16.mxu0 0
        %2164 = vmatpush1.bf16.msra.mxu0 0
        %2165 = vmatprep.subr.bf16.mxu0 0
        %2166 = vmatpush1.bf16.msra.mxu0 0
        %2167 = vmatprep.subr.bf16.mxu0 0
        %2168 = vmatpush1.bf16.msra.mxu0 0
        %2169 = vmatprep.subr.bf16.mxu0 0
        %2170 = vmatpush1.bf16.msra.mxu0 0
        %2171 = vmatprep.subr.bf16.mxu0 0
        %2172 = vmatpush1.bf16.msra.mxu0 0
        %2173 = vmatprep.subr.bf16.mxu0 0
        %2174 = vmatpush1.bf16.msra.mxu0 0
        %2175 = vmatprep.subr.bf16.mxu0 0
        %2176 = vmatpush1.bf16.msra.mxu0 0
        %2177 = vmatprep.subr.bf16.mxu0 0
        %2178 = vmatpush1.bf16.msra.mxu0 0
        %2179 = vmatprep.subr.bf16.mxu0 0
        %2180 = vmatpush1.bf16.msra.mxu0 0
        %2181 = vmatprep.mubr.bf16.mxu0 0
        %2182 = vmatmul.mubr.bf16.gmra.mrb[0].mxu0 %v2147
        %v2183 = vpop.f32.mrb[0].mxu0
        %v2184 = vadd.f32 %v2144, %v2183
        %v2185 = vpop.f32.mrb[0].mxu0
        %v2186 = vpop.f32.mrb[0].mxu0
        %v2187 = vpop.f32.mrb[0].mxu0
        %2188 = vdwg.mxu0
        %v2189 = vld [vmem:[%s1147] sm:$0xff]
        %v2190 = vld [vmem:[%s1147 + $0x8] sm:$0xff]
        %v2191 = vld [vmem:[%s1147 + $0x10] sm:$0xff]
        %v2192 = vld [vmem:[%s1147 + $0x18] sm:$0xff]
        %v2193 = vld [vmem:[%s1150] sm:$0x1]
        %v2194 = vmul.f32 %v1208, -1e+09
        %v2196 = vsel %vm1276, %v2127, 0
        %v2199 = vsel %vm1276, %v2184, 0
        %2201 = vmatprep.subr.mxu0 0.0
        %2202 = vmatpush1.xpose.msra.mxu0 %v2199
        %2203 = vmatprep.subr.mxu0 0.0
        %2204 = vmatpush1.xpose.msra.mxu0 0.0
        %2205 = vmatprep.subr.mxu0 0.0
        %2206 = vmatpush1.xpose.msra.mxu0 0.0
        %2207 = vmatprep.subr.mxu0 0.0
        %2208 = vmatpush1.xpose.msra.mxu0 0.0
        %2209 = vmatprep.subr.mxu0 0.0
        %2210 = vmatpush1.xpose.msra.mxu0 0.0
        %2211 = vmatprep.subr.mxu0 0.0
        %2212 = vmatpush1.xpose.msra.mxu0 0.0
        %2213 = vmatprep.subr.mxu0 0.0
        %2214 = vmatpush1.xpose.msra.mxu0 0.0
        %2215 = vmatprep.subr.mxu0 0.0
        %2216 = vmatpush1.xpose.msra.mxu0 0.0
        %2217 = vmatprep.subr.mxu0 0.0
        %2218 = vmatpush1.xpose.msra.mxu0 0.0
        %2219 = vmatprep.subr.mxu0 0.0
        %2220 = vmatpush1.xpose.msra.mxu0 0.0
        %2221 = vmatprep.subr.mxu0 0.0
        %2222 = vmatpush1.xpose.msra.mxu0 0.0
        %2223 = vmatprep.subr.mxu0 0.0
        %2224 = vmatpush1.xpose.msra.mxu0 0.0
        %2225 = vmatprep.subr.mxu0 0.0
        %2226 = vmatpush1.xpose.msra.mxu0 0.0
        %2227 = vmatprep.subr.mxu0 0.0
        %2228 = vmatpush1.xpose.msra.mxu0 0.0
        %2229 = vmatprep.subr.mxu0 0.0
        %2230 = vmatpush1.xpose.msra.mxu0 0.0
        %2231 = vmatprep.subr.mxu0 0.0
        %2232 = vmatpush1.xpose.msra.mxu0 0.0
        %2233 = vmatprep.subr.mxu0 0.0
        %2234 = vmatpush1.xpose.msra.mxu0 0.0
        %2235 = vmatprep.subr.mxu0 0.0
        %2236 = vmatpush1.xpose.msra.mxu0 0.0
        %2237 = vmatprep.subr.mxu0 0.0
        %2238 = vmatpush1.xpose.msra.mxu0 0.0
        %2239 = vmatprep.subr.mxu0 0.0
        %2240 = vmatpush1.xpose.msra.mxu0 0.0
        %2241 = vmatprep.subr.mxu0 0.0
        %2242 = vmatpush1.xpose.msra.mxu0 0.0
        %2243 = vmatprep.subr.mxu0 0.0
        %2244 = vmatpush1.xpose.msra.mxu0 0.0
        %2245 = vmatprep.subr.mxu0 0.0
        %2246 = vmatpush1.xpose.msra.mxu0 0.0
        %2247 = vmatprep.subr.mxu0 0.0
        %2248 = vmatpush1.xpose.msra.mxu0 0.0
        %2249 = vmatprep.subr.mxu0 0.0
        %2250 = vmatpush1.xpose.msra.mxu0 0.0
        %2251 = vmatprep.subr.mxu0 0.0
        %2252 = vmatpush1.xpose.msra.mxu0 0.0
        %2253 = vmatprep.subr.mxu0 0.0
        %2254 = vmatpush1.xpose.msra.mxu0 0.0
        %2255 = vmatprep.subr.mxu0 0.0
        %2256 = vmatpush1.xpose.msra.mxu0 0.0
        %2257 = vmatprep.subr.mxu0 0.0
        %2258 = vmatpush1.xpose.msra.mxu0 0.0
        %2259 = vmatprep.subr.mxu0 0.0
        %2260 = vmatpush1.xpose.msra.mxu0 0.0
        %2261 = vmatprep.subr.mxu0 0.0
        %2262 = vmatpush1.xpose.msra.mxu0 0.0
        %2263 = vmatprep.subr.mxu0 0.0
        %2264 = vmatpush1.xpose.msra.mxu0 0.0
        %2265 = vmatprep.mubr.f32.mxu0 0.0
        %2266 = vmatmul.mubr.f32.gmra.mrb[0].mxu0 %v2196
        %v2267 = vpop.f32.mrb[0].mxu0
        %v2268 = vadd.f32 0.0, %v2267
        %v2269 = vpop.f32.mrb[0].mxu0
        %2270 = vdwg.mxu0
        %v2271 = vmul.f32 %v2268, 0.35355338
        %v2273 = vlaneseq
        %v2274 = vshrl.u32 %v2273, 7
        %v2275 = vsub.s32 0, %v2274
        %v2276 = vrot.slane %v2194, %v2275
        %v2278 = vadd.f32 %v2271, %v2276
        %v2279 = vsel %vm1276, %v2278, -inf
        %2280 = vmax.xlane.f32.xlu0 %v2279
        %v2281 = vpop.xlane.xlu0 %2280
        %v2282 = vsub.f32 %v2278, %v2281
        %v2283 = vmul.f32 %v2282, 1.442695
        %v2284 = vpow.pop %v2283
        %v2285 = vsel %vm1276, %v2284, 0.0
        %2286 = vadd.xlane.f32.xlu0 %v2285
        %v2287 = vpop.xlane.xlu0 %2286
        %v2288 = vrcp.pop %v2287
        %v2289 = vmul.f32 %v2284, %v2288
        %2290 = vst.msk [vmem:[%s1194] sm:$0xff] %vm1276, %v2289
        %v2291 = vpack.c.bf16 %v2289, %v2289
        %v2292 = vpack.c.bf16 %v2184, %v2184
        %2294 = vrot.lane.b32.xlu0 %v2292, 96
        %v2295 = vpop.permute.xlu0 %2294
        %v2297 = vsel %vm1276, %v2291, 0
        %v2300 = vsel %vm1373, %v2295, 0
        %2302 = vmatprep.subr.bf16.mxu0 0
        %2303 = vmatpush1.bf16.msra.mxu0 %v2300
        %2304 = vmatprep.subr.bf16.mxu0 0
        %2305 = vmatpush1.bf16.msra.mxu0 0
        %2306 = vmatprep.subr.bf16.mxu0 0
        %2307 = vmatpush1.bf16.msra.mxu0 0
        %2308 = vmatprep.subr.bf16.mxu0 0
        %2309 = vmatpush1.bf16.msra.mxu0 0
        %2310 = vmatprep.subr.bf16.mxu0 0
        %2311 = vmatpush1.bf16.msra.mxu0 0
        %2312 = vmatprep.subr.bf16.mxu0 0
        %2313 = vmatpush1.bf16.msra.mxu0 0
        %2314 = vmatprep.subr.bf16.mxu0 0
        %2315 = vmatpush1.bf16.msra.mxu0 0
        %2316 = vmatprep.subr.bf16.mxu0 0
        %2317 = vmatpush1.bf16.msra.mxu0 0
        %2318 = vmatprep.subr.bf16.mxu0 0
        %2319 = vmatpush1.bf16.msra.mxu0 0
        %2320 = vmatprep.subr.bf16.mxu0 0
        %2321 = vmatpush1.bf16.msra.mxu0 0
        %2322 = vmatprep.subr.bf16.mxu0 0
        %2323 = vmatpush1.bf16.msra.mxu0 0
        %2324 = vmatprep.subr.bf16.mxu0 0
        %2325 = vmatpush1.bf16.msra.mxu0 0
        %2326 = vmatprep.subr.bf16.mxu0 0
        %2327 = vmatpush1.bf16.msra.mxu0 0
        %2328 = vmatprep.subr.bf16.mxu0 0
        %2329 = vmatpush1.bf16.msra.mxu0 0
        %2330 = vmatprep.subr.bf16.mxu0 0
        %2331 = vmatpush1.bf16.msra.mxu0 0
        %2332 = vmatprep.subr.bf16.mxu0 0
        %2333 = vmatpush1.bf16.msra.mxu0 0
        %2334 = vmatprep.mubr.bf16.mxu0 0
        %2335 = vmatmul.mubr.bf16.gmra.mrb[0].mxu0 %v2297
        %v2336 = vpop.f32.mrb[0].mxu0
        %v2337 = vadd.f32 0.0, %v2336
        %v2338 = vpop.f32.mrb[0].mxu0
        %v2339 = vpop.f32.mrb[0].mxu0
        %v2340 = vpop.f32.mrb[0].mxu0
        %2341 = vdwg.mxu0
        %v2342 = vpack.c.bf16 %v2337, %v2337
        %v2343 = vpack.c.bf16 %v2189, %v2189
        %2344 = vrot.lane.b32.xlu0 %v2127, 120
        %v2345 = vpop.permute.xlu0 %2344
        %2346 = vrot.lane.b32.xlu0 %v2184, 120
        %v2347 = vpop.permute.xlu0 %2346
        %v2348 = vsel %vm1276, %v2345, 0
        %v2350 = vsel %vm1276, %v2347, 0
        %2352 = vmatprep.subr.mxu0 0.0
        %2353 = vmatpush1.xpose.msra.mxu0 %v2350
        %2354 = vmatprep.subr.mxu0 0.0
        %2355 = vmatpush1.xpose.msra.mxu0 0.0
        %2356 = vmatprep.subr.mxu0 0.0
        %2357 = vmatpush1.xpose.msra.mxu0 0.0
        %2358 = vmatprep.subr.mxu0 0.0
        %2359 = vmatpush1.xpose.msra.mxu0 0.0
        %2360 = vmatprep.subr.mxu0 0.0
        %2361 = vmatpush1.xpose.msra.mxu0 0.0
        %2362 = vmatprep.subr.mxu0 0.0
        %2363 = vmatpush1.xpose.msra.mxu0 0.0
        %2364 = vmatprep.subr.mxu0 0.0
        %2365 = vmatpush1.xpose.msra.mxu0 0.0
        %2366 = vmatprep.subr.mxu0 0.0
        %2367 = vmatpush1.xpose.msra.mxu0 0.0
        %2368 = vmatprep.subr.mxu0 0.0
        %2369 = vmatpush1.xpose.msra.mxu0 0.0
        %2370 = vmatprep.subr.mxu0 0.0
        %2371 = vmatpush1.xpose.msra.mxu0 0.0
        %2372 = vmatprep.subr.mxu0 0.0
        %2373 = vmatpush1.xpose.msra.mxu0 0.0
        %2374 = vmatprep.subr.mxu0 0.0
        %2375 = vmatpush1.xpose.msra.mxu0 0.0
        %2376 = vmatprep.subr.mxu0 0.0
        %2377 = vmatpush1.xpose.msra.mxu0 0.0
        %2378 = vmatprep.subr.mxu0 0.0
        %2379 = vmatpush1.xpose.msra.mxu0 0.0
        %2380 = vmatprep.subr.mxu0 0.0
        %2381 = vmatpush1.xpose.msra.mxu0 0.0
        %2382 = vmatprep.subr.mxu0 0.0
        %2383 = vmatpush1.xpose.msra.mxu0 0.0
        %2384 = vmatprep.subr.mxu0 0.0
        %2385 = vmatpush1.xpose.msra.mxu0 0.0
        %2386 = vmatprep.subr.mxu0 0.0
        %2387 = vmatpush1.xpose.msra.mxu0 0.0
        %2388 = vmatprep.subr.mxu0 0.0
        %2389 = vmatpush1.xpose.msra.mxu0 0.0
        %2390 = vmatprep.subr.mxu0 0.0
        %2391 = vmatpush1.xpose.msra.mxu0 0.0
        %2392 = vmatprep.subr.mxu0 0.0
        %2393 = vmatpush1.xpose.msra.mxu0 0.0
        %2394 = vmatprep.subr.mxu0 0.0
        %2395 = vmatpush1.xpose.msra.mxu0 0.0
        %2396 = vmatprep.subr.mxu0 0.0
        %2397 = vmatpush1.xpose.msra.mxu0 0.0
        %2398 = vmatprep.subr.mxu0 0.0
        %2399 = vmatpush1.xpose.msra.mxu0 0.0
        %2400 = vmatprep.subr.mxu0 0.0
        %2401 = vmatpush1.xpose.msra.mxu0 0.0
        %2402 = vmatprep.subr.mxu0 0.0
        %2403 = vmatpush1.xpose.msra.mxu0 0.0
        %2404 = vmatprep.subr.mxu0 0.0
        %2405 = vmatpush1.xpose.msra.mxu0 0.0
        %2406 = vmatprep.subr.mxu0 0.0
        %2407 = vmatpush1.xpose.msra.mxu0 0.0
        %2408 = vmatprep.subr.mxu0 0.0
        %2409 = vmatpush1.xpose.msra.mxu0 0.0
        %2410 = vmatprep.subr.mxu0 0.0
        %2411 = vmatpush1.xpose.msra.mxu0 0.0
        %2412 = vmatprep.subr.mxu0 0.0
        %2413 = vmatpush1.xpose.msra.mxu0 0.0
        %2414 = vmatprep.subr.mxu0 0.0
        %2415 = vmatpush1.xpose.msra.mxu0 0.0
        %2416 = vmatprep.mubr.f32.mxu0 0.0
        %2417 = vmatmul.mubr.f32.gmra.mrb[0].mxu0 %v2348
        %v2418 = vpop.f32.mrb[0].mxu0
        %v2419 = vadd.f32 0.0, %v2418
        %v2420 = vpop.f32.mrb[0].mxu0
        %2421 = vdwg.mxu0
        %v2422 = vmul.f32 %v2419, 0.35355338
        %v2423 = vadd.f32 %v2422, %v2276
        %v2424 = vsel %vm1276, %v2423, -inf
        %2425 = vmax.xlane.f32.xlu0 %v2424
        %v2426 = vpop.xlane.xlu0 %2425
        %v2427 = vsub.f32 %v2423, %v2426
        %v2428 = vmul.f32 %v2427, 1.442695
        %v2429 = vpow.pop %v2428
        %v2430 = vsel %vm1276, %v2429, 0.0
        %2431 = vadd.xlane.f32.xlu0 %v2430
        %v2432 = vpop.xlane.xlu0 %2431
        %v2433 = vrcp.pop %v2432
        %v2434 = vmul.f32 %v2429, %v2433
        %s2435 = scalar_lea.vmem %s1194, 8
        %2436 = vst.msk [vmem:[%s2435] sm:$0xff] %vm1276, %v2434
        %v2437 = vpack.c.bf16 %v2434, %v2434
        %2438 = vrot.lane.b32.xlu0 %v2292, 88
        %v2439 = vpop.permute.xlu0 %2438
        %v2441 = vsel %vm1276, %v2437, 0
        %v2444 = vsel %vm1373, %v2439, 0
        %2446 = vmatprep.subr.bf16.mxu0 0
        %2447 = vmatpush1.bf16.msra.mxu0 %v2444
        %2448 = vmatprep.subr.bf16.mxu0 0
        %2449 = vmatpush1.bf16.msra.mxu0 0
        %2450 = vmatprep.subr.bf16.mxu0 0
        %2451 = vmatpush1.bf16.msra.mxu0 0
        %2452 = vmatprep.subr.bf16.mxu0 0
        %2453 = vmatpush1.bf16.msra.mxu0 0
        %2454 = vmatprep.subr.bf16.mxu0 0
        %2455 = vmatpush1.bf16.msra.mxu0 0
        %2456 = vmatprep.subr.bf16.mxu0 0
        %2457 = vmatpush1.bf16.msra.mxu0 0
        %2458 = vmatprep.subr.bf16.mxu0 0
        %2459 = vmatpush1.bf16.msra.mxu0 0
        %2460 = vmatprep.subr.bf16.mxu0 0
        %2461 = vmatpush1.bf16.msra.mxu0 0
        %2462 = vmatprep.subr.bf16.mxu0 0
        %2463 = vmatpush1.bf16.msra.mxu0 0
        %2464 = vmatprep.subr.bf16.mxu0 0
        %2465 = vmatpush1.bf16.msra.mxu0 0
        %2466 = vmatprep.subr.bf16.mxu0 0
        %2467 = vmatpush1.bf16.msra.mxu0 0
        %2468 = vmatprep.subr.bf16.mxu0 0
        %2469 = vmatpush1.bf16.msra.mxu0 0
        %2470 = vmatprep.subr.bf16.mxu0 0
        %2471 = vmatpush1.bf16.msra.mxu0 0
        %2472 = vmatprep.subr.bf16.mxu0 0
        %2473 = vmatpush1.bf16.msra.mxu0 0
        %2474 = vmatprep.subr.bf16.mxu0 0
        %2475 = vmatpush1.bf16.msra.mxu0 0
        %2476 = vmatprep.subr.bf16.mxu0 0
        %2477 = vmatpush1.bf16.msra.mxu0 0
        %2478 = vmatprep.mubr.bf16.mxu0 0
        %2479 = vmatmul.mubr.bf16.gmra.mrb[0].mxu0 %v2441
        %v2480 = vpop.f32.mrb[0].mxu0
        %v2481 = vadd.f32 0.0, %v2480
        %v2482 = vpop.f32.mrb[0].mxu0
        %v2483 = vpop.f32.mrb[0].mxu0
        %v2484 = vpop.f32.mrb[0].mxu0
        %2485 = vdwg.mxu0
        %v2486 = vpack.c.bf16 %v2481, %v2481
        %v2487 = vpack.c.bf16 %v2190, %v2190
        %v2489 = vsel %vm1276, %v2486, 0
        %v2492 = vsel %vm1373, %v2487, 0
        %2494 = vmatprep.subr.bf16.mxu0 0
        %2495 = vmatpush1.bf16.msra.mxu0 %v2492
        %2496 = vmatprep.subr.bf16.mxu0 0
        %2497 = vmatpush1.bf16.msra.mxu0 0
        %2498 = vmatprep.subr.bf16.mxu0 0
        %2499 = vmatpush1.bf16.msra.mxu0 0
        %2500 = vmatprep.subr.bf16.mxu0 0
        %2501 = vmatpush1.bf16.msra.mxu0 0
        %2502 = vmatprep.subr.bf16.mxu0 0
        %2503 = vmatpush1.bf16.msra.mxu0 0
        %2504 = vmatprep.subr.bf16.mxu0 0
        %2505 = vmatpush1.bf16.msra.mxu0 0
        %2506 = vmatprep.subr.bf16.mxu0 0
        %2507 = vmatpush1.bf16.msra.mxu0 0
        %2508 = vmatprep.subr.bf16.mxu0 0
        %2509 = vmatpush1.bf16.msra.mxu0 0
        %2510 = vmatprep.subr.bf16.mxu0 0
        %2511 = vmatpush1.bf16.msra.mxu0 0
        %2512 = vmatprep.subr.bf16.mxu0 0
        %2513 = vmatpush1.bf16.msra.mxu0 0
        %2514 = vmatprep.subr.bf16.mxu0 0
        %2515 = vmatpush1.bf16.msra.mxu0 0
        %2516 = vmatprep.subr.bf16.mxu0 0
        %2517 = vmatpush1.bf16.msra.mxu0 0
        %2518 = vmatprep.subr.bf16.mxu0 0
        %2519 = vmatpush1.bf16.msra.mxu0 0
        %2520 = vmatprep.subr.bf16.mxu0 0
        %2521 = vmatpush1.bf16.msra.mxu0 0
        %2522 = vmatprep.subr.bf16.mxu0 0
        %2523 = vmatpush1.bf16.msra.mxu0 0
        %2524 = vmatprep.subr.bf16.mxu0 0
        %2525 = vmatpush1.bf16.msra.mxu0 0
        %2526 = vmatprep.mubr.bf16.mxu0 0
        %2527 = vmatmul.mubr.bf16.gmra.mrb[0].mxu0 %v2489
        %v2528 = vpop.f32.mrb[0].mxu0
        %v2529 = vadd.f32 0.0, %v2528
        %v2530 = vpop.f32.mrb[0].mxu0
        %v2531 = vpop.f32.mrb[0].mxu0
        %v2532 = vpop.f32.mrb[0].mxu0
        %2533 = vdwg.mxu0
        %v2535 = vsel %vm1276, %v2342, 0
        %v2538 = vsel %vm1373, %v2343, 0
        %2540 = vmatprep.subr.bf16.mxu0 0
        %2541 = vmatpush1.bf16.msra.mxu0 %v2538
        %2542 = vmatprep.subr.bf16.mxu0 0
        %2543 = vmatpush1.bf16.msra.mxu0 0
        %2544 = vmatprep.subr.bf16.mxu0 0
        %2545 = vmatpush1.bf16.msra.mxu0 0
        %2546 = vmatprep.subr.bf16.mxu0 0
        %2547 = vmatpush1.bf16.msra.mxu0 0
        %2548 = vmatprep.subr.bf16.mxu0 0
        %2549 = vmatpush1.bf16.msra.mxu0 0
        %2550 = vmatprep.subr.bf16.mxu0 0
        %2551 = vmatpush1.bf16.msra.mxu0 0
        %2552 = vmatprep.subr.bf16.mxu0 0
        %2553 = vmatpush1.bf16.msra.mxu0 0
        %2554 = vmatprep.subr.bf16.mxu0 0
        %2555 = vmatpush1.bf16.msra.mxu0 0
        %2556 = vmatprep.subr.bf16.mxu0 0
        %2557 = vmatpush1.bf16.msra.mxu0 0
        %2558 = vmatprep.subr.bf16.mxu0 0
        %2559 = vmatpush1.bf16.msra.mxu0 0
        %2560 = vmatprep.subr.bf16.mxu0 0
        %2561 = vmatpush1.bf16.msra.mxu0 0
        %2562 = vmatprep.subr.bf16.mxu0 0
        %2563 = vmatpush1.bf16.msra.mxu0 0
        %2564 = vmatprep.subr.bf16.mxu0 0
        %2565 = vmatpush1.bf16.msra.mxu0 0
        %2566 = vmatprep.subr.bf16.mxu0 0
        %2567 = vmatpush1.bf16.msra.mxu0 0
        %2568 = vmatprep.subr.bf16.mxu0 0
        %2569 = vmatpush1.bf16.msra.mxu0 0
        %2570 = vmatprep.subr.bf16.mxu0 0
        %2571 = vmatpush1.bf16.msra.mxu0 0
        %2572 = vmatprep.mubr.bf16.mxu0 0
        %2573 = vmatmul.mubr.bf16.gmra.mrb[0].mxu0 %v2535
        %v2574 = vpop.f32.mrb[0].mxu0
        %v2575 = vadd.f32 %v2529, %v2574
        %v2576 = vpop.f32.mrb[0].mxu0
        %v2577 = vpop.f32.mrb[0].mxu0
        %v2578 = vpop.f32.mrb[0].mxu0
        %2579 = vdwg.mxu0
        %2580 = vrot.lane.b32.xlu0 %v2127, 112
        %v2581 = vpop.permute.xlu0 %2580
        %2582 = vrot.lane.b32.xlu0 %v2184, 112
        %v2583 = vpop.permute.xlu0 %2582
        %v2584 = vsel %vm1276, %v2581, 0
        %v2586 = vsel %vm1276, %v2583, 0
        %2588 = vmatprep.subr.mxu0 0.0
        %2589 = vmatpush1.xpose.msra.mxu0 %v2586
        %2590 = vmatprep.subr.mxu0 0.0
        %2591 = vmatpush1.xpose.msra.mxu0 0.0
        %2592 = vmatprep.subr.mxu0 0.0
        %2593 = vmatpush1.xpose.msra.mxu0 0.0
        %2594 = vmatprep.subr.mxu0 0.0
        %2595 = vmatpush1.xpose.msra.mxu0 0.0
        %2596 = vmatprep.subr.mxu0 0.0
        %2597 = vmatpush1.xpose.msra.mxu0 0.0
        %2598 = vmatprep.subr.mxu0 0.0
        %2599 = vmatpush1.xpose.msra.mxu0 0.0
        %2600 = vmatprep.subr.mxu0 0.0
        %2601 = vmatpush1.xpose.msra.mxu0 0.0
        %2602 = vmatprep.subr.mxu0 0.0
        %2603 = vmatpush1.xpose.msra.mxu0 0.0
        %2604 = vmatprep.subr.mxu0 0.0
        %2605 = vmatpush1.xpose.msra.mxu0 0.0
        %2606 = vmatprep.subr.mxu0 0.0
        %2607 = vmatpush1.xpose.msra.mxu0 0.0
        %2608 = vmatprep.subr.mxu0 0.0
        %2609 = vmatpush1.xpose.msra.mxu0 0.0
        %2610 = vmatprep.subr.mxu0 0.0
        %2611 = vmatpush1.xpose.msra.mxu0 0.0
        %2612 = vmatprep.subr.mxu0 0.0
        %2613 = vmatpush1.xpose.msra.mxu0 0.0
        %2614 = vmatprep.subr.mxu0 0.0
        %2615 = vmatpush1.xpose.msra.mxu0 0.0
        %2616 = vmatprep.subr.mxu0 0.0
        %2617 = vmatpush1.xpose.msra.mxu0 0.0
        %2618 = vmatprep.subr.mxu0 0.0
        %2619 = vmatpush1.xpose.msra.mxu0 0.0
        %2620 = vmatprep.subr.mxu0 0.0
        %2621 = vmatpush1.xpose.msra.mxu0 0.0
        %2622 = vmatprep.subr.mxu0 0.0
        %2623 = vmatpush1.xpose.msra.mxu0 0.0
        %2624 = vmatprep.subr.mxu0 0.0
        %2625 = vmatpush1.xpose.msra.mxu0 0.0
        %2626 = vmatprep.subr.mxu0 0.0
        %2627 = vmatpush1.xpose.msra.mxu0 0.0
        %2628 = vmatprep.subr.mxu0 0.0
        %2629 = vmatpush1.xpose.msra.mxu0 0.0
        %2630 = vmatprep.subr.mxu0 0.0
        %2631 = vmatpush1.xpose.msra.mxu0 0.0
        %2632 = vmatprep.subr.mxu0 0.0
        %2633 = vmatpush1.xpose.msra.mxu0 0.0
        %2634 = vmatprep.subr.mxu0 0.0
        %2635 = vmatpush1.xpose.msra.mxu0 0.0
        %2636 = vmatprep.subr.mxu0 0.0
        %2637 = vmatpush1.xpose.msra.mxu0 0.0
        %2638 = vmatprep.subr.mxu0 0.0
        %2639 = vmatpush1.xpose.msra.mxu0 0.0
        %2640 = vmatprep.subr.mxu0 0.0
        %2641 = vmatpush1.xpose.msra.mxu0 0.0
        %2642 = vmatprep.subr.mxu0 0.0
        %2643 = vmatpush1.xpose.msra.mxu0 0.0
        %2644 = vmatprep.subr.mxu0 0.0
        %2645 = vmatpush1.xpose.msra.mxu0 0.0
        %2646 = vmatprep.subr.mxu0 0.0
        %2647 = vmatpush1.xpose.msra.mxu0 0.0
        %2648 = vmatprep.subr.mxu0 0.0
        %2649 = vmatpush1.xpose.msra.mxu0 0.0
        %2650 = vmatprep.subr.mxu0 0.0
        %2651 = vmatpush1.xpose.msra.mxu0 0.0
        %2652 = vmatprep.mubr.f32.mxu0 0.0
        %2653 = vmatmul.mubr.f32.gmra.mrb[0].mxu0 %v2584
        %v2654 = vpop.f32.mrb[0].mxu0
        %v2655 = vadd.f32 0.0, %v2654
        %v2656 = vpop.f32.mrb[0].mxu0
        %2657 = vdwg.mxu0
        %v2658 = vmul.f32 %v2655, 0.35355338
        %v2659 = vadd.f32 %v2658, %v2276
        %v2660 = vsel %vm1276, %v2659, -inf
        %2661 = vmax.xlane.f32.xlu0 %v2660
        %v2662 = vpop.xlane.xlu0 %2661
        %v2663 = vsub.f32 %v2659, %v2662
        %v2664 = vmul.f32 %v2663, 1.442695
        %v2665 = vpow.pop %v2664
        %v2666 = vsel %vm1276, %v2665, 0.0
        %2667 = vadd.xlane.f32.xlu0 %v2666
        %v2668 = vpop.xlane.xlu0 %2667
        %v2669 = vrcp.pop %v2668
        %v2670 = vmul.f32 %v2665, %v2669
        %s2671 = scalar_lea.vmem %s1194, 16
        %2672 = vst.msk [vmem:[%s2671] sm:$0xff] %vm1276, %v2670
        %v2673 = vpack.c.bf16 %v2670, %v2670
        %2674 = vrot.lane.b32.xlu0 %v2292, 80
        %v2675 = vpop.permute.xlu0 %2674
        %v2677 = vsel %vm1276, %v2673, 0
        %v2680 = vsel %vm1373, %v2675, 0
        %2682 = vmatprep.subr.bf16.mxu0 0
        %2683 = vmatpush1.bf16.msra.mxu0 %v2680
        %2684 = vmatprep.subr.bf16.mxu0 0
        %2685 = vmatpush1.bf16.msra.mxu0 0
        %2686 = vmatprep.subr.bf16.mxu0 0
        %2687 = vmatpush1.bf16.msra.mxu0 0
        %2688 = vmatprep.subr.bf16.mxu0 0
        %2689 = vmatpush1.bf16.msra.mxu0 0
        %2690 = vmatprep.subr.bf16.mxu0 0
        %2691 = vmatpush1.bf16.msra.mxu0 0
        %2692 = vmatprep.subr.bf16.mxu0 0
        %2693 = vmatpush1.bf16.msra.mxu0 0
        %2694 = vmatprep.subr.bf16.mxu0 0
        %2695 = vmatpush1.bf16.msra.mxu0 0
        %2696 = vmatprep.subr.bf16.mxu0 0
        %2697 = vmatpush1.bf16.msra.mxu0 0
        %2698 = vmatprep.subr.bf16.mxu0 0
        %2699 = vmatpush1.bf16.msra.mxu0 0
        %2700 = vmatprep.subr.bf16.mxu0 0
        %2701 = vmatpush1.bf16.msra.mxu0 0
        %2702 = vmatprep.subr.bf16.mxu0 0
        %2703 = vmatpush1.bf16.msra.mxu0 0
        %2704 = vmatprep.subr.bf16.mxu0 0
        %2705 = vmatpush1.bf16.msra.mxu0 0
        %2706 = vmatprep.subr.bf16.mxu0 0
        %2707 = vmatpush1.bf16.msra.mxu0 0
        %2708 = vmatprep.subr.bf16.mxu0 0
        %2709 = vmatpush1.bf16.msra.mxu0 0
        %2710 = vmatprep.subr.bf16.mxu0 0
        %2711 = vmatpush1.bf16.msra.mxu0 0
        %2712 = vmatprep.subr.bf16.mxu0 0
        %2713 = vmatpush1.bf16.msra.mxu0 0
        %2714 = vmatprep.mubr.bf16.mxu0 0
        %2715 = vmatmul.mubr.bf16.gmra.mrb[0].mxu0 %v2677
        %v2716 = vpop.f32.mrb[0].mxu0
        %v2717 = vadd.f32 0.0, %v2716
        %v2718 = vpop.f32.mrb[0].mxu0
        %v2719 = vpop.f32.mrb[0].mxu0
        %v2720 = vpop.f32.mrb[0].mxu0
        %2721 = vdwg.mxu0
        %v2722 = vpack.c.bf16 %v2717, %v2717
        %v2723 = vpack.c.bf16 %v2191, %v2191
        %v2725 = vsel %vm1276, %v2722, 0
        %v2728 = vsel %vm1373, %v2723, 0
        %2730 = vmatprep.subr.bf16.mxu0 0
        %2731 = vmatpush1.bf16.msra.mxu0 %v2728
        %2732 = vmatprep.subr.bf16.mxu0 0
        %2733 = vmatpush1.bf16.msra.mxu0 0
        %2734 = vmatprep.subr.bf16.mxu0 0
        %2735 = vmatpush1.bf16.msra.mxu0 0
        %2736 = vmatprep.subr.bf16.mxu0 0
        %2737 = vmatpush1.bf16.msra.mxu0 0
        %2738 = vmatprep.subr.bf16.mxu0 0
        %2739 = vmatpush1.bf16.msra.mxu0 0
        %2740 = vmatprep.subr.bf16.mxu0 0
        %2741 = vmatpush1.bf16.msra.mxu0 0
        %2742 = vmatprep.subr.bf16.mxu0 0
        %2743 = vmatpush1.bf16.msra.mxu0 0
        %2744 = vmatprep.subr.bf16.mxu0 0
        %2745 = vmatpush1.bf16.msra.mxu0 0
        %2746 = vmatprep.subr.bf16.mxu0 0
        %2747 = vmatpush1.bf16.msra.mxu0 0
        %2748 = vmatprep.subr.bf16.mxu0 0
        %2749 = vmatpush1.bf16.msra.mxu0 0
        %2750 = vmatprep.subr.bf16.mxu0 0
        %2751 = vmatpush1.bf16.msra.mxu0 0
        %2752 = vmatprep.subr.bf16.mxu0 0
        %2753 = vmatpush1.bf16.msra.mxu0 0
        %2754 = vmatprep.subr.bf16.mxu0 0
        %2755 = vmatpush1.bf16.msra.mxu0 0
        %2756 = vmatprep.subr.bf16.mxu0 0
        %2757 = vmatpush1.bf16.msra.mxu0 0
        %2758 = vmatprep.subr.bf16.mxu0 0
        %2759 = vmatpush1.bf16.msra.mxu0 0
        %2760 = vmatprep.subr.bf16.mxu0 0
        %2761 = vmatpush1.bf16.msra.mxu0 0
        %2762 = vmatprep.mubr.bf16.mxu0 0
        %2763 = vmatmul.mubr.bf16.gmra.mrb[0].mxu0 %v2725
        %v2764 = vpop.f32.mrb[0].mxu0
        %v2765 = vadd.f32 0.0, %v2764
        %v2766 = vpop.f32.mrb[0].mxu0
        %v2767 = vpop.f32.mrb[0].mxu0
        %v2768 = vpop.f32.mrb[0].mxu0
        %2769 = vdwg.mxu0
        %v2770 = vadd.f32 %v2575, %v2765
        %2771 = vrot.lane.b32.xlu0 %v2127, 104
        %v2772 = vpop.permute.xlu0 %2771
        %2773 = vrot.lane.b32.xlu0 %v2184, 104
        %v2774 = vpop.permute.xlu0 %2773
        %v2775 = vsel %vm1276, %v2772, 0
        %v2777 = vsel %vm1276, %v2774, 0
        %2779 = vmatprep.subr.mxu0 0.0
        %2780 = vmatpush1.xpose.msra.mxu0 %v2777
        %2781 = vmatprep.subr.mxu0 0.0
        %2782 = vmatpush1.xpose.msra.mxu0 0.0
        %2783 = vmatprep.subr.mxu0 0.0
        %2784 = vmatpush1.xpose.msra.mxu0 0.0
        %2785 = vmatprep.subr.mxu0 0.0
        %2786 = vmatpush1.xpose.msra.mxu0 0.0
        %2787 = vmatprep.subr.mxu0 0.0
        %2788 = vmatpush1.xpose.msra.mxu0 0.0
        %2789 = vmatprep.subr.mxu0 0.0
        %2790 = vmatpush1.xpose.msra.mxu0 0.0
        %2791 = vmatprep.subr.mxu0 0.0
        %2792 = vmatpush1.xpose.msra.mxu0 0.0
        %2793 = vmatprep.subr.mxu0 0.0
        %2794 = vmatpush1.xpose.msra.mxu0 0.0
        %2795 = vmatprep.subr.mxu0 0.0
        %2796 = vmatpush1.xpose.msra.mxu0 0.0
        %2797 = vmatprep.subr.mxu0 0.0
        %2798 = vmatpush1.xpose.msra.mxu0 0.0
        %2799 = vmatprep.subr.mxu0 0.0
        %2800 = vmatpush1.xpose.msra.mxu0 0.0
        %2801 = vmatprep.subr.mxu0 0.0
        %2802 = vmatpush1.xpose.msra.mxu0 0.0
        %2803 = vmatprep.subr.mxu0 0.0
        %2804 = vmatpush1.xpose.msra.mxu0 0.0
        %2805 = vmatprep.subr.mxu0 0.0
        %2806 = vmatpush1.xpose.msra.mxu0 0.0
        %2807 = vmatprep.subr.mxu0 0.0
        %2808 = vmatpush1.xpose.msra.mxu0 0.0
        %2809 = vmatprep.subr.mxu0 0.0
        %2810 = vmatpush1.xpose.msra.mxu0 0.0
        %2811 = vmatprep.subr.mxu0 0.0
        %2812 = vmatpush1.xpose.msra.mxu0 0.0
        %2813 = vmatprep.subr.mxu0 0.0
        %2814 = vmatpush1.xpose.msra.mxu0 0.0
        %2815 = vmatprep.subr.mxu0 0.0
        %2816 = vmatpush1.xpose.msra.mxu0 0.0
        %2817 = vmatprep.subr.mxu0 0.0
        %2818 = vmatpush1.xpose.msra.mxu0 0.0
        %2819 = vmatprep.subr.mxu0 0.0
        %2820 = vmatpush1.xpose.msra.mxu0 0.0
        %2821 = vmatprep.subr.mxu0 0.0
        %2822 = vmatpush1.xpose.msra.mxu0 0.0
        %2823 = vmatprep.subr.mxu0 0.0
        %2824 = vmatpush1.xpose.msra.mxu0 0.0
        %2825 = vmatprep.subr.mxu0 0.0
        %2826 = vmatpush1.xpose.msra.mxu0 0.0
        %2827 = vmatprep.subr.mxu0 0.0
        %2828 = vmatpush1.xpose.msra.mxu0 0.0
        %2829 = vmatprep.subr.mxu0 0.0
        %2830 = vmatpush1.xpose.msra.mxu0 0.0
        %2831 = vmatprep.subr.mxu0 0.0
        %2832 = vmatpush1.xpose.msra.mxu0 0.0
        %2833 = vmatprep.subr.mxu0 0.0
        %2834 = vmatpush1.xpose.msra.mxu0 0.0
        %2835 = vmatprep.subr.mxu0 0.0
        %2836 = vmatpush1.xpose.msra.mxu0 0.0
        %2837 = vmatprep.subr.mxu0 0.0
        %2838 = vmatpush1.xpose.msra.mxu0 0.0
        %2839 = vmatprep.subr.mxu0 0.0
        %2840 = vmatpush1.xpose.msra.mxu0 0.0
        %2841 = vmatprep.subr.mxu0 0.0
        %2842 = vmatpush1.xpose.msra.mxu0 0.0
        %2843 = vmatprep.mubr.f32.mxu0 0.0
        %2844 = vmatmul.mubr.f32.gmra.mrb[0].mxu0 %v2775
        %v2845 = vpop.f32.mrb[0].mxu0
        %v2846 = vadd.f32 0.0, %v2845
        %v2847 = vpop.f32.mrb[0].mxu0
        %2848 = vdwg.mxu0
        %v2849 = vmul.f32 %v2846, 0.35355338
        %v2850 = vadd.f32 %v2849, %v2276
        %v2851 = vsel %vm1276, %v2850, -inf
        %2852 = vmax.xlane.f32.xlu0 %v2851
        %v2853 = vpop.xlane.xlu0 %2852
        %v2854 = vsub.f32 %v2850, %v2853
        %v2855 = vmul.f32 %v2854, 1.442695
        %v2856 = vpow.pop %v2855
        %v2857 = vsel %vm1276, %v2856, 0.0
        %2858 = vadd.xlane.f32.xlu0 %v2857
        %v2859 = vpop.xlane.xlu0 %2858
        %v2860 = vrcp.pop %v2859
        %v2861 = vmul.f32 %v2856, %v2860
        %s2862 = scalar_lea.vmem %s1194, 24
        %2863 = vst.msk [vmem:[%s2862] sm:$0xff] %vm1276, %v2861
        %v2864 = vpack.c.bf16 %v2861, %v2861
        %2865 = vrot.lane.b32.xlu0 %v2292, 72
        %v2866 = vpop.permute.xlu0 %2865
        %v2868 = vsel %vm1276, %v2864, 0
        %v2871 = vsel %vm1373, %v2866, 0
        %2873 = vmatprep.subr.bf16.mxu0 0
        %2874 = vmatpush1.bf16.msra.mxu0 %v2871
        %2875 = vmatprep.subr.bf16.mxu0 0
        %2876 = vmatpush1.bf16.msra.mxu0 0
        %2877 = vmatprep.subr.bf16.mxu0 0
        %2878 = vmatpush1.bf16.msra.mxu0 0
        %2879 = vmatprep.subr.bf16.mxu0 0
        %2880 = vmatpush1.bf16.msra.mxu0 0
        %2881 = vmatprep.subr.bf16.mxu0 0
        %2882 = vmatpush1.bf16.msra.mxu0 0
        %2883 = vmatprep.subr.bf16.mxu0 0
        %2884 = vmatpush1.bf16.msra.mxu0 0
        %2885 = vmatprep.subr.bf16.mxu0 0
        %2886 = vmatpush1.bf16.msra.mxu0 0
        %2887 = vmatprep.subr.bf16.mxu0 0
        %2888 = vmatpush1.bf16.msra.mxu0 0
        %2889 = vmatprep.subr.bf16.mxu0 0
        %2890 = vmatpush1.bf16.msra.mxu0 0
        %2891 = vmatprep.subr.bf16.mxu0 0
        %2892 = vmatpush1.bf16.msra.mxu0 0
        %2893 = vmatprep.subr.bf16.mxu0 0
        %2894 = vmatpush1.bf16.msra.mxu0 0
        %2895 = vmatprep.subr.bf16.mxu0 0
        %2896 = vmatpush1.bf16.msra.mxu0 0
        %2897 = vmatprep.subr.bf16.mxu0 0
        %2898 = vmatpush1.bf16.msra.mxu0 0
        %2899 = vmatprep.subr.bf16.mxu0 0
        %2900 = vmatpush1.bf16.msra.mxu0 0
        %2901 = vmatprep.subr.bf16.mxu0 0
        %2902 = vmatpush1.bf16.msra.mxu0 0
        %2903 = vmatprep.subr.bf16.mxu0 0
        %2904 = vmatpush1.bf16.msra.mxu0 0
        %2905 = vmatprep.mubr.bf16.mxu0 0
        %2906 = vmatmul.mubr.bf16.gmra.mrb[0].mxu0 %v2868
        %v2907 = vpop.f32.mrb[0].mxu0
        %v2908 = vadd.f32 0.0, %v2907
        %v2909 = vpop.f32.mrb[0].mxu0
        %v2910 = vpop.f32.mrb[0].mxu0
        %v2911 = vpop.f32.mrb[0].mxu0
        %2912 = vdwg.mxu0
        %v2913 = vpack.c.bf16 %v2908, %v2908
        %v2914 = vpack.c.bf16 %v2192, %v2192
        %v2916 = vsel %vm1276, %v2913, 0
        %v2919 = vsel %vm1373, %v2914, 0
        %2921 = vmatprep.subr.bf16.mxu0 0
        %2922 = vmatpush1.bf16.msra.mxu0 %v2919
        %2923 = vmatprep.subr.bf16.mxu0 0
        %2924 = vmatpush1.bf16.msra.mxu0 0
        %2925 = vmatprep.subr.bf16.mxu0 0
        %2926 = vmatpush1.bf16.msra.mxu0 0
        %2927 = vmatprep.subr.bf16.mxu0 0
        %2928 = vmatpush1.bf16.msra.mxu0 0
        %2929 = vmatprep.subr.bf16.mxu0 0
        %2930 = vmatpush1.bf16.msra.mxu0 0
        %2931 = vmatprep.subr.bf16.mxu0 0
        %2932 = vmatpush1.bf16.msra.mxu0 0
        %2933 = vmatprep.subr.bf16.mxu0 0
        %2934 = vmatpush1.bf16.msra.mxu0 0
        %2935 = vmatprep.subr.bf16.mxu0 0
        %2936 = vmatpush1.bf16.msra.mxu0 0
        %2937 = vmatprep.subr.bf16.mxu0 0
        %2938 = vmatpush1.bf16.msra.mxu0 0
        %2939 = vmatprep.subr.bf16.mxu0 0
        %2940 = vmatpush1.bf16.msra.mxu0 0
        %2941 = vmatprep.subr.bf16.mxu0 0
        %2942 = vmatpush1.bf16.msra.mxu0 0
        %2943 = vmatprep.subr.bf16.mxu0 0
        %2944 = vmatpush1.bf16.msra.mxu0 0
        %2945 = vmatprep.subr.bf16.mxu0 0
        %2946 = vmatpush1.bf16.msra.mxu0 0
        %2947 = vmatprep.subr.bf16.mxu0 0
        %2948 = vmatpush1.bf16.msra.mxu0 0
        %2949 = vmatprep.subr.bf16.mxu0 0
        %2950 = vmatpush1.bf16.msra.mxu0 0
        %2951 = vmatprep.subr.bf16.mxu0 0
        %2952 = vmatpush1.bf16.msra.mxu0 0
        %2953 = vmatprep.mubr.bf16.mxu0 0
        %2954 = vmatmul.mubr.bf16.gmra.mrb[0].mxu0 %v2916
        %v2955 = vpop.f32.mrb[0].mxu0
        %v2956 = vadd.f32 0.0, %v2955
        %v2957 = vpop.f32.mrb[0].mxu0
        %v2958 = vpop.f32.mrb[0].mxu0
        %v2959 = vpop.f32.mrb[0].mxu0
        %2960 = vdwg.mxu0
        %v2961 = vadd.f32 %v2770, %v2956
        %v2963 = vlaneseq
        %v2964 = vshrl.u32 %v2963, 7
        %v2965 = vsub.s32 0, %v2964
        %v2966 = vrot.slane %v2193, %v2965
        %v2968 = vadd.f32 %v2961, %v2966
        %v2969 = vld [vmem:[%s1153] sm:$0x1]
        %v2970 = vld [vmem:[%s1156] sm:$0x1]
        %v2971 = vadd.f32 %v2074, %v2968
        %v2972 = vsel %vm1223, %v2971, 0.0
        %2973 = vadd.xlane.f32.xlu0 %v2972
        %v2974 = vpop.xlane.xlu0 %2973
        %v2975 = vmul.f32 %v2974, %v2050
        %v2976 = vsub.f32 %v2971, %v2975
        %v2977 = vmul.f32 %v2976, %v2976
        %v2978 = vsel %vm1223, %v2977, 0.0
        %2979 = vadd.xlane.f32.xlu0 %v2978
        %v2980 = vpop.xlane.xlu0 %2979
        %v2981 = vmul.f32 %v2980, %v2050
        %v2982 = vadd.f32 %v2981, 1e-06
        %v2983 = vrsqrt.pop %v2982
        %v2984 = vmul.f32 %v2976, %v2983
        %v2986 = vlaneseq
        %v2987 = vshrl.u32 %v2986, 7
        %v2988 = vsub.s32 0, %v2987
        %v2989 = vrot.slane %v2969, %v2988
        %v2991 = vmul.f32 %v2984, %v2989
        %v2993 = vlaneseq
        %v2994 = vshrl.u32 %v2993, 7
        %v2995 = vsub.s32 0, %v2994
        %v2996 = vrot.slane %v2970, %v2995
        %v2998 = vadd.f32 %v2991, %v2996
        %v2999 = vld [vmem:[%s1161] sm:$0xff]
        %v3000 = vld [vmem:[%s1161 + $0x8] sm:$0xff]
        %v3001 = vld [vmem:[%s1161 + $0x10] sm:$0xff]
        %v3002 = vld [vmem:[%s1161 + $0x18] sm:$0xff]
        %v3003 = vpack.c.bf16 %v2998, %v2998
        %v3004 = vpack.c.bf16 %v3000, %v2999
        %v3005 = vpack.c.bf16 %v3002, %v3001
        %v3006 = vld [vmem:[%s1164] sm:$0x1]
        %v3008 = vlaneseq
        %v3009 = vshrl.u32 %v3008, 7
        %v3010 = vsub.s32 0, %v3009
        %v3011 = vrot.slane %v3006, %v3010
        %v3014 = vsel %vm1223, %v3003, 0
        %3016 = vmatprep.subr.bf16.mxu0 0
        %3017 = vmatpush1.bf16.msra.mxu0 %v3004
        %3018 = vmatprep.subr.bf16.mxu0 0
        %3019 = vmatpush1.bf16.msra.mxu0 %v3005
        %3020 = vmatprep.subr.bf16.mxu0 0
        %3021 = vmatpush1.bf16.msra.mxu0 0
        %3022 = vmatprep.subr.bf16.mxu0 0
        %3023 = vmatpush1.bf16.msra.mxu0 0
        %3024 = vmatprep.subr.bf16.mxu0 0
        %3025 = vmatpush1.bf16.msra.mxu0 0
        %3026 = vmatprep.subr.bf16.mxu0 0
        %3027 = vmatpush1.bf16.msra.mxu0 0
        %3028 = vmatprep.subr.bf16.mxu0 0
        %3029 = vmatpush1.bf16.msra.mxu0 0
        %3030 = vmatprep.subr.bf16.mxu0 0
        %3031 = vmatpush1.bf16.msra.mxu0 0
        %3032 = vmatprep.subr.bf16.mxu0 0
        %3033 = vmatpush1.bf16.msra.mxu0 0
        %3034 = vmatprep.subr.bf16.mxu0 0
        %3035 = vmatpush1.bf16.msra.mxu0 0
        %3036 = vmatprep.subr.bf16.mxu0 0
        %3037 = vmatpush1.bf16.msra.mxu0 0
        %3038 = vmatprep.subr.bf16.mxu0 0
        %3039 = vmatpush1.bf16.msra.mxu0 0
        %3040 = vmatprep.subr.bf16.mxu0 0
        %3041 = vmatpush1.bf16.msra.mxu0 0
        %3042 = vmatprep.subr.bf16.mxu0 0
        %3043 = vmatpush1.bf16.msra.mxu0 0
        %3044 = vmatprep.subr.bf16.mxu0 0
        %3045 = vmatpush1.bf16.msra.mxu0 0
        %3046 = vmatprep.subr.bf16.mxu0 0
        %3047 = vmatpush1.bf16.msra.mxu0 0
        %3048 = vmatprep.mubr.bf16.mxu0 0
        %3049 = vmatmul.mubr.bf16.gmra.mrb[0].mxu0 %v3014
        %v3050 = vpop.f32.mrb[0].mxu0
        %v3051 = vadd.f32 %v3011, %v3050
        %v3052 = vpop.f32.mrb[0].mxu0
        %v3053 = vpop.f32.mrb[0].mxu0
        %v3054 = vpop.f32.mrb[0].mxu0
        %3055 = vdwg.mxu0
        %v3056 = vmax.f32 %v3051, 0.0
        %v3057 = vld [vmem:[%s1169] sm:$0xff]
        %v3058 = vld [vmem:[%s1169 + $0x8] sm:$0xff]
        %v3059 = vld [vmem:[%s1169 + $0x10] sm:$0xff]
        %v3060 = vld [vmem:[%s1169 + $0x18] sm:$0xff]
        %v3061 = vld [vmem:[%s1169 + $0x20] sm:$0xff]
        %v3062 = vld [vmem:[%s1169 + $0x28] sm:$0xff]
        %v3063 = vld [vmem:[%s1169 + $0x30] sm:$0xff]
        %v3064 = vld [vmem:[%s1169 + $0x38] sm:$0xff]
        %v3065 = vpack.c.bf16 %v3056, %v3056
        %v3066 = vpack.c.bf16 %v3058, %v3057
        %v3067 = vpack.c.bf16 %v3060, %v3059
        %v3068 = vpack.c.bf16 %v3062, %v3061
        %v3069 = vpack.c.bf16 %v3064, %v3063
        %v3070 = vld [vmem:[%s1172] sm:$0x1]
        %v3072 = vlaneseq
        %v3073 = vshrl.u32 %v3072, 7
        %v3074 = vsub.s32 0, %v3073
        %v3075 = vrot.slane %v3070, %v3074
        %vm3077 = vcmask 523264
        %v3079 = vsel %vm3077, %v3065, 0
        %3081 = vmatprep.subr.bf16.mxu0 0
        %3082 = vmatpush1.bf16.msra.mxu0 %v3066
        %3083 = vmatprep.subr.bf16.mxu0 0
        %3084 = vmatpush1.bf16.msra.mxu0 %v3067
        %3085 = vmatprep.subr.bf16.mxu0 0
        %3086 = vmatpush1.bf16.msra.mxu0 %v3068
        %3087 = vmatprep.subr.bf16.mxu0 0
        %3088 = vmatpush1.bf16.msra.mxu0 %v3069
        %3089 = vmatprep.subr.bf16.mxu0 0
        %3090 = vmatpush1.bf16.msra.mxu0 0
        %3091 = vmatprep.subr.bf16.mxu0 0
        %3092 = vmatpush1.bf16.msra.mxu0 0
        %3093 = vmatprep.subr.bf16.mxu0 0
        %3094 = vmatpush1.bf16.msra.mxu0 0
        %3095 = vmatprep.subr.bf16.mxu0 0
        %3096 = vmatpush1.bf16.msra.mxu0 0
        %3097 = vmatprep.subr.bf16.mxu0 0
        %3098 = vmatpush1.bf16.msra.mxu0 0
        %3099 = vmatprep.subr.bf16.mxu0 0
        %3100 = vmatpush1.bf16.msra.mxu0 0
        %3101 = vmatprep.subr.bf16.mxu0 0
        %3102 = vmatpush1.bf16.msra.mxu0 0
        %3103 = vmatprep.subr.bf16.mxu0 0
        %3104 = vmatpush1.bf16.msra.mxu0 0
        %3105 = vmatprep.subr.bf16.mxu0 0
        %3106 = vmatpush1.bf16.msra.mxu0 0
        %3107 = vmatprep.subr.bf16.mxu0 0
        %3108 = vmatpush1.bf16.msra.mxu0 0
        %3109 = vmatprep.subr.bf16.mxu0 0
        %3110 = vmatpush1.bf16.msra.mxu0 0
        %3111 = vmatprep.subr.bf16.mxu0 0
        %3112 = vmatpush1.bf16.msra.mxu0 0
        %3113 = vmatprep.mubr.bf16.mxu0 0
        %3114 = vmatmul.mubr.bf16.gmra.mrb[0].mxu0 %v3079
        %v3115 = vpop.f32.mrb[0].mxu0
        %v3116 = vadd.f32 %v3075, %v3115
        %v3117 = vpop.f32.mrb[0].mxu0
        %v3118 = vpop.f32.mrb[0].mxu0
        %v3119 = vpop.f32.mrb[0].mxu0
        %3120 = vdwg.mxu0
        %v3121 = vld [vmem:[%s1175] sm:$0x1]
        %v3122 = vld [vmem:[%s1178] sm:$0x1]
        %v3123 = vadd.f32 %v2998, %v3116
        %v3124 = vsel %vm1223, %v3123, 0.0
        %3125 = vadd.xlane.f32.xlu0 %v3124
        %v3126 = vpop.xlane.xlu0 %3125
        %v3127 = vmul.f32 %v3126, %v2050
        %v3128 = vsub.f32 %v3123, %v3127
        %v3129 = vmul.f32 %v3128, %v3128
        %v3130 = vsel %vm1223, %v3129, 0.0
        %3131 = vadd.xlane.f32.xlu0 %v3130
        %v3132 = vpop.xlane.xlu0 %3131
        %v3133 = vmul.f32 %v3132, %v2050
        %v3134 = vadd.f32 %v3133, 1e-06
        %v3135 = vrsqrt.pop %v3134
        %v3136 = vmul.f32 %v3128, %v3135
        %v3138 = vlaneseq
        %v3139 = vshrl.u32 %v3138, 7
        %v3140 = vsub.s32 0, %v3139
        %v3141 = vrot.slane %v3121, %v3140
        %v3143 = vmul.f32 %v3136, %v3141
        %v3145 = vlaneseq
        %v3146 = vshrl.u32 %v3145, 7
        %v3147 = vsub.s32 0, %v3146
        %v3148 = vrot.slane %v3122, %v3147
        %v3150 = vadd.f32 %v3143, %v3148
        %3151 = vst.msk [vmem:[%s1075] sm:$0xff] %vm1223, %v3150
        %s3152 = sand.u32 %s680, 1
        %s3153 = scalar_lea.sflag [#allocation3], %s3152
        %s3154 = sand.u32 %s680, 1
        %s3155 = smul.addr %s3154, 8
        %s3156 = scalar_lea.vmem [#allocation2], %s3155
        %s3157 = smul.u32 %s46, 2
        %s3158 = sadd.s32 %s3157, %s45
        %p3159 = scmp.lt.s32.totalorder %s3158, 3
        %s3160 = scalar_select %p3159, %s3158, 3
        %s3161 = smul.addr %s3160, 4
        %s3162 = smul.addr %s3161, 8
        %s3163 = scalar_lea.vmem %s25, %s3162
        %s3164 = smul.u32 %s46, 2
        %s3165 = sadd.s32 %s3164, %s45
        %p3166 = scmp.lt.s32.totalorder %s3165, 3
        %s3167 = scalar_select %p3166, %s3165, 3
        %s3168 = smul.addr %s3167, 4
        %s3169 = smul.addr %s3168, 8
        %s3170 = scalar_lea.vmem %s26, %s3169
        // Predicated region
        $region121: #{decoder_forward.1} parent=115 // pred_check
          %p3171 = pneg %p690
        $region122: #{decoder_forward.1} parent=115 // pred_check_branch
          %3173 = sbr.rel (%p3171) target = $region124
        $region123: #{decoder_forward.1} parent=115 // pred_region
          %s3175 = ssub.s32 128, 128
          %3176 = vsyncadd %s3153, %s3175
          %s3177 = smul.addr %s45, 128
          %s3178 = scalar_lea.hbm %s24, %s3177
          %s3180 = sshll.u32 %s3156, 4
          %s3181 = int_to_ptr.vmem [resolvable:$true] %s3180
          %3183 = dma.vmem_to_hbm [thread:$0]  %s3181, 128, %s3178, %s3153
        $region124: #{decoder_forward.1} parent=115 // pred_fallthru
          _
        // Predicated region
        $region125: #{decoder_forward.1} parent=115 // pred_check
          %p3184 = pneg %p720
        $region126: #{decoder_forward.1} parent=115 // pred_check_branch
          %3186 = sbr.rel (%p3184) target = $region128
        $region127: #{decoder_forward.1} parent=115 // pred_region
          %s3187 = smul.u32 %s46, 2
          %s3188 = sadd.s32 %s3187, %s45
        $region128: #{decoder_forward.1} parent=115 // pred_fallthru
          _
        // Predicated region
        $region129: #{decoder_forward.1} parent=115 // pred_check
          %p3189 = pneg %p750
        $region130: #{decoder_forward.1} parent=115 // pred_check_branch
          %3191 = sbr.rel (%p3189) target = $region132
        $region131: #{decoder_forward.1} parent=115 // pred_region
          %s3192 = smul.u32 %s46, 2
          %s3193 = sadd.s32 %s3192, %s45
        $region132: #{decoder_forward.1} parent=115 // pred_fallthru
          _
      $region116: #{decoder_forward.1} parent=5 // pred_fallthru
        _
      %p3194 = scmp.le.s32.totalorder 2, %s36
      // Predicated region
      $region133: #{decoder_forward.1} parent=5 // pred_check
        %p3195 = pneg %p3194
      $region134: #{decoder_forward.1} parent=5 // pred_check_branch
        %3197 = sbr.rel (%p3195) target = $region136
      $region135: #{decoder_forward.1} parent=5 // pred_region
        %s3198 = ssub.s32 %s36, 2
        // Predicated region
        $region137: #{decoder_forward.1} parent=135 // pred_check
          %p3199 = pneg %p696
        $region138: #{decoder_forward.1} parent=135 // pred_check_branch
          %3201 = sbr.rel (%p3199) target = $region140
        $region139: #{decoder_forward.1} parent=135 // pred_region
          %s3202 = sand.u32 %s681, 1
          %s3203 = scalar_lea.sflag [#allocation3], %s3202
          %s3204 = sand.u32 %s681, 1
          %s3205 = smul.addr %s3204, 8
          %s3206 = scalar_lea.vmem [#allocation2], %s3205
          %3207 = dma.done %s3203, 128
        $region140: #{decoder_forward.1} parent=135 // pred_fallthru
          _
        // Predicated region
        $region141: #{decoder_forward.1} parent=135 // pred_check
          %p3208 = pneg %p726
        $region142: #{decoder_forward.1} parent=135 // pred_check_branch
          %3210 = sbr.rel (%p3208) target = $region144
        $region143: #{decoder_forward.1} parent=135 // pred_region
          %s3211 = smul.u32 %s48, 2
          %s3212 = sadd.s32 %s3211, %s47
          %p3213 = scmp.lt.s32.totalorder %s3212, 3
          %s3214 = scalar_select %p3213, %s3212, 3
          %s3215 = smul.addr %s3214, 4
          %s3216 = smul.addr %s3215, 8
          %s3217 = scalar_lea.vmem %s25, %s3216
        $region144: #{decoder_forward.1} parent=135 // pred_fallthru
          _
        // Predicated region
        $region145: #{decoder_forward.1} parent=135 // pred_check
          %p3218 = pneg %p756
        $region146: #{decoder_forward.1} parent=135 // pred_check_branch
          %3220 = sbr.rel (%p3218) target = $region148
        $region147: #{decoder_forward.1} parent=135 // pred_region
          %s3221 = smul.u32 %s48, 2
          %s3222 = sadd.s32 %s3221, %s47
          %p3223 = scmp.lt.s32.totalorder %s3222, 3
          %s3224 = scalar_select %p3223, %s3222, 3
          %s3225 = smul.addr %s3224, 4
          %s3226 = smul.addr %s3225, 8
          %s3227 = scalar_lea.vmem %s26, %s3226
        $region148: #{decoder_forward.1} parent=135 // pred_fallthru
          _
      $region136: #{decoder_forward.1} parent=5 // pred_fallthru
        _
    $region6: #{decoder_forward.1} parent=1 // loop_footer
      %s40 = sadd.s32 1, %s36
    $region7: #{decoder_forward.1} parent=1 // loop_footer_branch
      %35 = sbr.rel target = $region3
    $region8: #{decoder_forward.1} parent=1 // loop_exit
      _
    %3228 = vsyncpa [#allocation3], 1
    %s3229 = scalar_lea.sflag [#allocation3], 1
    %3230 = vsyncpa %s3229, 1

</llo_original>
